<compile_context>
chip_gen: v7x
topology: tpu7x:2x2x1
jax: 0.10.0
libtpu: 0.0.40
codegen_flags: <defaults>
</compile_context>

<pallas_src>
import jax
import jax.numpy as jnp
from jax.experimental import pallas as pl
from jax.experimental.pallas import tpu as pltpu

_VMEM_LIMIT = 64 * 1024 * 1024


def _round_up(n, m):
    return ((n + m - 1) // m) * m


# ----------------------------- MoE Pallas kernel -----------------------------
def _moe_kernel(nvalid_ref,                                     # scalar prefetch (SMEM)
                x_ref, wg_ref, w1_ref, b1_ref, w2_ref, b2_ref,  # inputs
                y_ref, aux_ref,                                 # outputs
                acc_ref):                                       # VMEM scratch
    i = pl.program_id(0)          # token block
    tm = x_ref.shape[0]
    num_experts = w1_ref.shape[0]
    e_pad = wg_ref.shape[1]       # 128 (lane-dense gate width)

    x = x_ref[...]                # (tm, D) bf16

    # ---- gating (bf16 matmul, f32 accumulation) ----
    logits = jnp.dot(x, wg_ref[...], preferred_element_type=jnp.float32)
    lane = jax.lax.broadcasted_iota(jnp.int32, logits.shape, 1)
    logits = jnp.where(lane < num_experts, logits, -1e30)
    logits = logits - jnp.max(logits, axis=-1, keepdims=True)
    ex = jnp.exp(logits)
    p = ex / jnp.sum(ex, axis=-1, keepdims=True)        # (tm, 128), pad lanes ~0

    # top-2 selection (padded lanes forced below any real probability)
    p_sel = jnp.where(lane < num_experts, p, -1.0)
    p1 = jnp.max(p_sel, axis=-1, keepdims=True)
    idx1 = jnp.min(jnp.where(p_sel == p1, lane, e_pad), axis=-1, keepdims=True)
    top1 = (lane == idx1).astype(jnp.float32)
    p_wo1 = jnp.where(top1 > 0, -1.0, p_sel)
    p2 = jnp.max(p_wo1, axis=-1, keepdims=True)
    idx2 = jnp.min(jnp.where(p_wo1 == p2, lane, e_pad), axis=-1, keepdims=True)
    top2 = (lane == idx2).astype(jnp.float32)

    comb = p * (top1 + top2) / (p1 + p2)                # renormalized top-2 (tm, 128)

    # ---- aux-loss partials for this token block (valid rows only) ----
    row = jax.lax.broadcasted_iota(jnp.int32, (tm, 1), 0) + i * tm
    valid = (row < nvalid_ref[0]).astype(jnp.float32)   # (tm, 1)
    counts = jnp.sum(top1 * valid, axis=0, keepdims=True)    # (1, 128)
    probsum = jnp.sum(p * valid, axis=0, keepdims=True)      # (1, 128)
    aux_ref[0] = jnp.concatenate([counts, probsum], axis=0)  # (2, 128)

    # ---- expert MLPs: all expert weights resident, static unrolled loop ----
    acc_ref[...] = jnp.zeros_like(acc_ref)
    for e in range(num_experts):
        w_e = comb[:, e:e + 1]                          # (tm, 1) combine weight
        h = jnp.maximum(
            jnp.dot(x, w1_ref[e], preferred_element_type=jnp.float32) + b1_ref[e],
            0.0)
        o = (jnp.dot(h.astype(jnp.bfloat16), w2_ref[e],
                     preferred_element_type=jnp.float32) + b2_ref[e])
        acc_ref[...] += w_e * o

    y_ref[...] = acc_ref[...].astype(y_ref.dtype)


def moe_layer(x, params, *, tm=1024, loss_coef=1e-2):
    """x: (N, D) bf16 -> (y (N, D) bf16, aux_loss scalar f32)."""
    N, D = x.shape
    E = params["wg"].shape[1]
    H = params["w1"].shape[2]
    assert 2 <= E <= 128, "top-2 gating requires 2 <= num_experts <= 128"
    E_PAD = 128

    # NOTE: for v7x megacore, pick tm so nb = N_pad / tm stays >= 2 (and even)
    # when N is large; for small N we just clamp the tile to the token count.
    tm_eff = min(tm, _round_up(N, 8))
    N_pad = _round_up(N, tm_eff)
    nb = N_pad // tm_eff
    x_p = x if N_pad == N else jnp.pad(x, ((0, N_pad - N), (0, 0)))

    wg_p = (jnp.zeros((D, E_PAD), jnp.float32)
            .at[:, :E].set(params["wg"])).astype(jnp.bfloat16)
    b1 = params["b1"].reshape(E, 1, H)
    b2 = params["b2"].reshape(E, 1, D)
    n_valid = jnp.array([N], jnp.int32)

    y, aux = pl.pallas_call(
        _moe_kernel,
        out_shape=(
            jax.ShapeDtypeStruct((N_pad, D), jnp.bfloat16),
            jax.ShapeDtypeStruct((nb, 2, E_PAD), jnp.float32),
        ),
        grid_spec=pltpu.PrefetchScalarGridSpec(
            num_scalar_prefetch=1,
            grid=(nb,),
            in_specs=[
                pl.BlockSpec((tm_eff, D), lambda i, nv: (i, 0)),       # x (bf16)
                pl.BlockSpec((D, E_PAD), lambda i, nv: (0, 0)),        # wg (bf16, padded)
                pl.BlockSpec((E, D, H), lambda i, nv: (0, 0, 0)),      # w1 (resident)
                pl.BlockSpec((E, 1, H), lambda i, nv: (0, 0, 0)),      # b1
                pl.BlockSpec((E, H, D), lambda i, nv: (0, 0, 0)),      # w2 (resident)
                pl.BlockSpec((E, 1, D), lambda i, nv: (0, 0, 0)),      # b2
            ],
            out_specs=[
                pl.BlockSpec((tm_eff, D), lambda i, nv: (i, 0)),       # y (bf16)
                pl.BlockSpec((1, 2, E_PAD), lambda i, nv: (i, 0, 0)),  # aux partial
            ],
            scratch_shapes=[
                pltpu.VMEM((tm_eff, D), jnp.float32),   # f32 accumulator
            ],
        ),
        compiler_params=pltpu.CompilerParams(
            dimension_semantics=("parallel",),
            vmem_limit_bytes=_VMEM_LIMIT),
    )(n_valid, x_p, wg_p, params["w1"], b1, params["w2"], b2)

    if N_pad != N:
        y = y[:N]
    stats = jnp.sum(aux, axis=0)          # (2, 128): reduce block partials
    f = stats[0, :E] / N                  # fraction routed (top-1) per expert
    P = stats[1, :E] / N                  # mean gate probability per expert
    aux_loss = E * jnp.sum(f * P) * loss_coef
    return y, aux_loss


# ----------------------------- MLM head (tiled matmul) -----------------------
def _mlm_kernel(x_ref, w_ref, b_ref, o_ref):
    o_ref[...] = (
        jnp.dot(x_ref[...], w_ref[...], preferred_element_type=jnp.float32)
        + b_ref[...]
    ).astype(o_ref.dtype)


def mlm_head(x, w, b, *, tm=512, tn=512):
    """x: (N, D) bf16, w: (D, V) bf16, b: (V,) f32 -> (N, V) f32 logits."""
    N, D = x.shape
    V = w.shape[1]
    tm_eff = min(tm, _round_up(N, 8))
    tn_eff = min(tn, _round_up(V, 128))
    N_pad = _round_up(N, tm_eff)
    V_pad = _round_up(V, tn_eff)

    x_p = x if N_pad == N else jnp.pad(x, ((0, N_pad - N), (0, 0)))
    w_p = w if V_pad == V else jnp.pad(w, ((0, 0), (0, V_pad - V)))
    b_p = (b if V_pad == V else jnp.pad(b, (0, V_pad - V))).reshape(1, V_pad)

    out = pl.pallas_call(
        _mlm_kernel,
        out_shape=jax.ShapeDtypeStruct((N_pad, V_pad), jnp.float32),
        grid_spec=pltpu.PrefetchScalarGridSpec(
            num_scalar_prefetch=0,
            grid=(N_pad // tm_eff, V_pad // tn_eff),
            in_specs=[
                pl.BlockSpec((tm_eff, D), lambda i, j: (i, 0)),
                pl.BlockSpec((D, tn_eff), lambda i, j: (0, j)),
                pl.BlockSpec((1, tn_eff), lambda i, j: (0, j)),
            ],
            out_specs=pl.BlockSpec((tm_eff, tn_eff), lambda i, j: (i, j)),
        ),
        compiler_params=pltpu.CompilerParams(
            dimension_semantics=("parallel", "parallel"),
            vmem_limit_bytes=_VMEM_LIMIT),
    )(x_p, w_p, b_p)
    if N_pad != N or V_pad != V:
        out = out[:N, :V]
    return out


# ----------------------------- full forward -----------------------------------
def embedding_moe_forward(params, ids):
    B, S = ids.shape
    # Embedding lookup is a gather (glue, not a Pallas hot path); table is bf16.
    x = jnp.take(params["embedding"], ids.reshape(-1), axis=0)   # (N, D) bf16
    x, aux1 = moe_layer(x, params["moe1"])
    x, aux2 = moe_layer(x, params["moe2"])
    logits = mlm_head(x, params["mlm_w"], params["mlm_b"])       # (N, V) f32
    V = params["mlm_w"].shape[1]
    return logits.reshape(B, S, V), aux1 + aux2


# ----------------------------- parameter init ---------------------------------
def init_params(key, vocab, dim, hidden, experts):
    ks = jax.random.split(key, 8)

    def moe_params(k):
        k1, k2, k3 = jax.random.split(k, 3)
        return {
            "wg": jax.random.normal(k1, (dim, experts), jnp.float32) * 0.02,
            # Heavy matmul weights stored in bf16 (f32 MXU accumulation in-kernel).
            "w1": (jax.random.normal(k2, (experts, dim, hidden), jnp.float32)
                   * 0.02).astype(jnp.bfloat16),
            "b1": jnp.zeros((experts, hidden), jnp.float32),
            "w2": (jax.random.normal(k3, (experts, hidden, dim), jnp.float32)
                   * 0.02).astype(jnp.bfloat16),
            "b2": jnp.zeros((experts, dim), jnp.float32),
        }

    return {
        "embedding": (jax.random.normal(ks[0], (vocab, dim), jnp.float32)
                      * 0.02).astype(jnp.bfloat16),
        "moe1": moe_params(ks[1]),
        "moe2": moe_params(ks[2]),
        "mlm_w": (jax.random.normal(ks[3], (dim, vocab), jnp.float32)
                  * 0.02).astype(jnp.bfloat16),
        "mlm_b": jnp.zeros((vocab,), jnp.float32),
    }


if __name__ == "__main__":
    # Small synthetic shapes consistent with the module structure
    # (real module: vocab=30522, dim=512; scaled down here).
    VOCAB, DIM, HIDDEN, EXPERTS = 1024, 256, 512, 4
    BATCH, SEQ = 2, 8

    key = jax.random.PRNGKey(0)
    pkey, ikey = jax.random.split(key)
    params = init_params(pkey, VOCAB, DIM, HIDDEN, EXPERTS)
    ids = jax.random.randint(ikey, (BATCH, SEQ), 0, VOCAB, dtype=jnp.int32)

    logits, aux_loss = jax.jit(embedding_moe_forward)(params, ids)
    jax.block_until_ready((logits, aux_loss))

    assert logits.shape == (BATCH, SEQ, VOCAB)
    assert logits.dtype == jnp.float32
    assert aux_loss.shape == ()
    assert bool(jnp.isfinite(logits).all()) and bool(jnp.isfinite(aux_loss))
    print("KERNEL_OK")
</pallas_src>

<mosaic_0001>
module attributes {stable_mosaic.version = 11 : i64} {
  func.func @_moe_kernel(%arg0: i32, %arg1: memref<1xi32, #tpu.memory_space<smem>>, %arg2: memref<16x256xbf16, #tpu.memory_space<vmem>>, %arg3: memref<256x128xbf16, #tpu.memory_space<vmem>>, %arg4: memref<4x256x512xbf16, #tpu.memory_space<vmem>>, %arg5: memref<4x1x512xf32, #tpu.memory_space<vmem>>, %arg6: memref<4x512x256xbf16, #tpu.memory_space<vmem>>, %arg7: memref<4x1x256xf32, #tpu.memory_space<vmem>>, %arg8: memref<16x256xbf16, #tpu.memory_space<vmem>>, %arg9: memref<1x2x128xf32, #tpu.memory_space<vmem>>, %arg10: memref<16x256xf32, #tpu.memory_space<vmem>>) attributes {dimension_semantics = [#tpu.dimension_semantics<parallel>], iteration_bounds = array<i64: 1>, scalar_prefetch = 1 : i64, scratch_operands = 1 : i64, tpu.core_type = #tpu.core_type<tc>, window_params = [{transform_indices = @transform_0, window_bounds = array<i64: 16, 256>}, {pipeline_mode = #tpu.pipeline_mode<synchronous>, transform_indices = @transform_1, window_bounds = array<i64: 256, 128>}, {pipeline_mode = #tpu.pipeline_mode<synchronous>, transform_indices = @transform_2, window_bounds = array<i64: 4, 256, 512>}, {pipeline_mode = #tpu.pipeline_mode<synchronous>, transform_indices = @transform_3, window_bounds = array<i64: 4, 1, 512>}, {pipeline_mode = #tpu.pipeline_mode<synchronous>, transform_indices = @transform_4, window_bounds = array<i64: 4, 512, 256>}, {pipeline_mode = #tpu.pipeline_mode<synchronous>, transform_indices = @transform_5, window_bounds = array<i64: 4, 1, 256>}, {transform_indices = @transform_6, window_bounds = array<i64: 16, 256>}, {transform_indices = @transform_7, window_bounds = array<i64: 1, 2, 128>}]} {
    %c0 = arith.constant 0 : index
    %c0_0 = arith.constant 0 : index
    %0 = vector.load %arg2[%c0, %c0_0] : memref<16x256xbf16, #tpu.memory_space<vmem>>, vector<16x256xbf16>
    %c0_1 = arith.constant 0 : index
    %c0_2 = arith.constant 0 : index
    %1 = vector.load %arg3[%c0_1, %c0_2] : memref<256x128xbf16, #tpu.memory_space<vmem>>, vector<256x128xbf16>
    %cst = arith.constant dense<0.000000e+00> : vector<16x128xf32>
    %2 = tpu.matmul %0, %1, %cst {dimension_numbers = #tpu.dot_dimension_numbers<[1], [0], [0], [1], [0, 0, 1, 1], [], []>} : vector<16x256xbf16>, vector<256x128xbf16>, vector<16x128xf32> -> vector<16x128xf32>
    %3 = tpu.iota {dimensions = array<i32: 1>} : vector<16x128xi32>
    %c4_i32 = arith.constant 4 : i32
    %4 = vector.broadcast %c4_i32 : i32 to vector<16x128xi32>
    %5 = arith.cmpi slt, %3, %4 : vector<16x128xi32>
    %cst_3 = arith.constant -1.000000e+30 : f32
    %6 = vector.broadcast %cst_3 : f32 to vector<16x128xf32>
    %7 = arith.select %5, %2, %6 : vector<16x128xi1>, vector<16x128xf32>
    %cst_4 = arith.constant dense<0xFF800000> : vector<16xf32>
    %8 = vector.multi_reduction <maximumf>, %7, %cst_4 [1] : vector<16x128xf32> to vector<16xf32>
    %9 = vector.shape_cast %8 : vector<16xf32> to vector<16x1xf32>
    %10 = vector.broadcast %9 : vector<16x1xf32> to vector<16x128xf32>
    %11 = arith.subf %7, %10 : vector<16x128xf32>
    %12 = math.exp %11 : vector<16x128xf32>
    %cst_5 = arith.constant dense<0.000000e+00> : vector<16xf32>
    %13 = vector.multi_reduction <add>, %12, %cst_5 [1] : vector<16x128xf32> to vector<16xf32>
    %14 = vector.shape_cast %13 : vector<16xf32> to vector<16x1xf32>
    %15 = vector.broadcast %14 : vector<16x1xf32> to vector<16x128xf32>
    %16 = arith.divf %12, %15 : vector<16x128xf32>
    %c4_i32_6 = arith.constant 4 : i32
    %17 = vector.broadcast %c4_i32_6 : i32 to vector<16x128xi32>
    %18 = arith.cmpi slt, %3, %17 : vector<16x128xi32>
    %cst_7 = arith.constant -1.000000e+00 : f32
    %19 = vector.broadcast %cst_7 : f32 to vector<16x128xf32>
    %20 = arith.select %18, %16, %19 : vector<16x128xi1>, vector<16x128xf32>
    %cst_8 = arith.constant dense<0xFF800000> : vector<16xf32>
    %21 = vector.multi_reduction <maximumf>, %20, %cst_8 [1] : vector<16x128xf32> to vector<16xf32>
    %22 = vector.shape_cast %21 : vector<16xf32> to vector<16x1xf32>
    %23 = vector.broadcast %22 : vector<16x1xf32> to vector<16x128xf32>
    %24 = arith.cmpf oeq, %20, %23 : vector<16x128xf32>
    %c128_i32 = arith.constant 128 : i32
    %25 = vector.broadcast %c128_i32 : i32 to vector<16x128xi32>
    %26 = arith.select %24, %3, %25 : vector<16x128xi1>, vector<16x128xi32>
    %cst_9 = arith.constant dense<2147483647> : vector<16xi32>
    %27 = vector.multi_reduction <minsi>, %26, %cst_9 [1] : vector<16x128xi32> to vector<16xi32>
    %28 = vector.shape_cast %27 : vector<16xi32> to vector<16x1xi32>
    %29 = vector.broadcast %28 : vector<16x1xi32> to vector<16x128xi32>
    %30 = arith.cmpi eq, %3, %29 : vector<16x128xi32>
    %31 = arith.extui %30 : vector<16x128xi1> to vector<16x128xi32>
    %32 = arith.sitofp %31 : vector<16x128xi32> to vector<16x128xf32>
    %cst_10 = arith.constant 0.000000e+00 : f32
    %33 = vector.broadcast %cst_10 : f32 to vector<16x128xf32>
    %34 = arith.cmpf ogt, %32, %33 : vector<16x128xf32>
    %cst_11 = arith.constant -1.000000e+00 : f32
    %35 = vector.broadcast %cst_11 : f32 to vector<16x128xf32>
    %36 = arith.select %34, %35, %20 : vector<16x128xi1>, vector<16x128xf32>
    %cst_12 = arith.constant dense<0xFF800000> : vector<16xf32>
    %37 = vector.multi_reduction <maximumf>, %36, %cst_12 [1] : vector<16x128xf32> to vector<16xf32>
    %38 = vector.shape_cast %37 : vector<16xf32> to vector<16x1xf32>
    %39 = vector.broadcast %38 : vector<16x1xf32> to vector<16x128xf32>
    %40 = arith.cmpf oeq, %36, %39 : vector<16x128xf32>
    %c128_i32_13 = arith.constant 128 : i32
    %41 = vector.broadcast %c128_i32_13 : i32 to vector<16x128xi32>
    %42 = arith.select %40, %3, %41 : vector<16x128xi1>, vector<16x128xi32>
    %cst_14 = arith.constant dense<2147483647> : vector<16xi32>
    %43 = vector.multi_reduction <minsi>, %42, %cst_14 [1] : vector<16x128xi32> to vector<16xi32>
    %44 = vector.shape_cast %43 : vector<16xi32> to vector<16x1xi32>
    %45 = vector.broadcast %44 : vector<16x1xi32> to vector<16x128xi32>
    %46 = arith.cmpi eq, %3, %45 : vector<16x128xi32>
    %47 = arith.extui %46 : vector<16x128xi1> to vector<16x128xi32>
    %48 = arith.sitofp %47 : vector<16x128xi32> to vector<16x128xf32>
    %49 = arith.addf %32, %48 : vector<16x128xf32>
    %50 = arith.mulf %16, %49 : vector<16x128xf32>
    %51 = arith.addf %22, %38 : vector<16x1xf32>
    %52 = vector.broadcast %51 : vector<16x1xf32> to vector<16x128xf32>
    %53 = arith.divf %50, %52 : vector<16x128xf32>
    %54 = tpu.iota {dimensions = array<i32: 0>} : vector<16x1xi32>
    %c16_i32 = arith.constant 16 : i32
    %55 = arith.muli %arg0, %c16_i32 : i32
    %56 = vector.broadcast %55 : i32 to vector<16x1xi32>
    %57 = arith.addi %54, %56 : vector<16x1xi32>
    %c0_15 = arith.constant 0 : index
    %58 = memref.load %arg1[%c0_15] : memref<1xi32, #tpu.memory_space<smem>>
    %59 = vector.broadcast %58 : i32 to vector<16x1xi32>
    %60 = arith.cmpi slt, %57, %59 : vector<16x1xi32>
    %61 = arith.extui %60 : vector<16x1xi1> to vector<16x1xi32>
    %62 = arith.sitofp %61 : vector<16x1xi32> to vector<16x1xf32>
    %63 = vector.broadcast %62 : vector<16x1xf32> to vector<16x128xf32>
    %64 = arith.mulf %32, %63 : vector<16x128xf32>
    %cst_16 = arith.constant dense<0.000000e+00> : vector<128xf32>
    %65 = vector.multi_reduction <add>, %64, %cst_16 [0] : vector<16x128xf32> to vector<128xf32>
    %66 = vector.shape_cast %65 : vector<128xf32> to vector<1x128xf32>
    %67 = vector.broadcast %62 : vector<16x1xf32> to vector<16x128xf32>
    %68 = arith.mulf %16, %67 : vector<16x128xf32>
    %cst_17 = arith.constant dense<0.000000e+00> : vector<128xf32>
    %69 = vector.multi_reduction <add>, %68, %cst_17 [0] : vector<16x128xf32> to vector<128xf32>
    %70 = vector.shape_cast %69 : vector<128xf32> to vector<1x128xf32>
    %71 = tpu.concatenate %66, %70 in 0 : vector<1x128xf32>, vector<1x128xf32> -> vector<2x128xf32>
    %c0_18 = arith.constant 0 : index
    %c0_19 = arith.constant 0 : index
    %c0_20 = arith.constant 0 : index
    %72 = vector.load %arg9[%c0_18, %c0_19, %c0_20] : memref<1x2x128xf32, #tpu.memory_space<vmem>>, vector<1x2x128xf32>
    %73 = vector.shape_cast %72 : vector<1x2x128xf32> to vector<2x128xf32>
    %74 = vector.shape_cast %71 : vector<2x128xf32> to vector<1x2x128xf32>
    tpu.vector_store %arg9[%c0_18, %c0_19, %c0_20], %74 {strides = array<i32>} : memref<1x2x128xf32, #tpu.memory_space<vmem>>, vector<1x2x128xf32>,
    %cst_21 = arith.constant 0.000000e+00 : f32
    %75 = vector.broadcast %cst_21 : f32 to vector<16x256xf32>
    %c0_22 = arith.constant 0 : index
    %c0_23 = arith.constant 0 : index
    %76 = vector.load %arg10[%c0_22, %c0_23] : memref<16x256xf32, #tpu.memory_space<vmem>>, vector<16x256xf32>
    tpu.vector_store %arg10[%c0_22, %c0_23], %75 {strides = array<i32>} : memref<16x256xf32, #tpu.memory_space<vmem>>, vector<16x256xf32>,
    %77 = vector.extract_strided_slice %53 {offsets = [0, 0], sizes = [16, 1], strides = [1, 1]} : vector<16x128xf32> to vector<16x1xf32>
    %c0_24 = arith.constant 0 : index
    %c0_25 = arith.constant 0 : index
    %c0_26 = arith.constant 0 : index
    %78 = vector.load %arg4[%c0_24, %c0_25, %c0_26] : memref<4x256x512xbf16, #tpu.memory_space<vmem>>, vector<1x256x512xbf16>
    %79 = vector.shape_cast %78 : vector<1x256x512xbf16> to vector<256x512xbf16>
    %cst_27 = arith.constant dense<0.000000e+00> : vector<16x512xf32>
    %80 = tpu.matmul %0, %79, %cst_27 {dimension_numbers = #tpu.dot_dimension_numbers<[1], [0], [0], [1], [0, 0, 1, 1], [], []>} : vector<16x256xbf16>, vector<256x512xbf16>, vector<16x512xf32> -> vector<16x512xf32>
    %c0_28 = arith.constant 0 : index
    %c0_29 = arith.constant 0 : index
    %c0_30 = arith.constant 0 : index
    %81 = vector.load %arg5[%c0_28, %c0_29, %c0_30] : memref<4x1x512xf32, #tpu.memory_space<vmem>>, vector<1x1x512xf32>
    %82 = vector.shape_cast %81 : vector<1x1x512xf32> to vector<1x512xf32>
    %83 = vector.broadcast %82 : vector<1x512xf32> to vector<16x512xf32>
    %84 = arith.addf %80, %83 : vector<16x512xf32>
    %cst_31 = arith.constant 0.000000e+00 : f32
    %85 = vector.broadcast %cst_31 : f32 to vector<16x512xf32>
    %86 = arith.maximumf %84, %85 : vector<16x512xf32>
    %87 = arith.truncf %86 : vector<16x512xf32> to vector<16x512xbf16>
    %c0_32 = arith.constant 0 : index
    %c0_33 = arith.constant 0 : index
    %c0_34 = arith.constant 0 : index
    %88 = vector.load %arg6[%c0_32, %c0_33, %c0_34] : memref<4x512x256xbf16, #tpu.memory_space<vmem>>, vector<1x512x256xbf16>
    %89 = vector.shape_cast %88 : vector<1x512x256xbf16> to vector<512x256xbf16>
    %cst_35 = arith.constant dense<0.000000e+00> : vector<16x256xf32>
    %90 = tpu.matmul %87, %89, %cst_35 {dimension_numbers = #tpu.dot_dimension_numbers<[1], [0], [0], [1], [0, 0, 1, 1], [], []>} : vector<16x512xbf16>, vector<512x256xbf16>, vector<16x256xf32> -> vector<16x256xf32>
    %c0_36 = arith.constant 0 : index
    %c0_37 = arith.constant 0 : index
    %c0_38 = arith.constant 0 : index
    %91 = vector.load %arg7[%c0_36, %c0_37, %c0_38] : memref<4x1x256xf32, #tpu.memory_space<vmem>>, vector<1x1x256xf32>
    %92 = vector.shape_cast %91 : vector<1x1x256xf32> to vector<1x256xf32>
    %93 = vector.broadcast %92 : vector<1x256xf32> to vector<16x256xf32>
    %94 = arith.addf %90, %93 : vector<16x256xf32>
    %c0_39 = arith.constant 0 : index
    %c0_40 = arith.constant 0 : index
    %95 = vector.load %arg10[%c0_39, %c0_40] : memref<16x256xf32, #tpu.memory_space<vmem>>, vector<16x256xf32>
    %96 = vector.broadcast %77 : vector<16x1xf32> to vector<16x256xf32>
    %97 = arith.mulf %96, %94 : vector<16x256xf32>
    %98 = arith.addf %95, %97 : vector<16x256xf32>
    %c0_41 = arith.constant 0 : index
    %c0_42 = arith.constant 0 : index
    %99 = vector.load %arg10[%c0_41, %c0_42] : memref<16x256xf32, #tpu.memory_space<vmem>>, vector<16x256xf32>
    tpu.vector_store %arg10[%c0_41, %c0_42], %98 {strides = array<i32>} : memref<16x256xf32, #tpu.memory_space<vmem>>, vector<16x256xf32>,
    %100 = vector.extract_strided_slice %53 {offsets = [0, 1], sizes = [16, 1], strides = [1, 1]} : vector<16x128xf32> to vector<16x1xf32>
    %c1 = arith.constant 1 : index
    %c0_43 = arith.constant 0 : index
    %c0_44 = arith.constant 0 : index
    %101 = vector.load %arg4[%c1, %c0_43, %c0_44] : memref<4x256x512xbf16, #tpu.memory_space<vmem>>, vector<1x256x512xbf16>
    %102 = vector.shape_cast %101 : vector<1x256x512xbf16> to vector<256x512xbf16>
    %cst_45 = arith.constant dense<0.000000e+00> : vector<16x512xf32>
    %103 = tpu.matmul %0, %102, %cst_45 {dimension_numbers = #tpu.dot_dimension_numbers<[1], [0], [0], [1], [0, 0, 1, 1], [], []>} : vector<16x256xbf16>, vector<256x512xbf16>, vector<16x512xf32> -> vector<16x512xf32>
    %c1_46 = arith.constant 1 : index
    %c0_47 = arith.constant 0 : index
    %c0_48 = arith.constant 0 : index
    %104 = vector.load %arg5[%c1_46, %c0_47, %c0_48] : memref<4x1x512xf32, #tpu.memory_space<vmem>>, vector<1x1x512xf32>
    %105 = vector.shape_cast %104 : vector<1x1x512xf32> to vector<1x512xf32>
    %106 = vector.broadcast %105 : vector<1x512xf32> to vector<16x512xf32>
    %107 = arith.addf %103, %106 : vector<16x512xf32>
    %cst_49 = arith.constant 0.000000e+00 : f32
    %108 = vector.broadcast %cst_49 : f32 to vector<16x512xf32>
    %109 = arith.maximumf %107, %108 : vector<16x512xf32>
    %110 = arith.truncf %109 : vector<16x512xf32> to vector<16x512xbf16>
    %c1_50 = arith.constant 1 : index
    %c0_51 = arith.constant 0 : index
    %c0_52 = arith.constant 0 : index
    %111 = vector.load %arg6[%c1_50, %c0_51, %c0_52] : memref<4x512x256xbf16, #tpu.memory_space<vmem>>, vector<1x512x256xbf16>
    %112 = vector.shape_cast %111 : vector<1x512x256xbf16> to vector<512x256xbf16>
    %cst_53 = arith.constant dense<0.000000e+00> : vector<16x256xf32>
    %113 = tpu.matmul %110, %112, %cst_53 {dimension_numbers = #tpu.dot_dimension_numbers<[1], [0], [0], [1], [0, 0, 1, 1], [], []>} : vector<16x512xbf16>, vector<512x256xbf16>, vector<16x256xf32> -> vector<16x256xf32>
    %c1_54 = arith.constant 1 : index
    %c0_55 = arith.constant 0 : index
    %c0_56 = arith.constant 0 : index
    %114 = vector.load %arg7[%c1_54, %c0_55, %c0_56] : memref<4x1x256xf32, #tpu.memory_space<vmem>>, vector<1x1x256xf32>
    %115 = vector.shape_cast %114 : vector<1x1x256xf32> to vector<1x256xf32>
    %116 = vector.broadcast %115 : vector<1x256xf32> to vector<16x256xf32>
    %117 = arith.addf %113, %116 : vector<16x256xf32>
    %c0_57 = arith.constant 0 : index
    %c0_58 = arith.constant 0 : index
    %118 = vector.load %arg10[%c0_57, %c0_58] : memref<16x256xf32, #tpu.memory_space<vmem>>, vector<16x256xf32>
    %119 = vector.broadcast %100 : vector<16x1xf32> to vector<16x256xf32>
    %120 = arith.mulf %119, %117 : vector<16x256xf32>
    %121 = arith.addf %118, %120 : vector<16x256xf32>
    %c0_59 = arith.constant 0 : index
    %c0_60 = arith.constant 0 : index
    %122 = vector.load %arg10[%c0_59, %c0_60] : memref<16x256xf32, #tpu.memory_space<vmem>>, vector<16x256xf32>
    tpu.vector_store %arg10[%c0_59, %c0_60], %121 {strides = array<i32>} : memref<16x256xf32, #tpu.memory_space<vmem>>, vector<16x256xf32>,
    %123 = vector.extract_strided_slice %53 {offsets = [0, 2], sizes = [16, 1], strides = [1, 1]} : vector<16x128xf32> to vector<16x1xf32>
    %c2 = arith.constant 2 : index
    %c0_61 = arith.constant 0 : index
    %c0_62 = arith.constant 0 : index
    %124 = vector.load %arg4[%c2, %c0_61, %c0_62] : memref<4x256x512xbf16, #tpu.memory_space<vmem>>, vector<1x256x512xbf16>
    %125 = vector.shape_cast %124 : vector<1x256x512xbf16> to vector<256x512xbf16>
    %cst_63 = arith.constant dense<0.000000e+00> : vector<16x512xf32>
    %126 = tpu.matmul %0, %125, %cst_63 {dimension_numbers = #tpu.dot_dimension_numbers<[1], [0], [0], [1], [0, 0, 1, 1], [], []>} : vector<16x256xbf16>, vector<256x512xbf16>, vector<16x512xf32> -> vector<16x512xf32>
    %c2_64 = arith.constant 2 : index
    %c0_65 = arith.constant 0 : index
    %c0_66 = arith.constant 0 : index
    %127 = vector.load %arg5[%c2_64, %c0_65, %c0_66] : memref<4x1x512xf32, #tpu.memory_space<vmem>>, vector<1x1x512xf32>
    %128 = vector.shape_cast %127 : vector<1x1x512xf32> to vector<1x512xf32>
    %129 = vector.broadcast %128 : vector<1x512xf32> to vector<16x512xf32>
    %130 = arith.addf %126, %129 : vector<16x512xf32>
    %cst_67 = arith.constant 0.000000e+00 : f32
    %131 = vector.broadcast %cst_67 : f32 to vector<16x512xf32>
    %132 = arith.maximumf %130, %131 : vector<16x512xf32>
    %133 = arith.truncf %132 : vector<16x512xf32> to vector<16x512xbf16>
    %c2_68 = arith.constant 2 : index
    %c0_69 = arith.constant 0 : index
    %c0_70 = arith.constant 0 : index
    %134 = vector.load %arg6[%c2_68, %c0_69, %c0_70] : memref<4x512x256xbf16, #tpu.memory_space<vmem>>, vector<1x512x256xbf16>
    %135 = vector.shape_cast %134 : vector<1x512x256xbf16> to vector<512x256xbf16>
    %cst_71 = arith.constant dense<0.000000e+00> : vector<16x256xf32>
    %136 = tpu.matmul %133, %135, %cst_71 {dimension_numbers = #tpu.dot_dimension_numbers<[1], [0], [0], [1], [0, 0, 1, 1], [], []>} : vector<16x512xbf16>, vector<512x256xbf16>, vector<16x256xf32> -> vector<16x256xf32>
    %c2_72 = arith.constant 2 : index
    %c0_73 = arith.constant 0 : index
    %c0_74 = arith.constant 0 : index
    %137 = vector.load %arg7[%c2_72, %c0_73, %c0_74] : memref<4x1x256xf32, #tpu.memory_space<vmem>>, vector<1x1x256xf32>
    %138 = vector.shape_cast %137 : vector<1x1x256xf32> to vector<1x256xf32>
    %139 = vector.broadcast %138 : vector<1x256xf32> to vector<16x256xf32>
    %140 = arith.addf %136, %139 : vector<16x256xf32>
    %c0_75 = arith.constant 0 : index
    %c0_76 = arith.constant 0 : index
    %141 = vector.load %arg10[%c0_75, %c0_76] : memref<16x256xf32, #tpu.memory_space<vmem>>, vector<16x256xf32>
    %142 = vector.broadcast %123 : vector<16x1xf32> to vector<16x256xf32>
    %143 = arith.mulf %142, %140 : vector<16x256xf32>
    %144 = arith.addf %141, %143 : vector<16x256xf32>
    %c0_77 = arith.constant 0 : index
    %c0_78 = arith.constant 0 : index
    %145 = vector.load %arg10[%c0_77, %c0_78] : memref<16x256xf32, #tpu.memory_space<vmem>>, vector<16x256xf32>
    tpu.vector_store %arg10[%c0_77, %c0_78], %144 {strides = array<i32>} : memref<16x256xf32, #tpu.memory_space<vmem>>, vector<16x256xf32>,
    %146 = vector.extract_strided_slice %53 {offsets = [0, 3], sizes = [16, 1], strides = [1, 1]} : vector<16x128xf32> to vector<16x1xf32>
    %c3 = arith.constant 3 : index
    %c0_79 = arith.constant 0 : index
    %c0_80 = arith.constant 0 : index
    %147 = vector.load %arg4[%c3, %c0_79, %c0_80] : memref<4x256x512xbf16, #tpu.memory_space<vmem>>, vector<1x256x512xbf16>
    %148 = vector.shape_cast %147 : vector<1x256x512xbf16> to vector<256x512xbf16>
    %cst_81 = arith.constant dense<0.000000e+00> : vector<16x512xf32>
    %149 = tpu.matmul %0, %148, %cst_81 {dimension_numbers = #tpu.dot_dimension_numbers<[1], [0], [0], [1], [0, 0, 1, 1], [], []>} : vector<16x256xbf16>, vector<256x512xbf16>, vector<16x512xf32> -> vector<16x512xf32>
    %c3_82 = arith.constant 3 : index
    %c0_83 = arith.constant 0 : index
    %c0_84 = arith.constant 0 : index
    %150 = vector.load %arg5[%c3_82, %c0_83, %c0_84] : memref<4x1x512xf32, #tpu.memory_space<vmem>>, vector<1x1x512xf32>
    %151 = vector.shape_cast %150 : vector<1x1x512xf32> to vector<1x512xf32>
    %152 = vector.broadcast %151 : vector<1x512xf32> to vector<16x512xf32>
    %153 = arith.addf %149, %152 : vector<16x512xf32>
    %cst_85 = arith.constant 0.000000e+00 : f32
    %154 = vector.broadcast %cst_85 : f32 to vector<16x512xf32>
    %155 = arith.maximumf %153, %154 : vector<16x512xf32>
    %156 = arith.truncf %155 : vector<16x512xf32> to vector<16x512xbf16>
    %c3_86 = arith.constant 3 : index
    %c0_87 = arith.constant 0 : index
    %c0_88 = arith.constant 0 : index
    %157 = vector.load %arg6[%c3_86, %c0_87, %c0_88] : memref<4x512x256xbf16, #tpu.memory_space<vmem>>, vector<1x512x256xbf16>
    %158 = vector.shape_cast %157 : vector<1x512x256xbf16> to vector<512x256xbf16>
    %cst_89 = arith.constant dense<0.000000e+00> : vector<16x256xf32>
    %159 = tpu.matmul %156, %158, %cst_89 {dimension_numbers = #tpu.dot_dimension_numbers<[1], [0], [0], [1], [0, 0, 1, 1], [], []>} : vector<16x512xbf16>, vector<512x256xbf16>, vector<16x256xf32> -> vector<16x256xf32>
    %c3_90 = arith.constant 3 : index
    %c0_91 = arith.constant 0 : index
    %c0_92 = arith.constant 0 : index
    %160 = vector.load %arg7[%c3_90, %c0_91, %c0_92] : memref<4x1x256xf32, #tpu.memory_space<vmem>>, vector<1x1x256xf32>
    %161 = vector.shape_cast %160 : vector<1x1x256xf32> to vector<1x256xf32>
    %162 = vector.broadcast %161 : vector<1x256xf32> to vector<16x256xf32>
    %163 = arith.addf %159, %162 : vector<16x256xf32>
    %c0_93 = arith.constant 0 : index
    %c0_94 = arith.constant 0 : index
    %164 = vector.load %arg10[%c0_93, %c0_94] : memref<16x256xf32, #tpu.memory_space<vmem>>, vector<16x256xf32>
    %165 = vector.broadcast %146 : vector<16x1xf32> to vector<16x256xf32>
    %166 = arith.mulf %165, %163 : vector<16x256xf32>
    %167 = arith.addf %164, %166 : vector<16x256xf32>
    %c0_95 = arith.constant 0 : index
    %c0_96 = arith.constant 0 : index
    %168 = vector.load %arg10[%c0_95, %c0_96] : memref<16x256xf32, #tpu.memory_space<vmem>>, vector<16x256xf32>
    tpu.vector_store %arg10[%c0_95, %c0_96], %167 {strides = array<i32>} : memref<16x256xf32, #tpu.memory_space<vmem>>, vector<16x256xf32>,
    %c0_97 = arith.constant 0 : index
    %c0_98 = arith.constant 0 : index
    %169 = vector.load %arg10[%c0_97, %c0_98] : memref<16x256xf32, #tpu.memory_space<vmem>>, vector<16x256xf32>
    %170 = arith.truncf %169 : vector<16x256xf32> to vector<16x256xbf16>
    %c0_99 = arith.constant 0 : index
    %c0_100 = arith.constant 0 : index
    %171 = vector.load %arg8[%c0_99, %c0_100] : memref<16x256xbf16, #tpu.memory_space<vmem>>, vector<16x256xbf16>
    tpu.vector_store %arg8[%c0_99, %c0_100], %170 {strides = array<i32>} : memref<16x256xbf16, #tpu.memory_space<vmem>>, vector<16x256xbf16>,
    return
  }
  func.func @transform_0(%arg0: i32, %arg1: memref<1xi32, #tpu.memory_space<smem>>) -> (i32, i32) {
    %c0_i32 = arith.constant 0 : i32
    %c0_i32_0 = arith.constant 0 : i32
    return %arg0, %c0_i32 : i32, i32
  }
  func.func @transform_1(%arg0: i32, %arg1: memref<1xi32, #tpu.memory_space<smem>>) -> (i32, i32) {
    %c0_i32 = arith.constant 0 : i32
    %c0_i32_0 = arith.constant 0 : i32
    %c0_i32_1 = arith.constant 0 : i32
    return %c0_i32, %c0_i32_0 : i32, i32
  }
  func.func @transform_2(%arg0: i32, %arg1: memref<1xi32, #tpu.memory_space<smem>>) -> (i32, i32, i32) {
    %c0_i32 = arith.constant 0 : i32
    %c0_i32_0 = arith.constant 0 : i32
    %c0_i32_1 = arith.constant 0 : i32
    %c0_i32_2 = arith.constant 0 : i32
    return %c0_i32, %c0_i32_0, %c0_i32_1 : i32, i32, i32
  }
  func.func @transform_3(%arg0: i32, %arg1: memref<1xi32, #tpu.memory_space<smem>>) -> (i32, i32, i32) {
    %c0_i32 = arith.constant 0 : i32
    %c0_i32_0 = arith.constant 0 : i32
    %c0_i32_1 = arith.constant 0 : i32
    %c0_i32_2 = arith.constant 0 : i32
    return %c0_i32, %c0_i32_0, %c0_i32_1 : i32, i32, i32
  }
  func.func @transform_4(%arg0: i32, %arg1: memref<1xi32, #tpu.memory_space<smem>>) -> (i32, i32, i32) {
    %c0_i32 = arith.constant 0 : i32
    %c0_i32_0 = arith.constant 0 : i32
    %c0_i32_1 = arith.constant 0 : i32
    %c0_i32_2 = arith.constant 0 : i32
    return %c0_i32, %c0_i32_0, %c0_i32_1 : i32, i32, i32
  }
  func.func @transform_5(%arg0: i32, %arg1: memref<1xi32, #tpu.memory_space<smem>>) -> (i32, i32, i32) {
    %c0_i32 = arith.constant 0 : i32
    %c0_i32_0 = arith.constant 0 : i32
    %c0_i32_1 = arith.constant 0 : i32
    %c0_i32_2 = arith.constant 0 : i32
    return %c0_i32, %c0_i32_0, %c0_i32_1 : i32, i32, i32
  }
  func.func @transform_6(%arg0: i32, %arg1: memref<1xi32, #tpu.memory_space<smem>>) -> (i32, i32) {
    %c0_i32 = arith.constant 0 : i32
    %c0_i32_0 = arith.constant 0 : i32
    return %arg0, %c0_i32 : i32, i32
  }
  func.func @transform_7(%arg0: i32, %arg1: memref<1xi32, #tpu.memory_space<smem>>) -> (i32, i32, i32) {
    %c0_i32 = arith.constant 0 : i32
    %c0_i32_0 = arith.constant 0 : i32
    %c0_i32_1 = arith.constant 0 : i32
    return %arg0, %c0_i32, %c0_i32_0 : i32, i32, i32
  }
}

module attributes {stable_mosaic.version = 11 : i64} {
  func.func @_mlm_kernel(%arg0: i32, %arg1: i32, %arg2: memref<16x256xbf16, #tpu.memory_space<vmem>>, %arg3: memref<256x512xbf16, #tpu.memory_space<vmem>>, %arg4: memref<1x512xf32, #tpu.memory_space<vmem>>, %arg5: memref<16x512xf32, #tpu.memory_space<vmem>>) attributes {dimension_semantics = [#tpu.dimension_semantics<parallel>, #tpu.dimension_semantics<parallel>], iteration_bounds = array<i64: 1, 2>, scalar_prefetch = 0 : i64, scratch_operands = 0 : i64, tpu.core_type = #tpu.core_type<tc>, window_params = [{transform_indices = @transform_0, window_bounds = array<i64: 16, 256>}, {transform_indices = @transform_1, window_bounds = array<i64: 256, 512>}, {transform_indices = @transform_2, window_bounds = array<i64: 1, 512>}, {transform_indices = @transform_3, window_bounds = array<i64: 16, 512>}]} {
    %c0 = arith.constant 0 : index
    %c0_0 = arith.constant 0 : index
    %0 = vector.load %arg2[%c0, %c0_0] : memref<16x256xbf16, #tpu.memory_space<vmem>>, vector<16x256xbf16>
    %c0_1 = arith.constant 0 : index
    %c0_2 = arith.constant 0 : index
    %1 = vector.load %arg3[%c0_1, %c0_2] : memref<256x512xbf16, #tpu.memory_space<vmem>>, vector<256x512xbf16>
    %cst = arith.constant dense<0.000000e+00> : vector<16x512xf32>
    %2 = tpu.matmul %0, %1, %cst {dimension_numbers = #tpu.dot_dimension_numbers<[1], [0], [0], [1], [0, 0, 1, 1], [], []>} : vector<16x256xbf16>, vector<256x512xbf16>, vector<16x512xf32> -> vector<16x512xf32>
    %c0_3 = arith.constant 0 : index
    %c0_4 = arith.constant 0 : index
    %3 = vector.load %arg4[%c0_3, %c0_4] : memref<1x512xf32, #tpu.memory_space<vmem>>, vector<1x512xf32>
    %4 = vector.broadcast %3 : vector<1x512xf32> to vector<16x512xf32>
    %5 = arith.addf %2, %4 : vector<16x512xf32>
    %c0_5 = arith.constant 0 : index
    %c0_6 = arith.constant 0 : index
    %6 = vector.load %arg5[%c0_5, %c0_6] : memref<16x512xf32, #tpu.memory_space<vmem>>, vector<16x512xf32>
    tpu.vector_store %arg5[%c0_5, %c0_6], %5 {strides = array<i32>} : memref<16x512xf32, #tpu.memory_space<vmem>>, vector<16x512xf32>,
    return
  }
  func.func @transform_0(%arg0: i32, %arg1: i32) -> (i32, i32) {
    %c0_i32 = arith.constant 0 : i32
    %c0_i32_0 = arith.constant 0 : i32
    return %arg0, %c0_i32 : i32, i32
  }
  func.func @transform_1(%arg0: i32, %arg1: i32) -> (i32, i32) {
    %c0_i32 = arith.constant 0 : i32
    %c0_i32_0 = arith.constant 0 : i32
    return %c0_i32, %arg1 : i32, i32
  }
  func.func @transform_2(%arg0: i32, %arg1: i32) -> (i32, i32) {
    %c0_i32 = arith.constant 0 : i32
    %c0_i32_0 = arith.constant 0 : i32
    return %c0_i32, %arg1 : i32, i32
  }
  func.func @transform_3(%arg0: i32, %arg1: i32) -> (i32, i32) {
    %c0_i32 = arith.constant 0 : i32
    return %arg0, %arg1 : i32, i32
  }
}

</mosaic_0001>

<llo_original>
// kernel: embedding_moe_forward.5
$region0: #{embedding_moe_forward.5}
  #allocation0 [shape = 'u32[]', space=smem, size = 0x4, offset = 0x4, fixed_abs, tag = 'smem constant byte address 0x4 - core index']
  #allocation1 [shape = 'u32[144,128]{1,0:T(1,128)}', space=vmem, size = 0x12000, scoped, tag = 'internal scratch']
  %s0 = inlined_call_operand.hbm [shape: bf16[16,256], index: 0, kind: input, shape index: {}]
  %s1 = inlined_call_operand.hbm [shape: bf16[256,1024], index: 1, kind: input, shape index: {}]
  %s2 = inlined_call_operand.hbm [shape: f32[1,1024], index: 2, kind: input, shape index: {}]
  %s3 = inlined_call_operand.hbm [shape: f32[16,1024], index: 3, kind: output, shape index: {}]
  %s4 = sld [smem:[#allocation0]]
  $region57: #{embedding_moe_forward.5} parent=0
    _
  %s6 = ssub.s32 1, %s4
  %s7 = scalar_select 0, %s6, %s4
  $region1: #{embedding_moe_forward.5} parent=0
    #allocation2 [shape = 'u8[8192]{0}', space=vmem, size = 0x2000, scoped, tag = 'input window, operand 0, single buffered']
    #allocation3 [shape = 's32[2]{0}', space=sflag, size = 0x8, scoped, tag = 'scoped memory for embedding_moe_forward.5']
    #allocation4 [shape = 's32[2]{0}', space=sflag, size = 0x8, scoped, tag = 'scoped memory for embedding_moe_forward.5']
    #allocation5 [shape = 'u8[524288]{0}', space=vmem, size = 0x80000, scoped, tag = 'input window, operand 1']
    #allocation6 [shape = 's32[2]{0}', space=sflag, size = 0x8, scoped, tag = 'scoped memory for embedding_moe_forward.5']
    #allocation7 [shape = 'u8[4096]{0}', space=vmem, size = 0x1000, scoped, tag = 'input window, operand 2']
    #allocation8 [shape = 'u8[65536]{0}', space=vmem, size = 0x10000, scoped, tag = 'output window, operand 0']
    %8 = vsyncpa [#allocation3], 0
    %9 = vsyncpa [#allocation6], 0
    %s10 = scalar_lea.sflag [#allocation6], 1
    %11 = vsyncpa %s10, 0
    %12 = vsyncpa [#allocation4], 0
    %s13 = scalar_lea.sflag [#allocation4], 1
    %14 = vsyncpa %s13, 0
    loop: start=0, step=1, limit=4
    $region2: #{embedding_moe_forward.5} parent=1 // loop_pre_header
      _
    $region3: #{embedding_moe_forward.5} parent=1 // loop_header
      %s16 = sphi 0, %s20
      %p17 = scmp.ge.s32.totalorder %s16, 4
      %s23 = sphi 0, %s35
      %s24 = sphi 0, %s31
      %s25 = sphi 0, %s23
      %s26 = sphi 0, %s24
      %s27 = sphi 0, %s25
      %s28 = sphi 0, %s26
      %s38 = sphi 0, %s40
      %s41 = sphi 0, %s38
      %s42 = sphi 0, %s41
      %s58 = sphi 0, %s42
      %s64 = sphi 0, %s66
      %s67 = sphi 0, %s64
      %s68 = sphi 0, %s67
      %s84 = sphi 0, %s68
      %s90 = sphi 0, %s92
      %s93 = sphi 0, %s90
      %s94 = sphi 0, %s93
      %s110 = sphi 0, %s94
      %s118 = sphi 0, %s120
      %s121 = sphi 0, %s118
      %s122 = sphi 0, %s121
      %s138 = sphi 0, %s122
    $region4: #{embedding_moe_forward.5} parent=1 // loop_header_branch
      %19 = sbr.rel (%p17) target = $region8
    $region5: #{embedding_moe_forward.5} parent=1 // loop_body
      %s21 = ssub.s32 %s16, 1
      %s22 = ssub.s32 %s16, 2
      %s29 = sadd.s32 1, %s24
      %p30 = scmp.ge.s32.totalorder %s29, 2
      %s31 = scalar_select %p30, 0, %s29
      %s32 = sadd.s32 1, %s23
      %s33 = scalar_select %p30, %s32, %s23
      %p34 = scmp.ge.s32.totalorder %s33, 1
      %s35 = scalar_select %p34, 0, %s33
      %s36 = ssub.s32 %s23, %s35
      %p37 = scmp.eq.s32.totalorder %s36, 0
      %s39 = sadd.s32 %s38, 1
      %s40 = scalar_select %p37, %s38, %s39
      %p43 = pneg %p37
      %p44 = scmp.eq.s32.totalorder %s16, 1
      %p45 = por %p43, %p44
      %p46 = scmp.ne.s32.totalorder %s38, %s41
      %p47 = scmp.eq.s32.totalorder %s16, 0
      %p48 = por %p46, %p47
      %p49 = scmp.ne.s32.totalorder %s38, %s41
      %p50 = scmp.eq.s32.totalorder %s21, 1
      %p51 = por %p49, %p50
      %p52 = scmp.ne.s32.totalorder %s41, %s42
      %p53 = scmp.eq.s32.totalorder %s21, 0
      %p54 = por %p52, %p53
      %p55 = scmp.ne.s32.totalorder %s41, %s42
      %p56 = scmp.eq.s32.totalorder %s22, 1
      %p57 = por %p55, %p56
      %p59 = scmp.ne.s32.totalorder %s42, %s58
      %p60 = scmp.eq.s32.totalorder %s22, 0
      %p61 = por %p59, %p60
      %s62 = ssub.s32 %s24, %s31
      %p63 = scmp.eq.s32.totalorder %s62, 0
      %s65 = sadd.s32 %s64, 1
      %s66 = scalar_select %p63, %s64, %s65
      %p69 = pneg %p63
      %p70 = scmp.eq.s32.totalorder %s16, 1
      %p71 = por %p69, %p70
      %p72 = scmp.ne.s32.totalorder %s64, %s67
      %p73 = scmp.eq.s32.totalorder %s16, 0
      %p74 = por %p72, %p73
      %p75 = scmp.ne.s32.totalorder %s64, %s67
      %p76 = scmp.eq.s32.totalorder %s21, 1
      %p77 = por %p75, %p76
      %p78 = scmp.ne.s32.totalorder %s67, %s68
      %p79 = scmp.eq.s32.totalorder %s21, 0
      %p80 = por %p78, %p79
      %p81 = scmp.ne.s32.totalorder %s67, %s68
      %p82 = scmp.eq.s32.totalorder %s22, 1
      %p83 = por %p81, %p82
      %p85 = scmp.ne.s32.totalorder %s68, %s84
      %p86 = scmp.eq.s32.totalorder %s22, 0
      %p87 = por %p85, %p86
      %s88 = ssub.s32 %s24, %s31
      %p89 = scmp.eq.s32.totalorder %s88, 0
      %s91 = sadd.s32 %s90, 1
      %s92 = scalar_select %p89, %s90, %s91
      %p95 = pneg %p89
      %p96 = scmp.eq.s32.totalorder %s16, 1
      %p97 = por %p95, %p96
      %p98 = scmp.ne.s32.totalorder %s90, %s93
      %p99 = scmp.eq.s32.totalorder %s16, 0
      %p100 = por %p98, %p99
      %p101 = scmp.ne.s32.totalorder %s90, %s93
      %p102 = scmp.eq.s32.totalorder %s21, 1
      %p103 = por %p101, %p102
      %p104 = scmp.ne.s32.totalorder %s93, %s94
      %p105 = scmp.eq.s32.totalorder %s21, 0
      %p106 = por %p104, %p105
      %p107 = scmp.ne.s32.totalorder %s93, %s94
      %p108 = scmp.eq.s32.totalorder %s22, 1
      %p109 = por %p107, %p108
      %p111 = scmp.ne.s32.totalorder %s94, %s110
      %p112 = scmp.eq.s32.totalorder %s22, 0
      %p113 = por %p111, %p112
      %s114 = ssub.s32 %s23, %s35
      %s115 = ssub.s32 %s24, %s31
      %s116 = sor.u32 %s114, %s115
      %p117 = scmp.eq.s32.totalorder %s116, 0
      %s119 = sadd.s32 %s118, 1
      %s120 = scalar_select %p117, %s118, %s119
      %p123 = pneg %p117
      %p124 = scmp.eq.s32.totalorder %s16, 1
      %p125 = por %p123, %p124
      %p126 = scmp.ne.s32.totalorder %s118, %s121
      %p127 = scmp.eq.s32.totalorder %s16, 0
      %p128 = por %p126, %p127
      %p129 = scmp.ne.s32.totalorder %s118, %s121
      %p130 = scmp.eq.s32.totalorder %s21, 1
      %p131 = por %p129, %p130
      %p132 = scmp.ne.s32.totalorder %s121, %s122
      %p133 = scmp.eq.s32.totalorder %s21, 0
      %p134 = por %p132, %p133
      %p135 = scmp.ne.s32.totalorder %s121, %s122
      %p136 = scmp.eq.s32.totalorder %s22, 1
      %p137 = por %p135, %p136
      %p139 = scmp.ne.s32.totalorder %s122, %s138
      %p140 = scmp.eq.s32.totalorder %s22, 0
      %p141 = por %p139, %p140
      %p142 = scmp.le.s32.totalorder 1, %s16
      %p143 = scmp.lt.s32.totalorder %s16, 3
      %p144 = pnand %p142, %p143
      %p145 = pneg %p144
      // Predicated region
      $region9: #{embedding_moe_forward.5} parent=5 // pred_check
        _
      $region10: #{embedding_moe_forward.5} parent=5 // pred_check_branch
        %147 = sbr.rel (%p144) target = $region12
      $region11: #{embedding_moe_forward.5} parent=5 // pred_region
        %s148 = ssub.s32 %s16, 1
        // Predicated region
        $region13: #{embedding_moe_forward.5} parent=11 // pred_check
          %p149 = pneg %p54
        $region14: #{embedding_moe_forward.5} parent=11 // pred_check_branch
          %151 = sbr.rel (%p149) target = $region16
        $region15: #{embedding_moe_forward.5} parent=11 // pred_region
          %s152 = smul.u32 2, %s25
          %s154 = ssub.s32 256, 256
          %155 = vsyncadd [#allocation3], %s154
          %s156 = smul.addr %s152, 2
          %s157 = smul.addr %s156, 64
          %s158 = scalar_lea.hbm %s0, %s157
          %s159 = sshll.u32 [#allocation2], 4
          %s160 = int_to_ptr.vmem [resolvable:$true] %s159
          %165 = dma.hbm_to_vmem [thread:$0]  %s158, 256, %s160, [#allocation3], 128, 128, 8
        $region16: #{embedding_moe_forward.5} parent=11 // pred_fallthru
          _
      $region12: #{embedding_moe_forward.5} parent=5 // pred_fallthru
        _
      %p166 = scmp.lt.s32.totalorder %s16, 2
      // Predicated region
      $region17: #{embedding_moe_forward.5} parent=5 // pred_check
        %p167 = pneg %p166
      $region18: #{embedding_moe_forward.5} parent=5 // pred_check_branch
        %169 = sbr.rel (%p167) target = $region20
      $region19: #{embedding_moe_forward.5} parent=5 // pred_region
        // Predicated region
        $region21: #{embedding_moe_forward.5} parent=19 // pred_check
          %p170 = pneg %p74
        $region22: #{embedding_moe_forward.5} parent=19 // pred_check_branch
          %172 = sbr.rel (%p170) target = $region24
        $region23: #{embedding_moe_forward.5} parent=19 // pred_region
          %s173 = sand.u32 %s16, 1
          %s174 = scalar_lea.sflag [#allocation6], %s173
          %s175 = sand.u32 %s64, 1
          %s176 = smul.addr %s175, 512
          %s177 = scalar_lea.vmem [#allocation5], %s176
          %s178 = smul.u32 4, %s24
          %s180 = ssub.s32 8192, 8192
          %181 = vsyncadd %s174, %s180
          %s182 = smul.addr %s178, 64
          %s183 = scalar_lea.hbm %s1, %s182
          %s184 = sshll.u32 %s177, 4
          %s185 = int_to_ptr.vmem [resolvable:$true] %s184
          %190 = dma.hbm_to_vmem [thread:$0]  %s183, 8192, %s185, %s174, 512, 256, 16
        $region24: #{embedding_moe_forward.5} parent=19 // pred_fallthru
          _
        // Predicated region
        $region25: #{embedding_moe_forward.5} parent=19 // pred_check
          %p191 = pneg %p100
        $region26: #{embedding_moe_forward.5} parent=19 // pred_check_branch
          %193 = sbr.rel (%p191) target = $region28
        $region27: #{embedding_moe_forward.5} parent=19 // pred_region
          %s194 = sand.u32 %s16, 1
          %s195 = scalar_lea.sflag [#allocation6], %s194
          %s196 = sand.u32 %s90, 1
          %s197 = smul.addr %s196, 4
          %s198 = scalar_lea.vmem [#allocation7], %s197
          %s199 = smul.u32 4, %s24
          %s201 = ssub.s32 64, 64
          %202 = vsyncadd %s195, %s201
          %s203 = smul.addr %s199, 16
          %s204 = scalar_lea.hbm %s2, %s203
          %s206 = sshll.u32 %s198, 4
          %s207 = int_to_ptr.vmem [resolvable:$true] %s206
          %209 = dma.hbm_to_vmem [thread:$0]  %s204, 64, %s207, %s195
        $region28: #{embedding_moe_forward.5} parent=19 // pred_fallthru
          _
      $region20: #{embedding_moe_forward.5} parent=5 // pred_fallthru
        _
      %p210 = scmp.le.s32.totalorder 1, %s16
      %p211 = scmp.lt.s32.totalorder %s16, 3
      %p212 = pnand %p210, %p211
      %p213 = pneg %p212
      // Predicated region
      $region29: #{embedding_moe_forward.5} parent=5 // pred_check
        _
      $region30: #{embedding_moe_forward.5} parent=5 // pred_check_branch
        %215 = sbr.rel (%p212) target = $region32
      $region31: #{embedding_moe_forward.5} parent=5 // pred_region
        %s216 = ssub.s32 %s16, 1
        // Predicated region
        $region33: #{embedding_moe_forward.5} parent=31 // pred_check
          %p217 = pneg %p54
        $region34: #{embedding_moe_forward.5} parent=31 // pred_check_branch
          %219 = sbr.rel (%p217) target = $region36
        $region35: #{embedding_moe_forward.5} parent=31 // pred_region
          %220 = dma.done [#allocation3], 256
        $region36: #{embedding_moe_forward.5} parent=31 // pred_fallthru
          _
        %s221 = sand.u32 %s21, 1
        %s222 = scalar_lea.sflag [#allocation6], %s221
        %s223 = sand.u32 %s67, 1
        %s224 = smul.addr %s223, 512
        %s225 = scalar_lea.vmem [#allocation5], %s224
        // Predicated region
        $region37: #{embedding_moe_forward.5} parent=31 // pred_check
          %p226 = pneg %p80
        $region38: #{embedding_moe_forward.5} parent=31 // pred_check_branch
          %228 = sbr.rel (%p226) target = $region40
        $region39: #{embedding_moe_forward.5} parent=31 // pred_region
          %229 = dma.done %s222, 8192
        $region40: #{embedding_moe_forward.5} parent=31 // pred_fallthru
          _
        %s230 = sand.u32 %s21, 1
        %s231 = scalar_lea.sflag [#allocation6], %s230
        %s232 = sand.u32 %s93, 1
        %s233 = smul.addr %s232, 4
        %s234 = scalar_lea.vmem [#allocation7], %s233
        // Predicated region
        $region41: #{embedding_moe_forward.5} parent=31 // pred_check
          %p235 = pneg %p106
        $region42: #{embedding_moe_forward.5} parent=31 // pred_check_branch
          %237 = sbr.rel (%p235) target = $region44
        $region43: #{embedding_moe_forward.5} parent=31 // pred_region
          %238 = dma.done %s231, 64
        $region44: #{embedding_moe_forward.5} parent=31 // pred_fallthru
          _
        %p239 = pneg %p54
        %p240 = pneg %p51
        %s241 = sand.u32 %s21, 1
        %s242 = scalar_lea.sflag [#allocation6], %s241
        %s243 = sand.u32 %s67, 1
        %s244 = smul.addr %s243, 512
        %s245 = scalar_lea.vmem [#allocation5], %s244
        %p246 = pneg %p80
        %p247 = pneg %p77
        %s248 = sand.u32 %s21, 1
        %s249 = scalar_lea.sflag [#allocation6], %s248
        %s250 = sand.u32 %s93, 1
        %s251 = smul.addr %s250, 4
        %s252 = scalar_lea.vmem [#allocation7], %s251
        %p253 = pneg %p106
        %p254 = pneg %p103
        %p255 = pneg %p134
        %p256 = pneg %p131
        %s257 = sand.u32 %s121, 1
        %s258 = scalar_lea.sflag [#allocation4], %s257
        %s259 = sand.u32 %s121, 1
        %s260 = smul.addr %s259, 64
        %s261 = scalar_lea.vmem [#allocation8], %s260
        %s262 = smul.u32 2, %s25
        %s263 = smul.u32 4, %s26
        %s264 = smul.u32 4, %s26
        %s265 = smul.u32 2, %s25
        %s266 = smul.u32 4, %s26
        %v267 = vld [vmem:[#allocation2] sm:$0xff]
        %v268 = vld [vmem:[#allocation2 + $0x8] sm:$0xff]
        %v269 = vld [vmem:[%s225] sm:$0xff]
        %v270 = vld [vmem:[%s225 + $0x8] sm:$0xff]
        %v271 = vld [vmem:[%s225 + $0x10] sm:$0xff]
        %v272 = vld [vmem:[%s225 + $0x18] sm:$0xff]
        %v273 = vld [vmem:[%s225 + $0x20] sm:$0xff]
        %v274 = vld [vmem:[%s225 + $0x28] sm:$0xff]
        %v275 = vld [vmem:[%s225 + $0x30] sm:$0xff]
        %v276 = vld [vmem:[%s225 + $0x38] sm:$0xff]
        %v277 = vld [vmem:[%s225 + $0x40] sm:$0xff]
        %v278 = vld [vmem:[%s225 + $0x48] sm:$0xff]
        %v279 = vld [vmem:[%s225 + $0x50] sm:$0xff]
        %v280 = vld [vmem:[%s225 + $0x58] sm:$0xff]
        %v281 = vld [vmem:[%s225 + $0x60] sm:$0xff]
        %v282 = vld [vmem:[%s225 + $0x68] sm:$0xff]
        %v283 = vld [vmem:[%s225 + $0x70] sm:$0xff]
        %v284 = vld [vmem:[%s225 + $0x78] sm:$0xff]
        %v285 = vld [vmem:[%s225 + $0x80] sm:$0xff]
        %v286 = vld [vmem:[%s225 + $0x88] sm:$0xff]
        %v287 = vld [vmem:[%s225 + $0x90] sm:$0xff]
        %v288 = vld [vmem:[%s225 + $0x98] sm:$0xff]
        %v289 = vld [vmem:[%s225 + $0xa0] sm:$0xff]
        %v290 = vld [vmem:[%s225 + $0xa8] sm:$0xff]
        %v291 = vld [vmem:[%s225 + $0xb0] sm:$0xff]
        %v292 = vld [vmem:[%s225 + $0xb8] sm:$0xff]
        %v293 = vld [vmem:[%s225 + $0xc0] sm:$0xff]
        %v294 = vld [vmem:[%s225 + $0xc8] sm:$0xff]
        %v295 = vld [vmem:[%s225 + $0xd0] sm:$0xff]
        %v296 = vld [vmem:[%s225 + $0xd8] sm:$0xff]
        %v297 = vld [vmem:[%s225 + $0xe0] sm:$0xff]
        %v298 = vld [vmem:[%s225 + $0xe8] sm:$0xff]
        %v299 = vld [vmem:[%s225 + $0xf0] sm:$0xff]
        %v300 = vld [vmem:[%s225 + $0xf8] sm:$0xff]
        %v301 = vld [vmem:[%s225 + $0x100] sm:$0xff]
        %v302 = vld [vmem:[%s225 + $0x108] sm:$0xff]
        %v303 = vld [vmem:[%s225 + $0x110] sm:$0xff]
        %v304 = vld [vmem:[%s225 + $0x118] sm:$0xff]
        %v305 = vld [vmem:[%s225 + $0x120] sm:$0xff]
        %v306 = vld [vmem:[%s225 + $0x128] sm:$0xff]
        %v307 = vld [vmem:[%s225 + $0x130] sm:$0xff]
        %v308 = vld [vmem:[%s225 + $0x138] sm:$0xff]
        %v309 = vld [vmem:[%s225 + $0x140] sm:$0xff]
        %v310 = vld [vmem:[%s225 + $0x148] sm:$0xff]
        %v311 = vld [vmem:[%s225 + $0x150] sm:$0xff]
        %v312 = vld [vmem:[%s225 + $0x158] sm:$0xff]
        %v313 = vld [vmem:[%s225 + $0x160] sm:$0xff]
        %v314 = vld [vmem:[%s225 + $0x168] sm:$0xff]
        %v315 = vld [vmem:[%s225 + $0x170] sm:$0xff]
        %v316 = vld [vmem:[%s225 + $0x178] sm:$0xff]
        %v317 = vld [vmem:[%s225 + $0x180] sm:$0xff]
        %v318 = vld [vmem:[%s225 + $0x188] sm:$0xff]
        %v319 = vld [vmem:[%s225 + $0x190] sm:$0xff]
        %v320 = vld [vmem:[%s225 + $0x198] sm:$0xff]
        %v321 = vld [vmem:[%s225 + $0x1a0] sm:$0xff]
        %v322 = vld [vmem:[%s225 + $0x1a8] sm:$0xff]
        %v323 = vld [vmem:[%s225 + $0x1b0] sm:$0xff]
        %v324 = vld [vmem:[%s225 + $0x1b8] sm:$0xff]
        %v325 = vld [vmem:[%s225 + $0x1c0] sm:$0xff]
        %v326 = vld [vmem:[%s225 + $0x1c8] sm:$0xff]
        %v327 = vld [vmem:[%s225 + $0x1d0] sm:$0xff]
        %v328 = vld [vmem:[%s225 + $0x1d8] sm:$0xff]
        %v329 = vld [vmem:[%s225 + $0x1e0] sm:$0xff]
        %v330 = vld [vmem:[%s225 + $0x1e8] sm:$0xff]
        %v331 = vld [vmem:[%s225 + $0x1f0] sm:$0xff]
        %v332 = vld [vmem:[%s225 + $0x1f8] sm:$0xff]
        %v333 = vld [vmem:[%s234] sm:$0xf]
        %v335 = vlaneseq
        %v336 = vshrl.u32 %v335, 7
        %v337 = vsub.s32 0, %v336
        %v338 = vrot.slane %v333, %v337
        %v339 = vlaneseq
        %v340 = vshrl.u32 %v339, 7
        %v341 = vsub.s32 1, %v340
        %v342 = vrot.slane %v333, %v341
        %v343 = vlaneseq
        %v344 = vshrl.u32 %v343, 7
        %v345 = vsub.s32 2, %v344
        %v346 = vrot.slane %v333, %v345
        %v347 = vlaneseq
        %v348 = vshrl.u32 %v347, 7
        %v349 = vsub.s32 3, %v348
        %v350 = vrot.slane %v333, %v349
        %v357 = vunpack.c.l.b16 %v267
        %v358 = vunpack.c.h.b16 %v267
        %v359 = vunpack.c.l.b16 %v268
        %v360 = vunpack.c.h.b16 %v268
        %v361 = vpack.c.b16 %v359, %v357
        %v362 = vpack.c.b16 %v360, %v358
        %v429 = vunpack.c.l.b16 %v269
        %v430 = vunpack.c.h.b16 %v269
        %v431 = vunpack.c.l.b16 %v270
        %v432 = vunpack.c.h.b16 %v270
        %v433 = vunpack.c.l.b16 %v271
        %v434 = vunpack.c.h.b16 %v271
        %v435 = vunpack.c.l.b16 %v272
        %v436 = vunpack.c.h.b16 %v272
        %v437 = vunpack.c.l.b16 %v273
        %v438 = vunpack.c.h.b16 %v273
        %v439 = vunpack.c.l.b16 %v274
        %v440 = vunpack.c.h.b16 %v274
        %v441 = vunpack.c.l.b16 %v275
        %v442 = vunpack.c.h.b16 %v275
        %v443 = vunpack.c.l.b16 %v276
        %v444 = vunpack.c.h.b16 %v276
        %v445 = vunpack.c.l.b16 %v277
        %v446 = vunpack.c.h.b16 %v277
        %v447 = vunpack.c.l.b16 %v278
        %v448 = vunpack.c.h.b16 %v278
        %v449 = vunpack.c.l.b16 %v279
        %v450 = vunpack.c.h.b16 %v279
        %v451 = vunpack.c.l.b16 %v280
        %v452 = vunpack.c.h.b16 %v280
        %v453 = vunpack.c.l.b16 %v281
        %v454 = vunpack.c.h.b16 %v281
        %v455 = vunpack.c.l.b16 %v282
        %v456 = vunpack.c.h.b16 %v282
        %v457 = vunpack.c.l.b16 %v283
        %v458 = vunpack.c.h.b16 %v283
        %v459 = vunpack.c.l.b16 %v284
        %v460 = vunpack.c.h.b16 %v284
        %v461 = vunpack.c.l.b16 %v285
        %v462 = vunpack.c.h.b16 %v285
        %v463 = vunpack.c.l.b16 %v286
        %v464 = vunpack.c.h.b16 %v286
        %v465 = vunpack.c.l.b16 %v287
        %v466 = vunpack.c.h.b16 %v287
        %v467 = vunpack.c.l.b16 %v288
        %v468 = vunpack.c.h.b16 %v288
        %v469 = vunpack.c.l.b16 %v289
        %v470 = vunpack.c.h.b16 %v289
        %v471 = vunpack.c.l.b16 %v290
        %v472 = vunpack.c.h.b16 %v290
        %v473 = vunpack.c.l.b16 %v291
        %v474 = vunpack.c.h.b16 %v291
        %v475 = vunpack.c.l.b16 %v292
        %v476 = vunpack.c.h.b16 %v292
        %v477 = vunpack.c.l.b16 %v293
        %v478 = vunpack.c.h.b16 %v293
        %v479 = vunpack.c.l.b16 %v294
        %v480 = vunpack.c.h.b16 %v294
        %v481 = vunpack.c.l.b16 %v295
        %v482 = vunpack.c.h.b16 %v295
        %v483 = vunpack.c.l.b16 %v296
        %v484 = vunpack.c.h.b16 %v296
        %v485 = vunpack.c.l.b16 %v297
        %v486 = vunpack.c.h.b16 %v297
        %v487 = vunpack.c.l.b16 %v298
        %v488 = vunpack.c.h.b16 %v298
        %v489 = vunpack.c.l.b16 %v299
        %v490 = vunpack.c.h.b16 %v299
        %v491 = vunpack.c.l.b16 %v300
        %v492 = vunpack.c.h.b16 %v300
        %v493 = vunpack.c.l.b16 %v301
        %v494 = vunpack.c.h.b16 %v301
        %v495 = vunpack.c.l.b16 %v302
        %v496 = vunpack.c.h.b16 %v302
        %v497 = vunpack.c.l.b16 %v303
        %v498 = vunpack.c.h.b16 %v303
        %v499 = vunpack.c.l.b16 %v304
        %v500 = vunpack.c.h.b16 %v304
        %v501 = vunpack.c.l.b16 %v305
        %v502 = vunpack.c.h.b16 %v305
        %v503 = vunpack.c.l.b16 %v306
        %v504 = vunpack.c.h.b16 %v306
        %v505 = vunpack.c.l.b16 %v307
        %v506 = vunpack.c.h.b16 %v307
        %v507 = vunpack.c.l.b16 %v308
        %v508 = vunpack.c.h.b16 %v308
        %v509 = vunpack.c.l.b16 %v309
        %v510 = vunpack.c.h.b16 %v309
        %v511 = vunpack.c.l.b16 %v310
        %v512 = vunpack.c.h.b16 %v310
        %v513 = vunpack.c.l.b16 %v311
        %v514 = vunpack.c.h.b16 %v311
        %v515 = vunpack.c.l.b16 %v312
        %v516 = vunpack.c.h.b16 %v312
        %v517 = vunpack.c.l.b16 %v313
        %v518 = vunpack.c.h.b16 %v313
        %v519 = vunpack.c.l.b16 %v314
        %v520 = vunpack.c.h.b16 %v314
        %v521 = vunpack.c.l.b16 %v315
        %v522 = vunpack.c.h.b16 %v315
        %v523 = vunpack.c.l.b16 %v316
        %v524 = vunpack.c.h.b16 %v316
        %v525 = vunpack.c.l.b16 %v317
        %v526 = vunpack.c.h.b16 %v317
        %v527 = vunpack.c.l.b16 %v318
        %v528 = vunpack.c.h.b16 %v318
        %v529 = vunpack.c.l.b16 %v319
        %v530 = vunpack.c.h.b16 %v319
        %v531 = vunpack.c.l.b16 %v320
        %v532 = vunpack.c.h.b16 %v320
        %v533 = vunpack.c.l.b16 %v321
        %v534 = vunpack.c.h.b16 %v321
        %v535 = vunpack.c.l.b16 %v322
        %v536 = vunpack.c.h.b16 %v322
        %v537 = vunpack.c.l.b16 %v323
        %v538 = vunpack.c.h.b16 %v323
        %v539 = vunpack.c.l.b16 %v324
        %v540 = vunpack.c.h.b16 %v324
        %v541 = vunpack.c.l.b16 %v325
        %v542 = vunpack.c.h.b16 %v325
        %v543 = vunpack.c.l.b16 %v326
        %v544 = vunpack.c.h.b16 %v326
        %v545 = vunpack.c.l.b16 %v327
        %v546 = vunpack.c.h.b16 %v327
        %v547 = vunpack.c.l.b16 %v328
        %v548 = vunpack.c.h.b16 %v328
        %v549 = vunpack.c.l.b16 %v329
        %v550 = vunpack.c.h.b16 %v329
        %v551 = vunpack.c.l.b16 %v330
        %v552 = vunpack.c.h.b16 %v330
        %v553 = vunpack.c.l.b16 %v331
        %v554 = vunpack.c.h.b16 %v331
        %v555 = vunpack.c.l.b16 %v332
        %v556 = vunpack.c.h.b16 %v332
        %v557 = vpack.c.b16 %v433, %v429
        %v558 = vpack.c.b16 %v434, %v430
        %v559 = vpack.c.b16 %v435, %v431
        %v560 = vpack.c.b16 %v436, %v432
        %v561 = vpack.c.b16 %v441, %v437
        %v562 = vpack.c.b16 %v442, %v438
        %v563 = vpack.c.b16 %v443, %v439
        %v564 = vpack.c.b16 %v444, %v440
        %v565 = vpack.c.b16 %v449, %v445
        %v566 = vpack.c.b16 %v450, %v446
        %v567 = vpack.c.b16 %v451, %v447
        %v568 = vpack.c.b16 %v452, %v448
        %v569 = vpack.c.b16 %v457, %v453
        %v570 = vpack.c.b16 %v458, %v454
        %v571 = vpack.c.b16 %v459, %v455
        %v572 = vpack.c.b16 %v460, %v456
        %v573 = vpack.c.b16 %v465, %v461
        %v574 = vpack.c.b16 %v466, %v462
        %v575 = vpack.c.b16 %v467, %v463
        %v576 = vpack.c.b16 %v468, %v464
        %v577 = vpack.c.b16 %v473, %v469
        %v578 = vpack.c.b16 %v474, %v470
        %v579 = vpack.c.b16 %v475, %v471
        %v580 = vpack.c.b16 %v476, %v472
        %v581 = vpack.c.b16 %v481, %v477
        %v582 = vpack.c.b16 %v482, %v478
        %v583 = vpack.c.b16 %v483, %v479
        %v584 = vpack.c.b16 %v484, %v480
        %v585 = vpack.c.b16 %v489, %v485
        %v586 = vpack.c.b16 %v490, %v486
        %v587 = vpack.c.b16 %v491, %v487
        %v588 = vpack.c.b16 %v492, %v488
        %v589 = vpack.c.b16 %v497, %v493
        %v590 = vpack.c.b16 %v498, %v494
        %v591 = vpack.c.b16 %v499, %v495
        %v592 = vpack.c.b16 %v500, %v496
        %v593 = vpack.c.b16 %v505, %v501
        %v594 = vpack.c.b16 %v506, %v502
        %v595 = vpack.c.b16 %v507, %v503
        %v596 = vpack.c.b16 %v508, %v504
        %v597 = vpack.c.b16 %v513, %v509
        %v598 = vpack.c.b16 %v514, %v510
        %v599 = vpack.c.b16 %v515, %v511
        %v600 = vpack.c.b16 %v516, %v512
        %v601 = vpack.c.b16 %v521, %v517
        %v602 = vpack.c.b16 %v522, %v518
        %v603 = vpack.c.b16 %v523, %v519
        %v604 = vpack.c.b16 %v524, %v520
        %v605 = vpack.c.b16 %v529, %v525
        %v606 = vpack.c.b16 %v530, %v526
        %v607 = vpack.c.b16 %v531, %v527
        %v608 = vpack.c.b16 %v532, %v528
        %v609 = vpack.c.b16 %v537, %v533
        %v610 = vpack.c.b16 %v538, %v534
        %v611 = vpack.c.b16 %v539, %v535
        %v612 = vpack.c.b16 %v540, %v536
        %v613 = vpack.c.b16 %v545, %v541
        %v614 = vpack.c.b16 %v546, %v542
        %v615 = vpack.c.b16 %v547, %v543
        %v616 = vpack.c.b16 %v548, %v544
        %v617 = vpack.c.b16 %v553, %v549
        %v618 = vpack.c.b16 %v554, %v550
        %v619 = vpack.c.b16 %v555, %v551
        %v620 = vpack.c.b16 %v556, %v552
        %685 = vmatprep.subr.bf16.mxu0 %v558
        %686 = vmatpush1.bf16.msra.mxu0 %v557
        %687 = vmatprep.subr.bf16.mxu0 %v562
        %688 = vmatpush1.bf16.msra.mxu0 %v561
        %689 = vmatprep.subr.bf16.mxu0 %v566
        %690 = vmatpush1.bf16.msra.mxu0 %v565
        %691 = vmatprep.subr.bf16.mxu0 %v570
        %692 = vmatpush1.bf16.msra.mxu0 %v569
        %693 = vmatprep.subr.bf16.mxu0 %v574
        %694 = vmatpush1.bf16.msra.mxu0 %v573
        %695 = vmatprep.subr.bf16.mxu0 %v578
        %696 = vmatpush1.bf16.msra.mxu0 %v577
        %697 = vmatprep.subr.bf16.mxu0 %v582
        %698 = vmatpush1.bf16.msra.mxu0 %v581
        %699 = vmatprep.subr.bf16.mxu0 %v586
        %700 = vmatpush1.bf16.msra.mxu0 %v585
        %701 = vmatprep.subr.bf16.mxu0 %v590
        %702 = vmatpush1.bf16.msra.mxu0 %v589
        %703 = vmatprep.subr.bf16.mxu0 %v594
        %704 = vmatpush1.bf16.msra.mxu0 %v593
        %705 = vmatprep.subr.bf16.mxu0 %v598
        %706 = vmatpush1.bf16.msra.mxu0 %v597
        %707 = vmatprep.subr.bf16.mxu0 %v602
        %708 = vmatpush1.bf16.msra.mxu0 %v601
        %709 = vmatprep.subr.bf16.mxu0 %v606
        %710 = vmatpush1.bf16.msra.mxu0 %v605
        %711 = vmatprep.subr.bf16.mxu0 %v610
        %712 = vmatpush1.bf16.msra.mxu0 %v609
        %713 = vmatprep.subr.bf16.mxu0 %v614
        %714 = vmatpush1.bf16.msra.mxu0 %v613
        %715 = vmatprep.subr.bf16.mxu0 %v618
        %716 = vmatpush1.bf16.msra.mxu0 %v617
        %717 = vmatprep.mubr.bf16.mxu0 %v362
        %718 = vmatmul.mubr.bf16.gmra.mrb[0].mxu0 %v361
        %v719 = vpop.f32.mrb[0].mxu0
        %v720 = vadd.f32 %v338, %v719
        %v721 = vpop.f32.mrb[0].mxu0
        %v722 = vadd.f32 %v342, %v721
        %v723 = vpop.f32.mrb[0].mxu0
        %v724 = vadd.f32 %v338, %v723
        %v725 = vpop.f32.mrb[0].mxu0
        %v726 = vadd.f32 %v342, %v725
        %727 = vdwg.mxu0
        %728 = vmatprep.subr.bf16.mxu0 %v560
        %729 = vmatpush1.bf16.msra.mxu0 %v559
        %730 = vmatprep.subr.bf16.mxu0 %v564
        %731 = vmatpush1.bf16.msra.mxu0 %v563
        %732 = vmatprep.subr.bf16.mxu0 %v568
        %733 = vmatpush1.bf16.msra.mxu0 %v567
        %734 = vmatprep.subr.bf16.mxu0 %v572
        %735 = vmatpush1.bf16.msra.mxu0 %v571
        %736 = vmatprep.subr.bf16.mxu0 %v576
        %737 = vmatpush1.bf16.msra.mxu0 %v575
        %738 = vmatprep.subr.bf16.mxu0 %v580
        %739 = vmatpush1.bf16.msra.mxu0 %v579
        %740 = vmatprep.subr.bf16.mxu0 %v584
        %741 = vmatpush1.bf16.msra.mxu0 %v583
        %742 = vmatprep.subr.bf16.mxu0 %v588
        %743 = vmatpush1.bf16.msra.mxu0 %v587
        %744 = vmatprep.subr.bf16.mxu0 %v592
        %745 = vmatpush1.bf16.msra.mxu0 %v591
        %746 = vmatprep.subr.bf16.mxu0 %v596
        %747 = vmatpush1.bf16.msra.mxu0 %v595
        %748 = vmatprep.subr.bf16.mxu0 %v600
        %749 = vmatpush1.bf16.msra.mxu0 %v599
        %750 = vmatprep.subr.bf16.mxu0 %v604
        %751 = vmatpush1.bf16.msra.mxu0 %v603
        %752 = vmatprep.subr.bf16.mxu0 %v608
        %753 = vmatpush1.bf16.msra.mxu0 %v607
        %754 = vmatprep.subr.bf16.mxu0 %v612
        %755 = vmatpush1.bf16.msra.mxu0 %v611
        %756 = vmatprep.subr.bf16.mxu0 %v616
        %757 = vmatpush1.bf16.msra.mxu0 %v615
        %758 = vmatprep.subr.bf16.mxu0 %v620
        %759 = vmatpush1.bf16.msra.mxu0 %v619
        %760 = vmatprep.mubr.bf16.mxu0 %v362
        %761 = vmatmul.mubr.bf16.gmra.mrb[0].mxu0 %v361
        %v762 = vpop.f32.mrb[0].mxu0
        %v763 = vadd.f32 %v346, %v762
        %v764 = vpop.f32.mrb[0].mxu0
        %v765 = vadd.f32 %v350, %v764
        %v766 = vpop.f32.mrb[0].mxu0
        %v767 = vadd.f32 %v346, %v766
        %v768 = vpop.f32.mrb[0].mxu0
        %v769 = vadd.f32 %v350, %v768
        %770 = vdwg.mxu0
        %771 = vst [vmem:[%s261] sm:$0xff] %v720
        %772 = vst [vmem:[%s261 + $0x8] sm:$0xff] %v722
        %773 = vst [vmem:[%s261 + $0x10] sm:$0xff] %v763
        %774 = vst [vmem:[%s261 + $0x18] sm:$0xff] %v765
        %775 = vst [vmem:[%s261 + $0x20] sm:$0xff] %v724
        %776 = vst [vmem:[%s261 + $0x28] sm:$0xff] %v726
        %777 = vst [vmem:[%s261 + $0x30] sm:$0xff] %v767
        %778 = vst [vmem:[%s261 + $0x38] sm:$0xff] %v769
        %s779 = sand.u32 %s121, 1
        %s780 = scalar_lea.sflag [#allocation4], %s779
        %s781 = sand.u32 %s121, 1
        %s782 = smul.addr %s781, 64
        %s783 = scalar_lea.vmem [#allocation8], %s782
        // Predicated region
        $region45: #{embedding_moe_forward.5} parent=31 // pred_check
          %p784 = pneg %p131
        $region46: #{embedding_moe_forward.5} parent=31 // pred_check_branch
          %786 = sbr.rel (%p784) target = $region48
        $region47: #{embedding_moe_forward.5} parent=31 // pred_region
          %s787 = smul.u32 2, %s25
          %s788 = smul.u32 4, %s26
          %s790 = ssub.s32 1024, 1024
          %791 = vsyncadd %s780, %s790
          %s792 = smul.addr %s787, 8
          %s793 = sadd.s32 %s788, %s792
          %s794 = smul.addr %s793, 128
          %s795 = scalar_lea.hbm %s3, %s794
          %s796 = sshll.u32 %s783, 4
          %s797 = int_to_ptr.vmem [resolvable:$true] %s796
          %802 = dma.vmem_to_hbm [thread:$0]  %s797, 1024, %s795, %s780, 512, 1024, 32
        $region48: #{embedding_moe_forward.5} parent=31 // pred_fallthru
          _
      $region32: #{embedding_moe_forward.5} parent=5 // pred_fallthru
        _
      %p803 = scmp.le.s32.totalorder 2, %s16
      // Predicated region
      $region49: #{embedding_moe_forward.5} parent=5 // pred_check
        %p804 = pneg %p803
      $region50: #{embedding_moe_forward.5} parent=5 // pred_check_branch
        %806 = sbr.rel (%p804) target = $region52
      $region51: #{embedding_moe_forward.5} parent=5 // pred_region
        %s807 = ssub.s32 %s16, 2
        // Predicated region
        $region53: #{embedding_moe_forward.5} parent=51 // pred_check
          %p808 = pneg %p137
        $region54: #{embedding_moe_forward.5} parent=51 // pred_check_branch
          %810 = sbr.rel (%p808) target = $region56
        $region55: #{embedding_moe_forward.5} parent=51 // pred_region
          %s811 = sand.u32 %s122, 1
          %s812 = scalar_lea.sflag [#allocation4], %s811
          %s813 = sand.u32 %s122, 1
          %s814 = smul.addr %s813, 64
          %s815 = scalar_lea.vmem [#allocation8], %s814
          %816 = dma.done %s812, 1024
        $region56: #{embedding_moe_forward.5} parent=51 // pred_fallthru
          _
      $region52: #{embedding_moe_forward.5} parent=5 // pred_fallthru
        _
    $region6: #{embedding_moe_forward.5} parent=1 // loop_footer
      %s20 = sadd.s32 1, %s16
    $region7: #{embedding_moe_forward.5} parent=1 // loop_footer_branch
      %15 = sbr.rel target = $region3
    $region8: #{embedding_moe_forward.5} parent=1 // loop_exit
      _
    %817 = vsyncpa [#allocation3], 1
    %s818 = scalar_lea.sflag [#allocation3], 1
    %819 = vsyncpa %s818, 1
    %820 = vsyncpa [#allocation6], 1
    %s821 = scalar_lea.sflag [#allocation6], 1
    %822 = vsyncpa %s821, 1
    %823 = vsyncpa [#allocation4], 1
    %s824 = scalar_lea.sflag [#allocation4], 1
    %825 = vsyncpa %s824, 1

// kernel: embedding_moe_forward.3
$region0: #{embedding_moe_forward.3}
  #allocation0 [shape = 'u32[]', space=smem, size = 0x4, offset = 0x4, fixed_abs, tag = 'smem constant byte address 0x4 - core index']
  #allocation1 [shape = 'u32[144,128]{1,0:T(1,128)}', space=vmem, size = 0x12000, scoped, tag = 'internal scratch']
  #allocation2 [shape = 'f32[16,256]{1,0:T(8,128)}', space=vmem, size = 0x4000, scoped, tag = 'scratch operand']
  #allocation3 [shape = 's32[1]{0}', space=sflag, size = 0x4, scoped, tag = 'scoped memory for embedding_moe_forward.3']
  #allocation4 [shape = 's32[1]{0:T(128)S(6)}', space=smem, size = 0x200, scoped, tag = 'prefetched SMEM operand 0']
  %s0 = inlined_call_operand.<no memory space> [shape: s32[1], index: 0, kind: input, shape index: {}]
  %s1 = inlined_call_operand.hbm [shape: bf16[16,256], index: 1, kind: input, shape index: {}]
  %s2 = inlined_call_operand.hbm [shape: bf16[256,128], index: 2, kind: input, shape index: {}]
  %s3 = inlined_call_operand.hbm [shape: bf16[4,256,512], index: 3, kind: input, shape index: {}]
  %s4 = inlined_call_operand.hbm [shape: f32[4,1,512], index: 4, kind: input, shape index: {}]
  %s5 = inlined_call_operand.hbm [shape: bf16[4,512,256], index: 5, kind: input, shape index: {}]
  %s6 = inlined_call_operand.hbm [shape: f32[4,1,256], index: 6, kind: input, shape index: {}]
  %s7 = inlined_call_operand.hbm [shape: bf16[16,256], index: 7, kind: output, shape index: {0}]
  %s8 = inlined_call_operand.hbm [shape: f32[1,2,128], index: 8, kind: output, shape index: {1}]
  %9 = xla_tuple %s7, %s8
  %s10 = sld [smem:[#allocation0]]
  $region66: #{embedding_moe_forward.3} parent=0
    _
  %s12 = ssub.s32 1, %s10
  %s13 = scalar_select 0, %s12, %s10
  %14 = sst [smem:[#allocation4]] %s0
  $region1: #{embedding_moe_forward.3} parent=0
    #allocation5 [shape = 'u8[8192]{0}', space=vmem, size = 0x2000, scoped, tag = 'input window, operand 1, single buffered']
    #allocation6 [shape = 's32[1]{0}', space=sflag, size = 0x4, scoped, tag = 'scoped memory for embedding_moe_forward.3']
    #allocation7 [shape = 's32[1]{0}', space=sflag, size = 0x4, scoped, tag = 'scoped memory for embedding_moe_forward.3']
    #allocation8 [shape = 'u8[65536]{0}', space=vmem, size = 0x10000, scoped, tag = 'input window, operand 2, single buffered']
    #allocation9 [shape = 's32[1]{0}', space=sflag, size = 0x4, scoped, tag = 'scoped memory for embedding_moe_forward.3']
    #allocation10 [shape = 'u8[1048576]{0}', space=vmem, size = 0x100000, scoped, tag = 'input window, operand 3, single buffered']
    #allocation11 [shape = 'u8[8192]{0}', space=vmem, size = 0x2000, scoped, tag = 'input window, operand 4, single buffered']
    #allocation12 [shape = 's32[1]{0}', space=sflag, size = 0x4, scoped, tag = 'scoped memory for embedding_moe_forward.3']
    #allocation13 [shape = 'u8[1048576]{0}', space=vmem, size = 0x100000, scoped, tag = 'input window, operand 5, single buffered']
    #allocation14 [shape = 'u8[4096]{0}', space=vmem, size = 0x1000, scoped, tag = 'input window, operand 6, single buffered']
    #allocation15 [shape = 's32[1]{0}', space=sflag, size = 0x4, scoped, tag = 'scoped memory for embedding_moe_forward.3']
    #allocation16 [shape = 'u8[8192]{0}', space=vmem, size = 0x2000, scoped, tag = 'output window, operand 0, single buffered']
    #allocation17 [shape = 'u8[1024]{0}', space=vmem, size = 0x400, scoped, tag = 'output window, operand 1, single buffered']
    #allocation18 [shape = 's32[1]{0}', space=sflag, size = 0x4, scoped, tag = 'scoped memory for embedding_moe_forward.3']
    %15 = vsyncpa [#allocation6], 0
    %16 = vsyncpa [#allocation9], 0
    %17 = vsyncpa [#allocation12], 0
    %18 = vsyncpa [#allocation15], 0
    %19 = vsyncpa [#allocation7], 0
    %20 = vsyncpa [#allocation18], 0
    // Predicated region
    $region2: #{embedding_moe_forward.3} parent=1 // pred_check
      _
    $region3: #{embedding_moe_forward.3} parent=1 // pred_check_branch
      %22 = sbr.rel (0) target = $region5
    $region4: #{embedding_moe_forward.3} parent=1 // pred_region
      %s24 = ssub.s32 256, 256
      %25 = vsyncadd [#allocation6], %s24
      %s26 = sshll.u32 [#allocation5], 4
      %s27 = int_to_ptr.vmem [resolvable:$true] %s26
      %32 = dma.hbm_to_vmem [thread:$0]  %s1, 256, %s27, [#allocation6], 128, 128, 8
    $region5: #{embedding_moe_forward.3} parent=1 // pred_fallthru
      _
    // Predicated region
    $region6: #{embedding_moe_forward.3} parent=1 // pred_check
      _
    $region7: #{embedding_moe_forward.3} parent=1 // pred_check_branch
      %34 = sbr.rel (0) target = $region9
    $region8: #{embedding_moe_forward.3} parent=1 // pred_region
      %s36 = ssub.s32 2048, 2048
      %37 = vsyncadd [#allocation9], %s36
      %s38 = sshll.u32 [#allocation8], 4
      %s39 = int_to_ptr.vmem [resolvable:$true] %s38
      %44 = dma.hbm_to_vmem [thread:$0]  %s2, 2048, %s39, [#allocation9], 64, 64, 4
    $region9: #{embedding_moe_forward.3} parent=1 // pred_fallthru
      _
    // Predicated region
    $region10: #{embedding_moe_forward.3} parent=1 // pred_check
      _
    $region11: #{embedding_moe_forward.3} parent=1 // pred_check_branch
      %46 = sbr.rel (0) target = $region13
    $region12: #{embedding_moe_forward.3} parent=1 // pred_region
      %s48 = ssub.s32 32768, 32768
      %49 = vsyncadd [#allocation9], %s48
      %s50 = sshll.u32 [#allocation10], 4
      %s51 = int_to_ptr.vmem [resolvable:$true] %s50
      %56 = dma.hbm_to_vmem [thread:$0]  %s3, 32768, %s51, [#allocation9], 256, 256, 16
    $region13: #{embedding_moe_forward.3} parent=1 // pred_fallthru
      _
    // Predicated region
    $region14: #{embedding_moe_forward.3} parent=1 // pred_check
      _
    $region15: #{embedding_moe_forward.3} parent=1 // pred_check_branch
      %58 = sbr.rel (0) target = $region17
    $region16: #{embedding_moe_forward.3} parent=1 // pred_region
      %s60 = ssub.s32 256, 256
      %61 = vsyncadd [#allocation12], %s60
      %s62 = sshll.u32 [#allocation11], 4
      %s63 = int_to_ptr.vmem [resolvable:$true] %s62
      %68 = dma.hbm_to_vmem [thread:$0]  %s4, 256, %s63, [#allocation12], 64, 64, 4
    $region17: #{embedding_moe_forward.3} parent=1 // pred_fallthru
      _
    // Predicated region
    $region18: #{embedding_moe_forward.3} parent=1 // pred_check
      _
    $region19: #{embedding_moe_forward.3} parent=1 // pred_check_branch
      %70 = sbr.rel (0) target = $region21
    $region20: #{embedding_moe_forward.3} parent=1 // pred_region
      %s72 = ssub.s32 32768, 32768
      %73 = vsyncadd [#allocation12], %s72
      %s74 = sshll.u32 [#allocation13], 4
      %s75 = int_to_ptr.vmem [resolvable:$true] %s74
      %80 = dma.hbm_to_vmem [thread:$0]  %s5, 32768, %s75, [#allocation12], 128, 128, 8
    $region21: #{embedding_moe_forward.3} parent=1 // pred_fallthru
      _
    // Predicated region
    $region22: #{embedding_moe_forward.3} parent=1 // pred_check
      _
    $region23: #{embedding_moe_forward.3} parent=1 // pred_check_branch
      %82 = sbr.rel (0) target = $region25
    $region24: #{embedding_moe_forward.3} parent=1 // pred_region
      %s84 = ssub.s32 128, 128
      %85 = vsyncadd [#allocation15], %s84
      %s86 = sshll.u32 [#allocation14], 4
      %s87 = int_to_ptr.vmem [resolvable:$true] %s86
      %92 = dma.hbm_to_vmem [thread:$0]  %s6, 128, %s87, [#allocation15], 32, 32, 2
    $region25: #{embedding_moe_forward.3} parent=1 // pred_fallthru
      _
    // Predicated region
    $region26: #{embedding_moe_forward.3} parent=1 // pred_check
      _
    $region27: #{embedding_moe_forward.3} parent=1 // pred_check_branch
      %94 = sbr.rel (0) target = $region29
    $region28: #{embedding_moe_forward.3} parent=1 // pred_region
      %95 = dma.done [#allocation6], 256
    $region29: #{embedding_moe_forward.3} parent=1 // pred_fallthru
      _
    // Predicated region
    $region30: #{embedding_moe_forward.3} parent=1 // pred_check
      _
    $region31: #{embedding_moe_forward.3} parent=1 // pred_check_branch
      %97 = sbr.rel (0) target = $region33
    $region32: #{embedding_moe_forward.3} parent=1 // pred_region
      %98 = dma.done [#allocation9], 2048
    $region33: #{embedding_moe_forward.3} parent=1 // pred_fallthru
      _
    // Predicated region
    $region34: #{embedding_moe_forward.3} parent=1 // pred_check
      _
    $region35: #{embedding_moe_forward.3} parent=1 // pred_check_branch
      %100 = sbr.rel (0) target = $region37
    $region36: #{embedding_moe_forward.3} parent=1 // pred_region
      %101 = dma.done [#allocation9], 32768
    $region37: #{embedding_moe_forward.3} parent=1 // pred_fallthru
      _
    // Predicated region
    $region38: #{embedding_moe_forward.3} parent=1 // pred_check
      _
    $region39: #{embedding_moe_forward.3} parent=1 // pred_check_branch
      %103 = sbr.rel (0) target = $region41
    $region40: #{embedding_moe_forward.3} parent=1 // pred_region
      %104 = dma.done [#allocation12], 256
    $region41: #{embedding_moe_forward.3} parent=1 // pred_fallthru
      _
    // Predicated region
    $region42: #{embedding_moe_forward.3} parent=1 // pred_check
      _
    $region43: #{embedding_moe_forward.3} parent=1 // pred_check_branch
      %106 = sbr.rel (0) target = $region45
    $region44: #{embedding_moe_forward.3} parent=1 // pred_region
      %107 = dma.done [#allocation12], 32768
    $region45: #{embedding_moe_forward.3} parent=1 // pred_fallthru
      _
    // Predicated region
    $region46: #{embedding_moe_forward.3} parent=1 // pred_check
      _
    $region47: #{embedding_moe_forward.3} parent=1 // pred_check_branch
      %109 = sbr.rel (0) target = $region49
    $region48: #{embedding_moe_forward.3} parent=1 // pred_region
      %110 = dma.done [#allocation15], 128
    $region49: #{embedding_moe_forward.3} parent=1 // pred_fallthru
      _
    %v112 = vld [vmem:[#allocation5] sm:$0xff]
    %v113 = vld [vmem:[#allocation5 + $0x8] sm:$0xff]
    %v114 = vld [vmem:[#allocation8] sm:$0xf]
    %v115 = vld [vmem:[#allocation8 + $0x4] sm:$0xf]
    %v116 = vld [vmem:[#allocation8 + $0x8] sm:$0xf]
    %v117 = vld [vmem:[#allocation8 + $0xc] sm:$0xf]
    %v118 = vld [vmem:[#allocation8 + $0x10] sm:$0xf]
    %v119 = vld [vmem:[#allocation8 + $0x14] sm:$0xf]
    %v120 = vld [vmem:[#allocation8 + $0x18] sm:$0xf]
    %v121 = vld [vmem:[#allocation8 + $0x1c] sm:$0xf]
    %v122 = vld [vmem:[#allocation8 + $0x20] sm:$0xf]
    %v123 = vld [vmem:[#allocation8 + $0x24] sm:$0xf]
    %v124 = vld [vmem:[#allocation8 + $0x28] sm:$0xf]
    %v125 = vld [vmem:[#allocation8 + $0x2c] sm:$0xf]
    %v126 = vld [vmem:[#allocation8 + $0x30] sm:$0xf]
    %v127 = vld [vmem:[#allocation8 + $0x34] sm:$0xf]
    %v128 = vld [vmem:[#allocation8 + $0x38] sm:$0xf]
    %v129 = vld [vmem:[#allocation8 + $0x3c] sm:$0xf]
    %v130 = vld [vmem:[#allocation8 + $0x40] sm:$0xf]
    %v131 = vld [vmem:[#allocation8 + $0x44] sm:$0xf]
    %v132 = vld [vmem:[#allocation8 + $0x48] sm:$0xf]
    %v133 = vld [vmem:[#allocation8 + $0x4c] sm:$0xf]
    %v134 = vld [vmem:[#allocation8 + $0x50] sm:$0xf]
    %v135 = vld [vmem:[#allocation8 + $0x54] sm:$0xf]
    %v136 = vld [vmem:[#allocation8 + $0x58] sm:$0xf]
    %v137 = vld [vmem:[#allocation8 + $0x5c] sm:$0xf]
    %v138 = vld [vmem:[#allocation8 + $0x60] sm:$0xf]
    %v139 = vld [vmem:[#allocation8 + $0x64] sm:$0xf]
    %v140 = vld [vmem:[#allocation8 + $0x68] sm:$0xf]
    %v141 = vld [vmem:[#allocation8 + $0x6c] sm:$0xf]
    %v142 = vld [vmem:[#allocation8 + $0x70] sm:$0xf]
    %v143 = vld [vmem:[#allocation8 + $0x74] sm:$0xf]
    %v144 = vld [vmem:[#allocation8 + $0x78] sm:$0xf]
    %v145 = vld [vmem:[#allocation8 + $0x7c] sm:$0xf]
    %v148 = vunpack.c.l.b16 %v112
    %v149 = vunpack.c.h.b16 %v112
    %v150 = vunpack.c.l.b16 %v113
    %v151 = vunpack.c.h.b16 %v113
    %v152 = vpack.c.b16 %v150, %v148
    %v153 = vpack.c.b16 %v151, %v149
    %v188 = vunpack.c.l.b16 %v114
    %v189 = vunpack.c.l.b16 %v115
    %v190 = vunpack.c.l.b16 %v116
    %v191 = vunpack.c.l.b16 %v117
    %v192 = vunpack.c.l.b16 %v118
    %v193 = vunpack.c.l.b16 %v119
    %v194 = vunpack.c.l.b16 %v120
    %v195 = vunpack.c.l.b16 %v121
    %v196 = vunpack.c.l.b16 %v122
    %v197 = vunpack.c.l.b16 %v123
    %v198 = vunpack.c.l.b16 %v124
    %v199 = vunpack.c.l.b16 %v125
    %v200 = vunpack.c.l.b16 %v126
    %v201 = vunpack.c.l.b16 %v127
    %v202 = vunpack.c.l.b16 %v128
    %v203 = vunpack.c.l.b16 %v129
    %v204 = vunpack.c.l.b16 %v130
    %v205 = vunpack.c.l.b16 %v131
    %v206 = vunpack.c.l.b16 %v132
    %v207 = vunpack.c.l.b16 %v133
    %v208 = vunpack.c.l.b16 %v134
    %v209 = vunpack.c.l.b16 %v135
    %v210 = vunpack.c.l.b16 %v136
    %v211 = vunpack.c.l.b16 %v137
    %v212 = vunpack.c.l.b16 %v138
    %v213 = vunpack.c.l.b16 %v139
    %v214 = vunpack.c.l.b16 %v140
    %v215 = vunpack.c.l.b16 %v141
    %v216 = vunpack.c.l.b16 %v142
    %v217 = vunpack.c.l.b16 %v143
    %v218 = vunpack.c.l.b16 %v144
    %v219 = vunpack.c.l.b16 %v145
    %v220 = vpack.c.b16 %v189, %v188
    %v221 = vpack.c.b16 %v191, %v190
    %v222 = vpack.c.b16 %v193, %v192
    %v223 = vpack.c.b16 %v195, %v194
    %v224 = vpack.c.b16 %v197, %v196
    %v225 = vpack.c.b16 %v199, %v198
    %v226 = vpack.c.b16 %v201, %v200
    %v227 = vpack.c.b16 %v203, %v202
    %v228 = vpack.c.b16 %v205, %v204
    %v229 = vpack.c.b16 %v207, %v206
    %v230 = vpack.c.b16 %v209, %v208
    %v231 = vpack.c.b16 %v211, %v210
    %v232 = vpack.c.b16 %v213, %v212
    %v233 = vpack.c.b16 %v215, %v214
    %v234 = vpack.c.b16 %v217, %v216
    %v235 = vpack.c.b16 %v219, %v218
    %252 = vmatprep.subr.bf16.mxu0 0
    %253 = vmatpush1.bf16.msra.mxu0 %v220
    %254 = vmatprep.subr.bf16.mxu0 0
    %255 = vmatpush1.bf16.msra.mxu0 %v221
    %256 = vmatprep.subr.bf16.mxu0 0
    %257 = vmatpush1.bf16.msra.mxu0 %v222
    %258 = vmatprep.subr.bf16.mxu0 0
    %259 = vmatpush1.bf16.msra.mxu0 %v223
    %260 = vmatprep.subr.bf16.mxu0 0
    %261 = vmatpush1.bf16.msra.mxu0 %v224
    %262 = vmatprep.subr.bf16.mxu0 0
    %263 = vmatpush1.bf16.msra.mxu0 %v225
    %264 = vmatprep.subr.bf16.mxu0 0
    %265 = vmatpush1.bf16.msra.mxu0 %v226
    %266 = vmatprep.subr.bf16.mxu0 0
    %267 = vmatpush1.bf16.msra.mxu0 %v227
    %268 = vmatprep.subr.bf16.mxu0 0
    %269 = vmatpush1.bf16.msra.mxu0 %v228
    %270 = vmatprep.subr.bf16.mxu0 0
    %271 = vmatpush1.bf16.msra.mxu0 %v229
    %272 = vmatprep.subr.bf16.mxu0 0
    %273 = vmatpush1.bf16.msra.mxu0 %v230
    %274 = vmatprep.subr.bf16.mxu0 0
    %275 = vmatpush1.bf16.msra.mxu0 %v231
    %276 = vmatprep.subr.bf16.mxu0 0
    %277 = vmatpush1.bf16.msra.mxu0 %v232
    %278 = vmatprep.subr.bf16.mxu0 0
    %279 = vmatpush1.bf16.msra.mxu0 %v233
    %280 = vmatprep.subr.bf16.mxu0 0
    %281 = vmatpush1.bf16.msra.mxu0 %v234
    %282 = vmatprep.subr.bf16.mxu0 0
    %283 = vmatpush1.bf16.msra.mxu0 %v235
    %284 = vmatprep.mubr.bf16.mxu0 %v153
    %285 = vmatmul.mubr.bf16.gmra.mrb[0].mxu0 %v152
    %v286 = vpop.f32.mrb[0].mxu0
    %v287 = vadd.f32 0.0, %v286
    %v288 = vpop.f32.mrb[0].mxu0
    %v289 = vpop.f32.mrb[0].mxu0
    %v290 = vadd.f32 0.0, %v289
    %v291 = vpop.f32.mrb[0].mxu0
    %292 = vdwg.mxu0
    %v293 = vlaneseq
    %v294 = vand.u32 %v293, 127
    %vm295 = vcmp.lt.s32.totalorder %v294, 4
    %v296 = vsel %vm295, %v287, -1e+30
    %v297 = vsel %vm295, %v290, -1e+30
    %298 = vmax.xlane.f32.xlu0 %v296
    %v299 = vpop.xlane.xlu0 %298
    %300 = vmax.xlane.f32.xlu0 %v297
    %v301 = vpop.xlane.xlu0 %300
    %v302 = vsub.f32 %v296, %v299
    %v303 = vsub.f32 %v297, %v301
    %v304 = vmul.f32 %v302, 1.442695
    %v305 = vpow.pop %v304
    %v306 = vmul.f32 %v303, 1.442695
    %v307 = vpow.pop %v306
    %308 = vadd.xlane.f32.xlu0 %v305
    %v309 = vpop.xlane.xlu0 %308
    %310 = vadd.xlane.f32.xlu0 %v307
    %v311 = vpop.xlane.xlu0 %310
    %v312 = vrcp.pop %v309
    %v313 = vmul.f32 %v305, %v312
    %v314 = vrcp.pop %v311
    %v315 = vmul.f32 %v307, %v314
    %v316 = vsel %vm295, %v313, -1.0
    %v317 = vsel %vm295, %v315, -1.0
    %318 = vmax.xlane.f32.xlu0 %v316
    %v319 = vpop.xlane.xlu0 %318
    %320 = vmax.xlane.f32.xlu0 %v317
    %v321 = vpop.xlane.xlu0 %320
    %vm322 = vcmp.eq.f32.partialorder %v316, %v319
    %vm323 = vcmp.eq.f32.partialorder %v317, %v321
    %v324 = vsel %vm322, %v294, 128
    %v325 = vsel %vm323, %v294, 128
    %v326 = vand.u32 %v324, 65535
    %v327 = vshra.s32 %v324, 16
    %v328 = vcvt.s32.f32 %v326
    %v329 = vcvt.s32.f32 %v327
    %330 = vmin.xlane.f32.xlu0 %v329
    %v331 = vpop.xlane.xlu0 %330
    %vm332 = vcmp.eq.f32.partialorder %v329, %v331
    %v333 = vsel %vm332, %v328, inf
    %334 = vmin.xlane.f32.xlu0 %v333
    %v335 = vpop.xlane.xlu0 %334
    %v336 = vcvt.f32.s32 %v335
    %v337 = vcvt.f32.s32 %v331
    %v338 = vshll.u32 %v337, 16
    %v339 = vadd.s32 %v338, %v336
    %v340 = vand.u32 %v325, 65535
    %v341 = vshra.s32 %v325, 16
    %v342 = vcvt.s32.f32 %v340
    %v343 = vcvt.s32.f32 %v341
    %344 = vmin.xlane.f32.xlu0 %v343
    %v345 = vpop.xlane.xlu0 %344
    %vm346 = vcmp.eq.f32.partialorder %v343, %v345
    %v347 = vsel %vm346, %v342, inf
    %348 = vmin.xlane.f32.xlu0 %v347
    %v349 = vpop.xlane.xlu0 %348
    %v350 = vcvt.f32.s32 %v349
    %v351 = vcvt.f32.s32 %v345
    %v352 = vshll.u32 %v351, 16
    %v353 = vadd.s32 %v352, %v350
    %vm354 = vcmp.eq.s32.totalorder %v294, %v339
    %vm355 = vcmp.eq.s32.totalorder %v294, %v353
    %v356 = vsel %vm354, 1, 0
    %v357 = vsel %vm355, 1, 0
    %v358 = vcvt.s32.f32 %v356
    %v359 = vcvt.s32.f32 %v357
    %vm360 = vcmp.gt.f32.partialorder %v358, 0.0
    %vm361 = vcmp.gt.f32.partialorder %v359, 0.0
    %v362 = vsel %vm360, -1.0, %v316
    %v363 = vsel %vm361, -1.0, %v317
    %364 = vmax.xlane.f32.xlu0 %v362
    %v365 = vpop.xlane.xlu0 %364
    %366 = vmax.xlane.f32.xlu0 %v363
    %v367 = vpop.xlane.xlu0 %366
    %vm368 = vcmp.eq.f32.partialorder %v362, %v365
    %vm369 = vcmp.eq.f32.partialorder %v363, %v367
    %v370 = vsel %vm368, %v294, 128
    %v371 = vsel %vm369, %v294, 128
    %v372 = vand.u32 %v370, 65535
    %v373 = vshra.s32 %v370, 16
    %v374 = vcvt.s32.f32 %v372
    %v375 = vcvt.s32.f32 %v373
    %376 = vmin.xlane.f32.xlu0 %v375
    %v377 = vpop.xlane.xlu0 %376
    %vm378 = vcmp.eq.f32.partialorder %v375, %v377
    %v379 = vsel %vm378, %v374, inf
    %380 = vmin.xlane.f32.xlu0 %v379
    %v381 = vpop.xlane.xlu0 %380
    %v382 = vcvt.f32.s32 %v381
    %v383 = vcvt.f32.s32 %v377
    %v384 = vshll.u32 %v383, 16
    %v385 = vadd.s32 %v384, %v382
    %v386 = vand.u32 %v371, 65535
    %v387 = vshra.s32 %v371, 16
    %v388 = vcvt.s32.f32 %v386
    %v389 = vcvt.s32.f32 %v387
    %390 = vmin.xlane.f32.xlu0 %v389
    %v391 = vpop.xlane.xlu0 %390
    %vm392 = vcmp.eq.f32.partialorder %v389, %v391
    %v393 = vsel %vm392, %v388, inf
    %394 = vmin.xlane.f32.xlu0 %v393
    %v395 = vpop.xlane.xlu0 %394
    %v396 = vcvt.f32.s32 %v395
    %v397 = vcvt.f32.s32 %v391
    %v398 = vshll.u32 %v397, 16
    %v399 = vadd.s32 %v398, %v396
    %vm400 = vcmp.eq.s32.totalorder %v294, %v385
    %vm401 = vcmp.eq.s32.totalorder %v294, %v399
    %v402 = vsel %vm400, 1, 0
    %v403 = vsel %vm401, 1, 0
    %v404 = vcvt.s32.f32 %v402
    %v405 = vcvt.s32.f32 %v403
    %v406 = vadd.f32 %v358, %v404
    %v407 = vadd.f32 %v359, %v405
    %v408 = vmul.f32 %v313, %v406
    %v409 = vmul.f32 %v315, %v407
    %v410 = vadd.f32 %v319, %v365
    %v411 = vadd.f32 %v321, %v367
    %v412 = vrcp.pop %v410
    %v413 = vmul.f32 %v408, %v412
    %v414 = vrcp.pop %v411
    %v415 = vmul.f32 %v409, %v414
    %v416 = vlaneseq
    %v417 = vshrl.u32 %v416, 7
    %v418 = vadd.s32 %v417, 8
    %s419 = smul.u32 0, 16
    %v420 = vstv %s419
    %v421 = vadd.s32 %v417, %v420
    %v422 = vadd.s32 %v418, %v420
    %s423 = sld [smem:[#allocation4]]
    %v424 = vstv %s423
    %vm425 = vcmp.lt.s32.totalorder %v421, %v424
    %vm426 = vcmp.lt.s32.totalorder %v422, %v424
    %v427 = vsel %vm425, 1, 0
    %v428 = vsel %vm426, 1, 0
    %v429 = vcvt.s32.f32 %v427
    %v430 = vcvt.s32.f32 %v428
    %v431 = vmul.f32 %v358, %v429
    %v432 = vmul.f32 %v359, %v430
    %v433 = vadd.f32 %v431, %v432
    %v434 = vrot.slane %v433, 4
    %v435 = vadd.f32 %v433, %v434
    %v436 = vrot.slane %v435, 2
    %v437 = vadd.f32 %v435, %v436
    %v438 = vrot.slane %v437, 1
    %v439 = vadd.f32 %v437, %v438
    %v440 = vmul.f32 %v313, %v429
    %v441 = vmul.f32 %v315, %v430
    %v442 = vadd.f32 %v440, %v441
    %v443 = vrot.slane %v442, 4
    %v444 = vadd.f32 %v442, %v443
    %v445 = vrot.slane %v444, 2
    %v446 = vadd.f32 %v444, %v445
    %v447 = vrot.slane %v446, 1
    %v448 = vadd.f32 %v446, %v447
    %vm449 = vcmask 1040384
    %v450 = vsel %vm449, %v439, %v448
    %451 = vst [vmem:[#allocation17] sm:$0x3] %v450
    %452 = vst [vmem:[#allocation2] sm:$0xff] 0.0
    %453 = vst [vmem:[#allocation2 + $0x8] sm:$0xff] 0.0
    %454 = vst [vmem:[#allocation2 + $0x10] sm:$0xff] 0.0
    %455 = vst [vmem:[#allocation2 + $0x18] sm:$0xff] 0.0
    %v456 = vld [vmem:[#allocation10] sm:$0xff]
    %v457 = vld [vmem:[#allocation10 + $0x8] sm:$0xff]
    %v458 = vld [vmem:[#allocation10 + $0x10] sm:$0xff]
    %v459 = vld [vmem:[#allocation10 + $0x18] sm:$0xff]
    %v460 = vld [vmem:[#allocation10 + $0x20] sm:$0xff]
    %v461 = vld [vmem:[#allocation10 + $0x28] sm:$0xff]
    %v462 = vld [vmem:[#allocation10 + $0x30] sm:$0xff]
    %v463 = vld [vmem:[#allocation10 + $0x38] sm:$0xff]
    %v464 = vld [vmem:[#allocation10 + $0x40] sm:$0xff]
    %v465 = vld [vmem:[#allocation10 + $0x48] sm:$0xff]
    %v466 = vld [vmem:[#allocation10 + $0x50] sm:$0xff]
    %v467 = vld [vmem:[#allocation10 + $0x58] sm:$0xff]
    %v468 = vld [vmem:[#allocation10 + $0x60] sm:$0xff]
    %v469 = vld [vmem:[#allocation10 + $0x68] sm:$0xff]
    %v470 = vld [vmem:[#allocation10 + $0x70] sm:$0xff]
    %v471 = vld [vmem:[#allocation10 + $0x78] sm:$0xff]
    %v472 = vld [vmem:[#allocation10 + $0x80] sm:$0xff]
    %v473 = vld [vmem:[#allocation10 + $0x88] sm:$0xff]
    %v474 = vld [vmem:[#allocation10 + $0x90] sm:$0xff]
    %v475 = vld [vmem:[#allocation10 + $0x98] sm:$0xff]
    %v476 = vld [vmem:[#allocation10 + $0xa0] sm:$0xff]
    %v477 = vld [vmem:[#allocation10 + $0xa8] sm:$0xff]
    %v478 = vld [vmem:[#allocation10 + $0xb0] sm:$0xff]
    %v479 = vld [vmem:[#allocation10 + $0xb8] sm:$0xff]
    %v480 = vld [vmem:[#allocation10 + $0xc0] sm:$0xff]
    %v481 = vld [vmem:[#allocation10 + $0xc8] sm:$0xff]
    %v482 = vld [vmem:[#allocation10 + $0xd0] sm:$0xff]
    %v483 = vld [vmem:[#allocation10 + $0xd8] sm:$0xff]
    %v484 = vld [vmem:[#allocation10 + $0xe0] sm:$0xff]
    %v485 = vld [vmem:[#allocation10 + $0xe8] sm:$0xff]
    %v486 = vld [vmem:[#allocation10 + $0xf0] sm:$0xff]
    %v487 = vld [vmem:[#allocation10 + $0xf8] sm:$0xff]
    %v488 = vld [vmem:[#allocation10 + $0x100] sm:$0xff]
    %v489 = vld [vmem:[#allocation10 + $0x108] sm:$0xff]
    %v490 = vld [vmem:[#allocation10 + $0x110] sm:$0xff]
    %v491 = vld [vmem:[#allocation10 + $0x118] sm:$0xff]
    %v492 = vld [vmem:[#allocation10 + $0x120] sm:$0xff]
    %v493 = vld [vmem:[#allocation10 + $0x128] sm:$0xff]
    %v494 = vld [vmem:[#allocation10 + $0x130] sm:$0xff]
    %v495 = vld [vmem:[#allocation10 + $0x138] sm:$0xff]
    %v496 = vld [vmem:[#allocation10 + $0x140] sm:$0xff]
    %v497 = vld [vmem:[#allocation10 + $0x148] sm:$0xff]
    %v498 = vld [vmem:[#allocation10 + $0x150] sm:$0xff]
    %v499 = vld [vmem:[#allocation10 + $0x158] sm:$0xff]
    %v500 = vld [vmem:[#allocation10 + $0x160] sm:$0xff]
    %v501 = vld [vmem:[#allocation10 + $0x168] sm:$0xff]
    %v502 = vld [vmem:[#allocation10 + $0x170] sm:$0xff]
    %v503 = vld [vmem:[#allocation10 + $0x178] sm:$0xff]
    %v504 = vld [vmem:[#allocation10 + $0x180] sm:$0xff]
    %v505 = vld [vmem:[#allocation10 + $0x188] sm:$0xff]
    %v506 = vld [vmem:[#allocation10 + $0x190] sm:$0xff]
    %v507 = vld [vmem:[#allocation10 + $0x198] sm:$0xff]
    %v508 = vld [vmem:[#allocation10 + $0x1a0] sm:$0xff]
    %v509 = vld [vmem:[#allocation10 + $0x1a8] sm:$0xff]
    %v510 = vld [vmem:[#allocation10 + $0x1b0] sm:$0xff]
    %v511 = vld [vmem:[#allocation10 + $0x1b8] sm:$0xff]
    %v512 = vld [vmem:[#allocation10 + $0x1c0] sm:$0xff]
    %v513 = vld [vmem:[#allocation10 + $0x1c8] sm:$0xff]
    %v514 = vld [vmem:[#allocation10 + $0x1d0] sm:$0xff]
    %v515 = vld [vmem:[#allocation10 + $0x1d8] sm:$0xff]
    %v516 = vld [vmem:[#allocation10 + $0x1e0] sm:$0xff]
    %v517 = vld [vmem:[#allocation10 + $0x1e8] sm:$0xff]
    %v518 = vld [vmem:[#allocation10 + $0x1f0] sm:$0xff]
    %v519 = vld [vmem:[#allocation10 + $0x1f8] sm:$0xff]
    %v520 = vld [vmem:[#allocation11] sm:$0xf]
    %v522 = vlaneseq
    %v523 = vshrl.u32 %v522, 7
    %v524 = vsub.s32 0, %v523
    %v525 = vrot.slane %v520, %v524
    %v526 = vlaneseq
    %v527 = vshrl.u32 %v526, 7
    %v528 = vsub.s32 1, %v527
    %v529 = vrot.slane %v520, %v528
    %v530 = vlaneseq
    %v531 = vshrl.u32 %v530, 7
    %v532 = vsub.s32 2, %v531
    %v533 = vrot.slane %v520, %v532
    %v534 = vlaneseq
    %v535 = vshrl.u32 %v534, 7
    %v536 = vsub.s32 3, %v535
    %v537 = vrot.slane %v520, %v536
    %v606 = vunpack.c.l.b16 %v456
    %v607 = vunpack.c.h.b16 %v456
    %v608 = vunpack.c.l.b16 %v457
    %v609 = vunpack.c.h.b16 %v457
    %v610 = vunpack.c.l.b16 %v458
    %v611 = vunpack.c.h.b16 %v458
    %v612 = vunpack.c.l.b16 %v459
    %v613 = vunpack.c.h.b16 %v459
    %v614 = vunpack.c.l.b16 %v460
    %v615 = vunpack.c.h.b16 %v460
    %v616 = vunpack.c.l.b16 %v461
    %v617 = vunpack.c.h.b16 %v461
    %v618 = vunpack.c.l.b16 %v462
    %v619 = vunpack.c.h.b16 %v462
    %v620 = vunpack.c.l.b16 %v463
    %v621 = vunpack.c.h.b16 %v463
    %v622 = vunpack.c.l.b16 %v464
    %v623 = vunpack.c.h.b16 %v464
    %v624 = vunpack.c.l.b16 %v465
    %v625 = vunpack.c.h.b16 %v465
    %v626 = vunpack.c.l.b16 %v466
    %v627 = vunpack.c.h.b16 %v466
    %v628 = vunpack.c.l.b16 %v467
    %v629 = vunpack.c.h.b16 %v467
    %v630 = vunpack.c.l.b16 %v468
    %v631 = vunpack.c.h.b16 %v468
    %v632 = vunpack.c.l.b16 %v469
    %v633 = vunpack.c.h.b16 %v469
    %v634 = vunpack.c.l.b16 %v470
    %v635 = vunpack.c.h.b16 %v470
    %v636 = vunpack.c.l.b16 %v471
    %v637 = vunpack.c.h.b16 %v471
    %v638 = vunpack.c.l.b16 %v472
    %v639 = vunpack.c.h.b16 %v472
    %v640 = vunpack.c.l.b16 %v473
    %v641 = vunpack.c.h.b16 %v473
    %v642 = vunpack.c.l.b16 %v474
    %v643 = vunpack.c.h.b16 %v474
    %v644 = vunpack.c.l.b16 %v475
    %v645 = vunpack.c.h.b16 %v475
    %v646 = vunpack.c.l.b16 %v476
    %v647 = vunpack.c.h.b16 %v476
    %v648 = vunpack.c.l.b16 %v477
    %v649 = vunpack.c.h.b16 %v477
    %v650 = vunpack.c.l.b16 %v478
    %v651 = vunpack.c.h.b16 %v478
    %v652 = vunpack.c.l.b16 %v479
    %v653 = vunpack.c.h.b16 %v479
    %v654 = vunpack.c.l.b16 %v480
    %v655 = vunpack.c.h.b16 %v480
    %v656 = vunpack.c.l.b16 %v481
    %v657 = vunpack.c.h.b16 %v481
    %v658 = vunpack.c.l.b16 %v482
    %v659 = vunpack.c.h.b16 %v482
    %v660 = vunpack.c.l.b16 %v483
    %v661 = vunpack.c.h.b16 %v483
    %v662 = vunpack.c.l.b16 %v484
    %v663 = vunpack.c.h.b16 %v484
    %v664 = vunpack.c.l.b16 %v485
    %v665 = vunpack.c.h.b16 %v485
    %v666 = vunpack.c.l.b16 %v486
    %v667 = vunpack.c.h.b16 %v486
    %v668 = vunpack.c.l.b16 %v487
    %v669 = vunpack.c.h.b16 %v487
    %v670 = vunpack.c.l.b16 %v488
    %v671 = vunpack.c.h.b16 %v488
    %v672 = vunpack.c.l.b16 %v489
    %v673 = vunpack.c.h.b16 %v489
    %v674 = vunpack.c.l.b16 %v490
    %v675 = vunpack.c.h.b16 %v490
    %v676 = vunpack.c.l.b16 %v491
    %v677 = vunpack.c.h.b16 %v491
    %v678 = vunpack.c.l.b16 %v492
    %v679 = vunpack.c.h.b16 %v492
    %v680 = vunpack.c.l.b16 %v493
    %v681 = vunpack.c.h.b16 %v493
    %v682 = vunpack.c.l.b16 %v494
    %v683 = vunpack.c.h.b16 %v494
    %v684 = vunpack.c.l.b16 %v495
    %v685 = vunpack.c.h.b16 %v495
    %v686 = vunpack.c.l.b16 %v496
    %v687 = vunpack.c.h.b16 %v496
    %v688 = vunpack.c.l.b16 %v497
    %v689 = vunpack.c.h.b16 %v497
    %v690 = vunpack.c.l.b16 %v498
    %v691 = vunpack.c.h.b16 %v498
    %v692 = vunpack.c.l.b16 %v499
    %v693 = vunpack.c.h.b16 %v499
    %v694 = vunpack.c.l.b16 %v500
    %v695 = vunpack.c.h.b16 %v500
    %v696 = vunpack.c.l.b16 %v501
    %v697 = vunpack.c.h.b16 %v501
    %v698 = vunpack.c.l.b16 %v502
    %v699 = vunpack.c.h.b16 %v502
    %v700 = vunpack.c.l.b16 %v503
    %v701 = vunpack.c.h.b16 %v503
    %v702 = vunpack.c.l.b16 %v504
    %v703 = vunpack.c.h.b16 %v504
    %v704 = vunpack.c.l.b16 %v505
    %v705 = vunpack.c.h.b16 %v505
    %v706 = vunpack.c.l.b16 %v506
    %v707 = vunpack.c.h.b16 %v506
    %v708 = vunpack.c.l.b16 %v507
    %v709 = vunpack.c.h.b16 %v507
    %v710 = vunpack.c.l.b16 %v508
    %v711 = vunpack.c.h.b16 %v508
    %v712 = vunpack.c.l.b16 %v509
    %v713 = vunpack.c.h.b16 %v509
    %v714 = vunpack.c.l.b16 %v510
    %v715 = vunpack.c.h.b16 %v510
    %v716 = vunpack.c.l.b16 %v511
    %v717 = vunpack.c.h.b16 %v511
    %v718 = vunpack.c.l.b16 %v512
    %v719 = vunpack.c.h.b16 %v512
    %v720 = vunpack.c.l.b16 %v513
    %v721 = vunpack.c.h.b16 %v513
    %v722 = vunpack.c.l.b16 %v514
    %v723 = vunpack.c.h.b16 %v514
    %v724 = vunpack.c.l.b16 %v515
    %v725 = vunpack.c.h.b16 %v515
    %v726 = vunpack.c.l.b16 %v516
    %v727 = vunpack.c.h.b16 %v516
    %v728 = vunpack.c.l.b16 %v517
    %v729 = vunpack.c.h.b16 %v517
    %v730 = vunpack.c.l.b16 %v518
    %v731 = vunpack.c.h.b16 %v518
    %v732 = vunpack.c.l.b16 %v519
    %v733 = vunpack.c.h.b16 %v519
    %v734 = vpack.c.b16 %v610, %v606
    %v735 = vpack.c.b16 %v611, %v607
    %v736 = vpack.c.b16 %v612, %v608
    %v737 = vpack.c.b16 %v613, %v609
    %v738 = vpack.c.b16 %v618, %v614
    %v739 = vpack.c.b16 %v619, %v615
    %v740 = vpack.c.b16 %v620, %v616
    %v741 = vpack.c.b16 %v621, %v617
    %v742 = vpack.c.b16 %v626, %v622
    %v743 = vpack.c.b16 %v627, %v623
    %v744 = vpack.c.b16 %v628, %v624
    %v745 = vpack.c.b16 %v629, %v625
    %v746 = vpack.c.b16 %v634, %v630
    %v747 = vpack.c.b16 %v635, %v631
    %v748 = vpack.c.b16 %v636, %v632
    %v749 = vpack.c.b16 %v637, %v633
    %v750 = vpack.c.b16 %v642, %v638
    %v751 = vpack.c.b16 %v643, %v639
    %v752 = vpack.c.b16 %v644, %v640
    %v753 = vpack.c.b16 %v645, %v641
    %v754 = vpack.c.b16 %v650, %v646
    %v755 = vpack.c.b16 %v651, %v647
    %v756 = vpack.c.b16 %v652, %v648
    %v757 = vpack.c.b16 %v653, %v649
    %v758 = vpack.c.b16 %v658, %v654
    %v759 = vpack.c.b16 %v659, %v655
    %v760 = vpack.c.b16 %v660, %v656
    %v761 = vpack.c.b16 %v661, %v657
    %v762 = vpack.c.b16 %v666, %v662
    %v763 = vpack.c.b16 %v667, %v663
    %v764 = vpack.c.b16 %v668, %v664
    %v765 = vpack.c.b16 %v669, %v665
    %v766 = vpack.c.b16 %v674, %v670
    %v767 = vpack.c.b16 %v675, %v671
    %v768 = vpack.c.b16 %v676, %v672
    %v769 = vpack.c.b16 %v677, %v673
    %v770 = vpack.c.b16 %v682, %v678
    %v771 = vpack.c.b16 %v683, %v679
    %v772 = vpack.c.b16 %v684, %v680
    %v773 = vpack.c.b16 %v685, %v681
    %v774 = vpack.c.b16 %v690, %v686
    %v775 = vpack.c.b16 %v691, %v687
    %v776 = vpack.c.b16 %v692, %v688
    %v777 = vpack.c.b16 %v693, %v689
    %v778 = vpack.c.b16 %v698, %v694
    %v779 = vpack.c.b16 %v699, %v695
    %v780 = vpack.c.b16 %v700, %v696
    %v781 = vpack.c.b16 %v701, %v697
    %v782 = vpack.c.b16 %v706, %v702
    %v783 = vpack.c.b16 %v707, %v703
    %v784 = vpack.c.b16 %v708, %v704
    %v785 = vpack.c.b16 %v709, %v705
    %v786 = vpack.c.b16 %v714, %v710
    %v787 = vpack.c.b16 %v715, %v711
    %v788 = vpack.c.b16 %v716, %v712
    %v789 = vpack.c.b16 %v717, %v713
    %v790 = vpack.c.b16 %v722, %v718
    %v791 = vpack.c.b16 %v723, %v719
    %v792 = vpack.c.b16 %v724, %v720
    %v793 = vpack.c.b16 %v725, %v721
    %v794 = vpack.c.b16 %v730, %v726
    %v795 = vpack.c.b16 %v731, %v727
    %v796 = vpack.c.b16 %v732, %v728
    %v797 = vpack.c.b16 %v733, %v729
    %862 = vmatprep.subr.bf16.mxu0 %v735
    %863 = vmatpush1.bf16.msra.mxu0 %v734
    %864 = vmatprep.subr.bf16.mxu0 %v739
    %865 = vmatpush1.bf16.msra.mxu0 %v738
    %866 = vmatprep.subr.bf16.mxu0 %v743
    %867 = vmatpush1.bf16.msra.mxu0 %v742
    %868 = vmatprep.subr.bf16.mxu0 %v747
    %869 = vmatpush1.bf16.msra.mxu0 %v746
    %870 = vmatprep.subr.bf16.mxu0 %v751
    %871 = vmatpush1.bf16.msra.mxu0 %v750
    %872 = vmatprep.subr.bf16.mxu0 %v755
    %873 = vmatpush1.bf16.msra.mxu0 %v754
    %874 = vmatprep.subr.bf16.mxu0 %v759
    %875 = vmatpush1.bf16.msra.mxu0 %v758
    %876 = vmatprep.subr.bf16.mxu0 %v763
    %877 = vmatpush1.bf16.msra.mxu0 %v762
    %878 = vmatprep.subr.bf16.mxu0 %v767
    %879 = vmatpush1.bf16.msra.mxu0 %v766
    %880 = vmatprep.subr.bf16.mxu0 %v771
    %881 = vmatpush1.bf16.msra.mxu0 %v770
    %882 = vmatprep.subr.bf16.mxu0 %v775
    %883 = vmatpush1.bf16.msra.mxu0 %v774
    %884 = vmatprep.subr.bf16.mxu0 %v779
    %885 = vmatpush1.bf16.msra.mxu0 %v778
    %886 = vmatprep.subr.bf16.mxu0 %v783
    %887 = vmatpush1.bf16.msra.mxu0 %v782
    %888 = vmatprep.subr.bf16.mxu0 %v787
    %889 = vmatpush1.bf16.msra.mxu0 %v786
    %890 = vmatprep.subr.bf16.mxu0 %v791
    %891 = vmatpush1.bf16.msra.mxu0 %v790
    %892 = vmatprep.subr.bf16.mxu0 %v795
    %893 = vmatpush1.bf16.msra.mxu0 %v794
    %894 = vmatprep.mubr.bf16.mxu0 %v153
    %895 = vmatmul.mubr.bf16.gmra.mrb[0].mxu0 %v152
    %v896 = vpop.f32.mrb[0].mxu0
    %v897 = vadd.f32 %v525, %v896
    %v898 = vpop.f32.mrb[0].mxu0
    %v899 = vadd.f32 %v529, %v898
    %v900 = vpop.f32.mrb[0].mxu0
    %v901 = vadd.f32 %v525, %v900
    %v902 = vpop.f32.mrb[0].mxu0
    %v903 = vadd.f32 %v529, %v902
    %904 = vdwg.mxu0
    %905 = vmatprep.subr.bf16.mxu0 %v737
    %906 = vmatpush1.bf16.msra.mxu0 %v736
    %907 = vmatprep.subr.bf16.mxu0 %v741
    %908 = vmatpush1.bf16.msra.mxu0 %v740
    %909 = vmatprep.subr.bf16.mxu0 %v745
    %910 = vmatpush1.bf16.msra.mxu0 %v744
    %911 = vmatprep.subr.bf16.mxu0 %v749
    %912 = vmatpush1.bf16.msra.mxu0 %v748
    %913 = vmatprep.subr.bf16.mxu0 %v753
    %914 = vmatpush1.bf16.msra.mxu0 %v752
    %915 = vmatprep.subr.bf16.mxu0 %v757
    %916 = vmatpush1.bf16.msra.mxu0 %v756
    %917 = vmatprep.subr.bf16.mxu0 %v761
    %918 = vmatpush1.bf16.msra.mxu0 %v760
    %919 = vmatprep.subr.bf16.mxu0 %v765
    %920 = vmatpush1.bf16.msra.mxu0 %v764
    %921 = vmatprep.subr.bf16.mxu0 %v769
    %922 = vmatpush1.bf16.msra.mxu0 %v768
    %923 = vmatprep.subr.bf16.mxu0 %v773
    %924 = vmatpush1.bf16.msra.mxu0 %v772
    %925 = vmatprep.subr.bf16.mxu0 %v777
    %926 = vmatpush1.bf16.msra.mxu0 %v776
    %927 = vmatprep.subr.bf16.mxu0 %v781
    %928 = vmatpush1.bf16.msra.mxu0 %v780
    %929 = vmatprep.subr.bf16.mxu0 %v785
    %930 = vmatpush1.bf16.msra.mxu0 %v784
    %931 = vmatprep.subr.bf16.mxu0 %v789
    %932 = vmatpush1.bf16.msra.mxu0 %v788
    %933 = vmatprep.subr.bf16.mxu0 %v793
    %934 = vmatpush1.bf16.msra.mxu0 %v792
    %935 = vmatprep.subr.bf16.mxu0 %v797
    %936 = vmatpush1.bf16.msra.mxu0 %v796
    %937 = vmatprep.mubr.bf16.mxu0 %v153
    %938 = vmatmul.mubr.bf16.gmra.mrb[0].mxu0 %v152
    %v939 = vpop.f32.mrb[0].mxu0
    %v940 = vadd.f32 %v533, %v939
    %v941 = vpop.f32.mrb[0].mxu0
    %v942 = vadd.f32 %v537, %v941
    %v943 = vpop.f32.mrb[0].mxu0
    %v944 = vadd.f32 %v533, %v943
    %v945 = vpop.f32.mrb[0].mxu0
    %v946 = vadd.f32 %v537, %v945
    %947 = vdwg.mxu0
    %v948 = vmax.f32 %v897, 0.0
    %v949 = vmax.f32 %v899, 0.0
    %v950 = vmax.f32 %v940, 0.0
    %v951 = vmax.f32 %v942, 0.0
    %v952 = vmax.f32 %v901, 0.0
    %v953 = vmax.f32 %v903, 0.0
    %v954 = vmax.f32 %v944, 0.0
    %v955 = vmax.f32 %v946, 0.0
    %v956 = vpack.c.bf16 %v952, %v948
    %v957 = vpack.c.bf16 %v953, %v949
    %v958 = vpack.c.bf16 %v954, %v950
    %v959 = vpack.c.bf16 %v955, %v951
    %v960 = vld [vmem:[#allocation13] sm:$0xff]
    %v961 = vld [vmem:[#allocation13 + $0x8] sm:$0xff]
    %v962 = vld [vmem:[#allocation13 + $0x10] sm:$0xff]
    %v963 = vld [vmem:[#allocation13 + $0x18] sm:$0xff]
    %v964 = vld [vmem:[#allocation13 + $0x20] sm:$0xff]
    %v965 = vld [vmem:[#allocation13 + $0x28] sm:$0xff]
    %v966 = vld [vmem:[#allocation13 + $0x30] sm:$0xff]
    %v967 = vld [vmem:[#allocation13 + $0x38] sm:$0xff]
    %v968 = vld [vmem:[#allocation13 + $0x40] sm:$0xff]
    %v969 = vld [vmem:[#allocation13 + $0x48] sm:$0xff]
    %v970 = vld [vmem:[#allocation13 + $0x50] sm:$0xff]
    %v971 = vld [vmem:[#allocation13 + $0x58] sm:$0xff]
    %v972 = vld [vmem:[#allocation13 + $0x60] sm:$0xff]
    %v973 = vld [vmem:[#allocation13 + $0x68] sm:$0xff]
    %v974 = vld [vmem:[#allocation13 + $0x70] sm:$0xff]
    %v975 = vld [vmem:[#allocation13 + $0x78] sm:$0xff]
    %v976 = vld [vmem:[#allocation13 + $0x80] sm:$0xff]
    %v977 = vld [vmem:[#allocation13 + $0x88] sm:$0xff]
    %v978 = vld [vmem:[#allocation13 + $0x90] sm:$0xff]
    %v979 = vld [vmem:[#allocation13 + $0x98] sm:$0xff]
    %v980 = vld [vmem:[#allocation13 + $0xa0] sm:$0xff]
    %v981 = vld [vmem:[#allocation13 + $0xa8] sm:$0xff]
    %v982 = vld [vmem:[#allocation13 + $0xb0] sm:$0xff]
    %v983 = vld [vmem:[#allocation13 + $0xb8] sm:$0xff]
    %v984 = vld [vmem:[#allocation13 + $0xc0] sm:$0xff]
    %v985 = vld [vmem:[#allocation13 + $0xc8] sm:$0xff]
    %v986 = vld [vmem:[#allocation13 + $0xd0] sm:$0xff]
    %v987 = vld [vmem:[#allocation13 + $0xd8] sm:$0xff]
    %v988 = vld [vmem:[#allocation13 + $0xe0] sm:$0xff]
    %v989 = vld [vmem:[#allocation13 + $0xe8] sm:$0xff]
    %v990 = vld [vmem:[#allocation13 + $0xf0] sm:$0xff]
    %v991 = vld [vmem:[#allocation13 + $0xf8] sm:$0xff]
    %v992 = vld [vmem:[#allocation13 + $0x100] sm:$0xff]
    %v993 = vld [vmem:[#allocation13 + $0x108] sm:$0xff]
    %v994 = vld [vmem:[#allocation13 + $0x110] sm:$0xff]
    %v995 = vld [vmem:[#allocation13 + $0x118] sm:$0xff]
    %v996 = vld [vmem:[#allocation13 + $0x120] sm:$0xff]
    %v997 = vld [vmem:[#allocation13 + $0x128] sm:$0xff]
    %v998 = vld [vmem:[#allocation13 + $0x130] sm:$0xff]
    %v999 = vld [vmem:[#allocation13 + $0x138] sm:$0xff]
    %v1000 = vld [vmem:[#allocation13 + $0x140] sm:$0xff]
    %v1001 = vld [vmem:[#allocation13 + $0x148] sm:$0xff]
    %v1002 = vld [vmem:[#allocation13 + $0x150] sm:$0xff]
    %v1003 = vld [vmem:[#allocation13 + $0x158] sm:$0xff]
    %v1004 = vld [vmem:[#allocation13 + $0x160] sm:$0xff]
    %v1005 = vld [vmem:[#allocation13 + $0x168] sm:$0xff]
    %v1006 = vld [vmem:[#allocation13 + $0x170] sm:$0xff]
    %v1007 = vld [vmem:[#allocation13 + $0x178] sm:$0xff]
    %v1008 = vld [vmem:[#allocation13 + $0x180] sm:$0xff]
    %v1009 = vld [vmem:[#allocation13 + $0x188] sm:$0xff]
    %v1010 = vld [vmem:[#allocation13 + $0x190] sm:$0xff]
    %v1011 = vld [vmem:[#allocation13 + $0x198] sm:$0xff]
    %v1012 = vld [vmem:[#allocation13 + $0x1a0] sm:$0xff]
    %v1013 = vld [vmem:[#allocation13 + $0x1a8] sm:$0xff]
    %v1014 = vld [vmem:[#allocation13 + $0x1b0] sm:$0xff]
    %v1015 = vld [vmem:[#allocation13 + $0x1b8] sm:$0xff]
    %v1016 = vld [vmem:[#allocation13 + $0x1c0] sm:$0xff]
    %v1017 = vld [vmem:[#allocation13 + $0x1c8] sm:$0xff]
    %v1018 = vld [vmem:[#allocation13 + $0x1d0] sm:$0xff]
    %v1019 = vld [vmem:[#allocation13 + $0x1d8] sm:$0xff]
    %v1020 = vld [vmem:[#allocation13 + $0x1e0] sm:$0xff]
    %v1021 = vld [vmem:[#allocation13 + $0x1e8] sm:$0xff]
    %v1022 = vld [vmem:[#allocation13 + $0x1f0] sm:$0xff]
    %v1023 = vld [vmem:[#allocation13 + $0x1f8] sm:$0xff]
    %v1024 = vld [vmem:[#allocation14] sm:$0x3]
    %v1026 = vlaneseq
    %v1027 = vshrl.u32 %v1026, 7
    %v1028 = vsub.s32 0, %v1027
    %v1029 = vrot.slane %v1024, %v1028
    %v1030 = vlaneseq
    %v1031 = vshrl.u32 %v1030, 7
    %v1032 = vsub.s32 1, %v1031
    %v1033 = vrot.slane %v1024, %v1032
    %v1100 = vunpack.c.l.b16 %v960
    %v1101 = vunpack.c.h.b16 %v960
    %v1102 = vunpack.c.l.b16 %v961
    %v1103 = vunpack.c.h.b16 %v961
    %v1104 = vunpack.c.l.b16 %v962
    %v1105 = vunpack.c.h.b16 %v962
    %v1106 = vunpack.c.l.b16 %v963
    %v1107 = vunpack.c.h.b16 %v963
    %v1108 = vunpack.c.l.b16 %v964
    %v1109 = vunpack.c.h.b16 %v964
    %v1110 = vunpack.c.l.b16 %v965
    %v1111 = vunpack.c.h.b16 %v965
    %v1112 = vunpack.c.l.b16 %v966
    %v1113 = vunpack.c.h.b16 %v966
    %v1114 = vunpack.c.l.b16 %v967
    %v1115 = vunpack.c.h.b16 %v967
    %v1116 = vunpack.c.l.b16 %v968
    %v1117 = vunpack.c.h.b16 %v968
    %v1118 = vunpack.c.l.b16 %v969
    %v1119 = vunpack.c.h.b16 %v969
    %v1120 = vunpack.c.l.b16 %v970
    %v1121 = vunpack.c.h.b16 %v970
    %v1122 = vunpack.c.l.b16 %v971
    %v1123 = vunpack.c.h.b16 %v971
    %v1124 = vunpack.c.l.b16 %v972
    %v1125 = vunpack.c.h.b16 %v972
    %v1126 = vunpack.c.l.b16 %v973
    %v1127 = vunpack.c.h.b16 %v973
    %v1128 = vunpack.c.l.b16 %v974
    %v1129 = vunpack.c.h.b16 %v974
    %v1130 = vunpack.c.l.b16 %v975
    %v1131 = vunpack.c.h.b16 %v975
    %v1132 = vunpack.c.l.b16 %v976
    %v1133 = vunpack.c.h.b16 %v976
    %v1134 = vunpack.c.l.b16 %v977
    %v1135 = vunpack.c.h.b16 %v977
    %v1136 = vunpack.c.l.b16 %v978
    %v1137 = vunpack.c.h.b16 %v978
    %v1138 = vunpack.c.l.b16 %v979
    %v1139 = vunpack.c.h.b16 %v979
    %v1140 = vunpack.c.l.b16 %v980
    %v1141 = vunpack.c.h.b16 %v980
    %v1142 = vunpack.c.l.b16 %v981
    %v1143 = vunpack.c.h.b16 %v981
    %v1144 = vunpack.c.l.b16 %v982
    %v1145 = vunpack.c.h.b16 %v982
    %v1146 = vunpack.c.l.b16 %v983
    %v1147 = vunpack.c.h.b16 %v983
    %v1148 = vunpack.c.l.b16 %v984
    %v1149 = vunpack.c.h.b16 %v984
    %v1150 = vunpack.c.l.b16 %v985
    %v1151 = vunpack.c.h.b16 %v985
    %v1152 = vunpack.c.l.b16 %v986
    %v1153 = vunpack.c.h.b16 %v986
    %v1154 = vunpack.c.l.b16 %v987
    %v1155 = vunpack.c.h.b16 %v987
    %v1156 = vunpack.c.l.b16 %v988
    %v1157 = vunpack.c.h.b16 %v988
    %v1158 = vunpack.c.l.b16 %v989
    %v1159 = vunpack.c.h.b16 %v989
    %v1160 = vunpack.c.l.b16 %v990
    %v1161 = vunpack.c.h.b16 %v990
    %v1162 = vunpack.c.l.b16 %v991
    %v1163 = vunpack.c.h.b16 %v991
    %v1164 = vunpack.c.l.b16 %v992
    %v1165 = vunpack.c.h.b16 %v992
    %v1166 = vunpack.c.l.b16 %v993
    %v1167 = vunpack.c.h.b16 %v993
    %v1168 = vunpack.c.l.b16 %v994
    %v1169 = vunpack.c.h.b16 %v994
    %v1170 = vunpack.c.l.b16 %v995
    %v1171 = vunpack.c.h.b16 %v995
    %v1172 = vunpack.c.l.b16 %v996
    %v1173 = vunpack.c.h.b16 %v996
    %v1174 = vunpack.c.l.b16 %v997
    %v1175 = vunpack.c.h.b16 %v997
    %v1176 = vunpack.c.l.b16 %v998
    %v1177 = vunpack.c.h.b16 %v998
    %v1178 = vunpack.c.l.b16 %v999
    %v1179 = vunpack.c.h.b16 %v999
    %v1180 = vunpack.c.l.b16 %v1000
    %v1181 = vunpack.c.h.b16 %v1000
    %v1182 = vunpack.c.l.b16 %v1001
    %v1183 = vunpack.c.h.b16 %v1001
    %v1184 = vunpack.c.l.b16 %v1002
    %v1185 = vunpack.c.h.b16 %v1002
    %v1186 = vunpack.c.l.b16 %v1003
    %v1187 = vunpack.c.h.b16 %v1003
    %v1188 = vunpack.c.l.b16 %v1004
    %v1189 = vunpack.c.h.b16 %v1004
    %v1190 = vunpack.c.l.b16 %v1005
    %v1191 = vunpack.c.h.b16 %v1005
    %v1192 = vunpack.c.l.b16 %v1006
    %v1193 = vunpack.c.h.b16 %v1006
    %v1194 = vunpack.c.l.b16 %v1007
    %v1195 = vunpack.c.h.b16 %v1007
    %v1196 = vunpack.c.l.b16 %v1008
    %v1197 = vunpack.c.h.b16 %v1008
    %v1198 = vunpack.c.l.b16 %v1009
    %v1199 = vunpack.c.h.b16 %v1009
    %v1200 = vunpack.c.l.b16 %v1010
    %v1201 = vunpack.c.h.b16 %v1010
    %v1202 = vunpack.c.l.b16 %v1011
    %v1203 = vunpack.c.h.b16 %v1011
    %v1204 = vunpack.c.l.b16 %v1012
    %v1205 = vunpack.c.h.b16 %v1012
    %v1206 = vunpack.c.l.b16 %v1013
    %v1207 = vunpack.c.h.b16 %v1013
    %v1208 = vunpack.c.l.b16 %v1014
    %v1209 = vunpack.c.h.b16 %v1014
    %v1210 = vunpack.c.l.b16 %v1015
    %v1211 = vunpack.c.h.b16 %v1015
    %v1212 = vunpack.c.l.b16 %v1016
    %v1213 = vunpack.c.h.b16 %v1016
    %v1214 = vunpack.c.l.b16 %v1017
    %v1215 = vunpack.c.h.b16 %v1017
    %v1216 = vunpack.c.l.b16 %v1018
    %v1217 = vunpack.c.h.b16 %v1018
    %v1218 = vunpack.c.l.b16 %v1019
    %v1219 = vunpack.c.h.b16 %v1019
    %v1220 = vunpack.c.l.b16 %v1020
    %v1221 = vunpack.c.h.b16 %v1020
    %v1222 = vunpack.c.l.b16 %v1021
    %v1223 = vunpack.c.h.b16 %v1021
    %v1224 = vunpack.c.l.b16 %v1022
    %v1225 = vunpack.c.h.b16 %v1022
    %v1226 = vunpack.c.l.b16 %v1023
    %v1227 = vunpack.c.h.b16 %v1023
    %v1228 = vpack.c.b16 %v1102, %v1100
    %v1229 = vpack.c.b16 %v1103, %v1101
    %v1230 = vpack.c.b16 %v1106, %v1104
    %v1231 = vpack.c.b16 %v1107, %v1105
    %v1232 = vpack.c.b16 %v1110, %v1108
    %v1233 = vpack.c.b16 %v1111, %v1109
    %v1234 = vpack.c.b16 %v1114, %v1112
    %v1235 = vpack.c.b16 %v1115, %v1113
    %v1236 = vpack.c.b16 %v1118, %v1116
    %v1237 = vpack.c.b16 %v1119, %v1117
    %v1238 = vpack.c.b16 %v1122, %v1120
    %v1239 = vpack.c.b16 %v1123, %v1121
    %v1240 = vpack.c.b16 %v1126, %v1124
    %v1241 = vpack.c.b16 %v1127, %v1125
    %v1242 = vpack.c.b16 %v1130, %v1128
    %v1243 = vpack.c.b16 %v1131, %v1129
    %v1244 = vpack.c.b16 %v1134, %v1132
    %v1245 = vpack.c.b16 %v1135, %v1133
    %v1246 = vpack.c.b16 %v1138, %v1136
    %v1247 = vpack.c.b16 %v1139, %v1137
    %v1248 = vpack.c.b16 %v1142, %v1140
    %v1249 = vpack.c.b16 %v1143, %v1141
    %v1250 = vpack.c.b16 %v1146, %v1144
    %v1251 = vpack.c.b16 %v1147, %v1145
    %v1252 = vpack.c.b16 %v1150, %v1148
    %v1253 = vpack.c.b16 %v1151, %v1149
    %v1254 = vpack.c.b16 %v1154, %v1152
    %v1255 = vpack.c.b16 %v1155, %v1153
    %v1256 = vpack.c.b16 %v1158, %v1156
    %v1257 = vpack.c.b16 %v1159, %v1157
    %v1258 = vpack.c.b16 %v1162, %v1160
    %v1259 = vpack.c.b16 %v1163, %v1161
    %v1260 = vpack.c.b16 %v1166, %v1164
    %v1261 = vpack.c.b16 %v1167, %v1165
    %v1262 = vpack.c.b16 %v1170, %v1168
    %v1263 = vpack.c.b16 %v1171, %v1169
    %v1264 = vpack.c.b16 %v1174, %v1172
    %v1265 = vpack.c.b16 %v1175, %v1173
    %v1266 = vpack.c.b16 %v1178, %v1176
    %v1267 = vpack.c.b16 %v1179, %v1177
    %v1268 = vpack.c.b16 %v1182, %v1180
    %v1269 = vpack.c.b16 %v1183, %v1181
    %v1270 = vpack.c.b16 %v1186, %v1184
    %v1271 = vpack.c.b16 %v1187, %v1185
    %v1272 = vpack.c.b16 %v1190, %v1188
    %v1273 = vpack.c.b16 %v1191, %v1189
    %v1274 = vpack.c.b16 %v1194, %v1192
    %v1275 = vpack.c.b16 %v1195, %v1193
    %v1276 = vpack.c.b16 %v1198, %v1196
    %v1277 = vpack.c.b16 %v1199, %v1197
    %v1278 = vpack.c.b16 %v1202, %v1200
    %v1279 = vpack.c.b16 %v1203, %v1201
    %v1280 = vpack.c.b16 %v1206, %v1204
    %v1281 = vpack.c.b16 %v1207, %v1205
    %v1282 = vpack.c.b16 %v1210, %v1208
    %v1283 = vpack.c.b16 %v1211, %v1209
    %v1284 = vpack.c.b16 %v1214, %v1212
    %v1285 = vpack.c.b16 %v1215, %v1213
    %v1286 = vpack.c.b16 %v1218, %v1216
    %v1287 = vpack.c.b16 %v1219, %v1217
    %v1288 = vpack.c.b16 %v1222, %v1220
    %v1289 = vpack.c.b16 %v1223, %v1221
    %v1290 = vpack.c.b16 %v1226, %v1224
    %v1291 = vpack.c.b16 %v1227, %v1225
    %1356 = vmatprep.subr.bf16.mxu0 %v1229
    %1357 = vmatpush1.bf16.msra.mxu0 %v1228
    %1358 = vmatprep.subr.bf16.mxu0 %v1231
    %1359 = vmatpush1.bf16.msra.mxu0 %v1230
    %1360 = vmatprep.subr.bf16.mxu0 %v1233
    %1361 = vmatpush1.bf16.msra.mxu0 %v1232
    %1362 = vmatprep.subr.bf16.mxu0 %v1235
    %1363 = vmatpush1.bf16.msra.mxu0 %v1234
    %1364 = vmatprep.subr.bf16.mxu0 %v1237
    %1365 = vmatpush1.bf16.msra.mxu0 %v1236
    %1366 = vmatprep.subr.bf16.mxu0 %v1239
    %1367 = vmatpush1.bf16.msra.mxu0 %v1238
    %1368 = vmatprep.subr.bf16.mxu0 %v1241
    %1369 = vmatpush1.bf16.msra.mxu0 %v1240
    %1370 = vmatprep.subr.bf16.mxu0 %v1243
    %1371 = vmatpush1.bf16.msra.mxu0 %v1242
    %1372 = vmatprep.subr.bf16.mxu0 %v1245
    %1373 = vmatpush1.bf16.msra.mxu0 %v1244
    %1374 = vmatprep.subr.bf16.mxu0 %v1247
    %1375 = vmatpush1.bf16.msra.mxu0 %v1246
    %1376 = vmatprep.subr.bf16.mxu0 %v1249
    %1377 = vmatpush1.bf16.msra.mxu0 %v1248
    %1378 = vmatprep.subr.bf16.mxu0 %v1251
    %1379 = vmatpush1.bf16.msra.mxu0 %v1250
    %1380 = vmatprep.subr.bf16.mxu0 %v1253
    %1381 = vmatpush1.bf16.msra.mxu0 %v1252
    %1382 = vmatprep.subr.bf16.mxu0 %v1255
    %1383 = vmatpush1.bf16.msra.mxu0 %v1254
    %1384 = vmatprep.subr.bf16.mxu0 %v1257
    %1385 = vmatpush1.bf16.msra.mxu0 %v1256
    %1386 = vmatprep.subr.bf16.mxu0 %v1259
    %1387 = vmatpush1.bf16.msra.mxu0 %v1258
    %1388 = vmatprep.mubr.bf16.mxu0 %v957
    %1389 = vmatmul.mubr.bf16.gmra.mrb[0].mxu0 %v956
    %v1390 = vpop.f32.mrb[0].mxu0
    %v1391 = vadd.f32 %v1029, %v1390
    %v1392 = vpop.f32.mrb[0].mxu0
    %v1393 = vadd.f32 %v1033, %v1392
    %v1394 = vpop.f32.mrb[0].mxu0
    %v1395 = vadd.f32 %v1029, %v1394
    %v1396 = vpop.f32.mrb[0].mxu0
    %v1397 = vadd.f32 %v1033, %v1396
    %1398 = vdwg.mxu0
    %1399 = vmatprep.subr.bf16.mxu0 %v1261
    %1400 = vmatpush1.bf16.msra.mxu0 %v1260
    %1401 = vmatprep.subr.bf16.mxu0 %v1263
    %1402 = vmatpush1.bf16.msra.mxu0 %v1262
    %1403 = vmatprep.subr.bf16.mxu0 %v1265
    %1404 = vmatpush1.bf16.msra.mxu0 %v1264
    %1405 = vmatprep.subr.bf16.mxu0 %v1267
    %1406 = vmatpush1.bf16.msra.mxu0 %v1266
    %1407 = vmatprep.subr.bf16.mxu0 %v1269
    %1408 = vmatpush1.bf16.msra.mxu0 %v1268
    %1409 = vmatprep.subr.bf16.mxu0 %v1271
    %1410 = vmatpush1.bf16.msra.mxu0 %v1270
    %1411 = vmatprep.subr.bf16.mxu0 %v1273
    %1412 = vmatpush1.bf16.msra.mxu0 %v1272
    %1413 = vmatprep.subr.bf16.mxu0 %v1275
    %1414 = vmatpush1.bf16.msra.mxu0 %v1274
    %1415 = vmatprep.subr.bf16.mxu0 %v1277
    %1416 = vmatpush1.bf16.msra.mxu0 %v1276
    %1417 = vmatprep.subr.bf16.mxu0 %v1279
    %1418 = vmatpush1.bf16.msra.mxu0 %v1278
    %1419 = vmatprep.subr.bf16.mxu0 %v1281
    %1420 = vmatpush1.bf16.msra.mxu0 %v1280
    %1421 = vmatprep.subr.bf16.mxu0 %v1283
    %1422 = vmatpush1.bf16.msra.mxu0 %v1282
    %1423 = vmatprep.subr.bf16.mxu0 %v1285
    %1424 = vmatpush1.bf16.msra.mxu0 %v1284
    %1425 = vmatprep.subr.bf16.mxu0 %v1287
    %1426 = vmatpush1.bf16.msra.mxu0 %v1286
    %1427 = vmatprep.subr.bf16.mxu0 %v1289
    %1428 = vmatpush1.bf16.msra.mxu0 %v1288
    %1429 = vmatprep.subr.bf16.mxu0 %v1291
    %1430 = vmatpush1.bf16.msra.mxu0 %v1290
    %1431 = vmatprep.mubr.bf16.mxu0 %v959
    %1432 = vmatmul.mubr.bf16.gmra.mrb[0].mxu0 %v958
    %v1433 = vpop.f32.mrb[0].mxu0
    %v1434 = vadd.f32 %v1391, %v1433
    %v1435 = vpop.f32.mrb[0].mxu0
    %v1436 = vadd.f32 %v1393, %v1435
    %v1437 = vpop.f32.mrb[0].mxu0
    %v1438 = vadd.f32 %v1395, %v1437
    %v1439 = vpop.f32.mrb[0].mxu0
    %v1440 = vadd.f32 %v1397, %v1439
    %1441 = vdwg.mxu0
    %v1442 = vld [vmem:[#allocation2] sm:$0xff]
    %v1443 = vld [vmem:[#allocation2 + $0x8] sm:$0xff]
    %v1444 = vld [vmem:[#allocation2 + $0x10] sm:$0xff]
    %v1445 = vld [vmem:[#allocation2 + $0x18] sm:$0xff]
    %1447 = vset.pattern.permute.xlu0 0
    %1448 = vperm.xlu0 %1447, %v413
    %v1449 = vpop.permute.xlu0 %1448
    %1452 = vset.pattern.permute.xlu0 0
    %1453 = vperm.xlu0 %1452, %v415
    %v1454 = vpop.permute.xlu0 %1453
    %v1456 = vmul.f32 %v1449, %v1434
    %v1457 = vmul.f32 %v1449, %v1436
    %v1458 = vmul.f32 %v1454, %v1438
    %v1459 = vmul.f32 %v1454, %v1440
    %v1460 = vadd.f32 %v1442, %v1456
    %v1461 = vadd.f32 %v1443, %v1457
    %v1462 = vadd.f32 %v1444, %v1458
    %v1463 = vadd.f32 %v1445, %v1459
    %1464 = vst [vmem:[#allocation2] sm:$0xff] %v1460
    %1465 = vst [vmem:[#allocation2 + $0x8] sm:$0xff] %v1461
    %1466 = vst [vmem:[#allocation2 + $0x10] sm:$0xff] %v1462
    %1467 = vst [vmem:[#allocation2 + $0x18] sm:$0xff] %v1463
    %s1468 = scalar_lea.vmem [#allocation10], 512
    %v1469 = vld [vmem:[%s1468] sm:$0xff]
    %v1470 = vld [vmem:[%s1468 + $0x8] sm:$0xff]
    %v1471 = vld [vmem:[%s1468 + $0x10] sm:$0xff]
    %v1472 = vld [vmem:[%s1468 + $0x18] sm:$0xff]
    %v1473 = vld [vmem:[%s1468 + $0x20] sm:$0xff]
    %v1474 = vld [vmem:[%s1468 + $0x28] sm:$0xff]
    %v1475 = vld [vmem:[%s1468 + $0x30] sm:$0xff]
    %v1476 = vld [vmem:[%s1468 + $0x38] sm:$0xff]
    %v1477 = vld [vmem:[%s1468 + $0x40] sm:$0xff]
    %v1478 = vld [vmem:[%s1468 + $0x48] sm:$0xff]
    %v1479 = vld [vmem:[%s1468 + $0x50] sm:$0xff]
    %v1480 = vld [vmem:[%s1468 + $0x58] sm:$0xff]
    %v1481 = vld [vmem:[%s1468 + $0x60] sm:$0xff]
    %v1482 = vld [vmem:[%s1468 + $0x68] sm:$0xff]
    %v1483 = vld [vmem:[%s1468 + $0x70] sm:$0xff]
    %v1484 = vld [vmem:[%s1468 + $0x78] sm:$0xff]
    %v1485 = vld [vmem:[%s1468 + $0x80] sm:$0xff]
    %v1486 = vld [vmem:[%s1468 + $0x88] sm:$0xff]
    %v1487 = vld [vmem:[%s1468 + $0x90] sm:$0xff]
    %v1488 = vld [vmem:[%s1468 + $0x98] sm:$0xff]
    %v1489 = vld [vmem:[%s1468 + $0xa0] sm:$0xff]
    %v1490 = vld [vmem:[%s1468 + $0xa8] sm:$0xff]
    %v1491 = vld [vmem:[%s1468 + $0xb0] sm:$0xff]
    %v1492 = vld [vmem:[%s1468 + $0xb8] sm:$0xff]
    %v1493 = vld [vmem:[%s1468 + $0xc0] sm:$0xff]
    %v1494 = vld [vmem:[%s1468 + $0xc8] sm:$0xff]
    %v1495 = vld [vmem:[%s1468 + $0xd0] sm:$0xff]
    %v1496 = vld [vmem:[%s1468 + $0xd8] sm:$0xff]
    %v1497 = vld [vmem:[%s1468 + $0xe0] sm:$0xff]
    %v1498 = vld [vmem:[%s1468 + $0xe8] sm:$0xff]
    %v1499 = vld [vmem:[%s1468 + $0xf0] sm:$0xff]
    %v1500 = vld [vmem:[%s1468 + $0xf8] sm:$0xff]
    %v1501 = vld [vmem:[%s1468 + $0x100] sm:$0xff]
    %v1502 = vld [vmem:[%s1468 + $0x108] sm:$0xff]
    %v1503 = vld [vmem:[%s1468 + $0x110] sm:$0xff]
    %v1504 = vld [vmem:[%s1468 + $0x118] sm:$0xff]
    %v1505 = vld [vmem:[%s1468 + $0x120] sm:$0xff]
    %v1506 = vld [vmem:[%s1468 + $0x128] sm:$0xff]
    %v1507 = vld [vmem:[%s1468 + $0x130] sm:$0xff]
    %v1508 = vld [vmem:[%s1468 + $0x138] sm:$0xff]
    %v1509 = vld [vmem:[%s1468 + $0x140] sm:$0xff]
    %v1510 = vld [vmem:[%s1468 + $0x148] sm:$0xff]
    %v1511 = vld [vmem:[%s1468 + $0x150] sm:$0xff]
    %v1512 = vld [vmem:[%s1468 + $0x158] sm:$0xff]
    %v1513 = vld [vmem:[%s1468 + $0x160] sm:$0xff]
    %v1514 = vld [vmem:[%s1468 + $0x168] sm:$0xff]
    %v1515 = vld [vmem:[%s1468 + $0x170] sm:$0xff]
    %v1516 = vld [vmem:[%s1468 + $0x178] sm:$0xff]
    %v1517 = vld [vmem:[%s1468 + $0x180] sm:$0xff]
    %v1518 = vld [vmem:[%s1468 + $0x188] sm:$0xff]
    %v1519 = vld [vmem:[%s1468 + $0x190] sm:$0xff]
    %v1520 = vld [vmem:[%s1468 + $0x198] sm:$0xff]
    %v1521 = vld [vmem:[%s1468 + $0x1a0] sm:$0xff]
    %v1522 = vld [vmem:[%s1468 + $0x1a8] sm:$0xff]
    %v1523 = vld [vmem:[%s1468 + $0x1b0] sm:$0xff]
    %v1524 = vld [vmem:[%s1468 + $0x1b8] sm:$0xff]
    %v1525 = vld [vmem:[%s1468 + $0x1c0] sm:$0xff]
    %v1526 = vld [vmem:[%s1468 + $0x1c8] sm:$0xff]
    %v1527 = vld [vmem:[%s1468 + $0x1d0] sm:$0xff]
    %v1528 = vld [vmem:[%s1468 + $0x1d8] sm:$0xff]
    %v1529 = vld [vmem:[%s1468 + $0x1e0] sm:$0xff]
    %v1530 = vld [vmem:[%s1468 + $0x1e8] sm:$0xff]
    %v1531 = vld [vmem:[%s1468 + $0x1f0] sm:$0xff]
    %v1532 = vld [vmem:[%s1468 + $0x1f8] sm:$0xff]
    %s1533 = scalar_lea.vmem [#allocation11], 4
    %v1534 = vld [vmem:[%s1533] sm:$0xf]
    %v1536 = vlaneseq
    %v1537 = vshrl.u32 %v1536, 7
    %v1538 = vsub.s32 0, %v1537
    %v1539 = vrot.slane %v1534, %v1538
    %v1540 = vlaneseq
    %v1541 = vshrl.u32 %v1540, 7
    %v1542 = vsub.s32 1, %v1541
    %v1543 = vrot.slane %v1534, %v1542
    %v1544 = vlaneseq
    %v1545 = vshrl.u32 %v1544, 7
    %v1546 = vsub.s32 2, %v1545
    %v1547 = vrot.slane %v1534, %v1546
    %v1548 = vlaneseq
    %v1549 = vshrl.u32 %v1548, 7
    %v1550 = vsub.s32 3, %v1549
    %v1551 = vrot.slane %v1534, %v1550
    %v1620 = vunpack.c.l.b16 %v1469
    %v1621 = vunpack.c.h.b16 %v1469
    %v1622 = vunpack.c.l.b16 %v1470
    %v1623 = vunpack.c.h.b16 %v1470
    %v1624 = vunpack.c.l.b16 %v1471
    %v1625 = vunpack.c.h.b16 %v1471
    %v1626 = vunpack.c.l.b16 %v1472
    %v1627 = vunpack.c.h.b16 %v1472
    %v1628 = vunpack.c.l.b16 %v1473
    %v1629 = vunpack.c.h.b16 %v1473
    %v1630 = vunpack.c.l.b16 %v1474
    %v1631 = vunpack.c.h.b16 %v1474
    %v1632 = vunpack.c.l.b16 %v1475
    %v1633 = vunpack.c.h.b16 %v1475
    %v1634 = vunpack.c.l.b16 %v1476
    %v1635 = vunpack.c.h.b16 %v1476
    %v1636 = vunpack.c.l.b16 %v1477
    %v1637 = vunpack.c.h.b16 %v1477
    %v1638 = vunpack.c.l.b16 %v1478
    %v1639 = vunpack.c.h.b16 %v1478
    %v1640 = vunpack.c.l.b16 %v1479
    %v1641 = vunpack.c.h.b16 %v1479
    %v1642 = vunpack.c.l.b16 %v1480
    %v1643 = vunpack.c.h.b16 %v1480
    %v1644 = vunpack.c.l.b16 %v1481
    %v1645 = vunpack.c.h.b16 %v1481
    %v1646 = vunpack.c.l.b16 %v1482
    %v1647 = vunpack.c.h.b16 %v1482
    %v1648 = vunpack.c.l.b16 %v1483
    %v1649 = vunpack.c.h.b16 %v1483
    %v1650 = vunpack.c.l.b16 %v1484
    %v1651 = vunpack.c.h.b16 %v1484
    %v1652 = vunpack.c.l.b16 %v1485
    %v1653 = vunpack.c.h.b16 %v1485
    %v1654 = vunpack.c.l.b16 %v1486
    %v1655 = vunpack.c.h.b16 %v1486
    %v1656 = vunpack.c.l.b16 %v1487
    %v1657 = vunpack.c.h.b16 %v1487
    %v1658 = vunpack.c.l.b16 %v1488
    %v1659 = vunpack.c.h.b16 %v1488
    %v1660 = vunpack.c.l.b16 %v1489
    %v1661 = vunpack.c.h.b16 %v1489
    %v1662 = vunpack.c.l.b16 %v1490
    %v1663 = vunpack.c.h.b16 %v1490
    %v1664 = vunpack.c.l.b16 %v1491
    %v1665 = vunpack.c.h.b16 %v1491
    %v1666 = vunpack.c.l.b16 %v1492
    %v1667 = vunpack.c.h.b16 %v1492
    %v1668 = vunpack.c.l.b16 %v1493
    %v1669 = vunpack.c.h.b16 %v1493
    %v1670 = vunpack.c.l.b16 %v1494
    %v1671 = vunpack.c.h.b16 %v1494
    %v1672 = vunpack.c.l.b16 %v1495
    %v1673 = vunpack.c.h.b16 %v1495
    %v1674 = vunpack.c.l.b16 %v1496
    %v1675 = vunpack.c.h.b16 %v1496
    %v1676 = vunpack.c.l.b16 %v1497
    %v1677 = vunpack.c.h.b16 %v1497
    %v1678 = vunpack.c.l.b16 %v1498
    %v1679 = vunpack.c.h.b16 %v1498
    %v1680 = vunpack.c.l.b16 %v1499
    %v1681 = vunpack.c.h.b16 %v1499
    %v1682 = vunpack.c.l.b16 %v1500
    %v1683 = vunpack.c.h.b16 %v1500
    %v1684 = vunpack.c.l.b16 %v1501
    %v1685 = vunpack.c.h.b16 %v1501
    %v1686 = vunpack.c.l.b16 %v1502
    %v1687 = vunpack.c.h.b16 %v1502
    %v1688 = vunpack.c.l.b16 %v1503
    %v1689 = vunpack.c.h.b16 %v1503
    %v1690 = vunpack.c.l.b16 %v1504
    %v1691 = vunpack.c.h.b16 %v1504
    %v1692 = vunpack.c.l.b16 %v1505
    %v1693 = vunpack.c.h.b16 %v1505
    %v1694 = vunpack.c.l.b16 %v1506
    %v1695 = vunpack.c.h.b16 %v1506
    %v1696 = vunpack.c.l.b16 %v1507
    %v1697 = vunpack.c.h.b16 %v1507
    %v1698 = vunpack.c.l.b16 %v1508
    %v1699 = vunpack.c.h.b16 %v1508
    %v1700 = vunpack.c.l.b16 %v1509
    %v1701 = vunpack.c.h.b16 %v1509
    %v1702 = vunpack.c.l.b16 %v1510
    %v1703 = vunpack.c.h.b16 %v1510
    %v1704 = vunpack.c.l.b16 %v1511
    %v1705 = vunpack.c.h.b16 %v1511
    %v1706 = vunpack.c.l.b16 %v1512
    %v1707 = vunpack.c.h.b16 %v1512
    %v1708 = vunpack.c.l.b16 %v1513
    %v1709 = vunpack.c.h.b16 %v1513
    %v1710 = vunpack.c.l.b16 %v1514
    %v1711 = vunpack.c.h.b16 %v1514
    %v1712 = vunpack.c.l.b16 %v1515
    %v1713 = vunpack.c.h.b16 %v1515
    %v1714 = vunpack.c.l.b16 %v1516
    %v1715 = vunpack.c.h.b16 %v1516
    %v1716 = vunpack.c.l.b16 %v1517
    %v1717 = vunpack.c.h.b16 %v1517
    %v1718 = vunpack.c.l.b16 %v1518
    %v1719 = vunpack.c.h.b16 %v1518
    %v1720 = vunpack.c.l.b16 %v1519
    %v1721 = vunpack.c.h.b16 %v1519
    %v1722 = vunpack.c.l.b16 %v1520
    %v1723 = vunpack.c.h.b16 %v1520
    %v1724 = vunpack.c.l.b16 %v1521
    %v1725 = vunpack.c.h.b16 %v1521
    %v1726 = vunpack.c.l.b16 %v1522
    %v1727 = vunpack.c.h.b16 %v1522
    %v1728 = vunpack.c.l.b16 %v1523
    %v1729 = vunpack.c.h.b16 %v1523
    %v1730 = vunpack.c.l.b16 %v1524
    %v1731 = vunpack.c.h.b16 %v1524
    %v1732 = vunpack.c.l.b16 %v1525
    %v1733 = vunpack.c.h.b16 %v1525
    %v1734 = vunpack.c.l.b16 %v1526
    %v1735 = vunpack.c.h.b16 %v1526
    %v1736 = vunpack.c.l.b16 %v1527
    %v1737 = vunpack.c.h.b16 %v1527
    %v1738 = vunpack.c.l.b16 %v1528
    %v1739 = vunpack.c.h.b16 %v1528
    %v1740 = vunpack.c.l.b16 %v1529
    %v1741 = vunpack.c.h.b16 %v1529
    %v1742 = vunpack.c.l.b16 %v1530
    %v1743 = vunpack.c.h.b16 %v1530
    %v1744 = vunpack.c.l.b16 %v1531
    %v1745 = vunpack.c.h.b16 %v1531
    %v1746 = vunpack.c.l.b16 %v1532
    %v1747 = vunpack.c.h.b16 %v1532
    %v1748 = vpack.c.b16 %v1624, %v1620
    %v1749 = vpack.c.b16 %v1625, %v1621
    %v1750 = vpack.c.b16 %v1626, %v1622
    %v1751 = vpack.c.b16 %v1627, %v1623
    %v1752 = vpack.c.b16 %v1632, %v1628
    %v1753 = vpack.c.b16 %v1633, %v1629
    %v1754 = vpack.c.b16 %v1634, %v1630
    %v1755 = vpack.c.b16 %v1635, %v1631
    %v1756 = vpack.c.b16 %v1640, %v1636
    %v1757 = vpack.c.b16 %v1641, %v1637
    %v1758 = vpack.c.b16 %v1642, %v1638
    %v1759 = vpack.c.b16 %v1643, %v1639
    %v1760 = vpack.c.b16 %v1648, %v1644
    %v1761 = vpack.c.b16 %v1649, %v1645
    %v1762 = vpack.c.b16 %v1650, %v1646
    %v1763 = vpack.c.b16 %v1651, %v1647
    %v1764 = vpack.c.b16 %v1656, %v1652
    %v1765 = vpack.c.b16 %v1657, %v1653
    %v1766 = vpack.c.b16 %v1658, %v1654
    %v1767 = vpack.c.b16 %v1659, %v1655
    %v1768 = vpack.c.b16 %v1664, %v1660
    %v1769 = vpack.c.b16 %v1665, %v1661
    %v1770 = vpack.c.b16 %v1666, %v1662
    %v1771 = vpack.c.b16 %v1667, %v1663
    %v1772 = vpack.c.b16 %v1672, %v1668
    %v1773 = vpack.c.b16 %v1673, %v1669
    %v1774 = vpack.c.b16 %v1674, %v1670
    %v1775 = vpack.c.b16 %v1675, %v1671
    %v1776 = vpack.c.b16 %v1680, %v1676
    %v1777 = vpack.c.b16 %v1681, %v1677
    %v1778 = vpack.c.b16 %v1682, %v1678
    %v1779 = vpack.c.b16 %v1683, %v1679
    %v1780 = vpack.c.b16 %v1688, %v1684
    %v1781 = vpack.c.b16 %v1689, %v1685
    %v1782 = vpack.c.b16 %v1690, %v1686
    %v1783 = vpack.c.b16 %v1691, %v1687
    %v1784 = vpack.c.b16 %v1696, %v1692
    %v1785 = vpack.c.b16 %v1697, %v1693
    %v1786 = vpack.c.b16 %v1698, %v1694
    %v1787 = vpack.c.b16 %v1699, %v1695
    %v1788 = vpack.c.b16 %v1704, %v1700
    %v1789 = vpack.c.b16 %v1705, %v1701
    %v1790 = vpack.c.b16 %v1706, %v1702
    %v1791 = vpack.c.b16 %v1707, %v1703
    %v1792 = vpack.c.b16 %v1712, %v1708
    %v1793 = vpack.c.b16 %v1713, %v1709
    %v1794 = vpack.c.b16 %v1714, %v1710
    %v1795 = vpack.c.b16 %v1715, %v1711
    %v1796 = vpack.c.b16 %v1720, %v1716
    %v1797 = vpack.c.b16 %v1721, %v1717
    %v1798 = vpack.c.b16 %v1722, %v1718
    %v1799 = vpack.c.b16 %v1723, %v1719
    %v1800 = vpack.c.b16 %v1728, %v1724
    %v1801 = vpack.c.b16 %v1729, %v1725
    %v1802 = vpack.c.b16 %v1730, %v1726
    %v1803 = vpack.c.b16 %v1731, %v1727
    %v1804 = vpack.c.b16 %v1736, %v1732
    %v1805 = vpack.c.b16 %v1737, %v1733
    %v1806 = vpack.c.b16 %v1738, %v1734
    %v1807 = vpack.c.b16 %v1739, %v1735
    %v1808 = vpack.c.b16 %v1744, %v1740
    %v1809 = vpack.c.b16 %v1745, %v1741
    %v1810 = vpack.c.b16 %v1746, %v1742
    %v1811 = vpack.c.b16 %v1747, %v1743
    %1876 = vmatprep.subr.bf16.mxu0 %v1749
    %1877 = vmatpush1.bf16.msra.mxu0 %v1748
    %1878 = vmatprep.subr.bf16.mxu0 %v1753
    %1879 = vmatpush1.bf16.msra.mxu0 %v1752
    %1880 = vmatprep.subr.bf16.mxu0 %v1757
    %1881 = vmatpush1.bf16.msra.mxu0 %v1756
    %1882 = vmatprep.subr.bf16.mxu0 %v1761
    %1883 = vmatpush1.bf16.msra.mxu0 %v1760
    %1884 = vmatprep.subr.bf16.mxu0 %v1765
    %1885 = vmatpush1.bf16.msra.mxu0 %v1764
    %1886 = vmatprep.subr.bf16.mxu0 %v1769
    %1887 = vmatpush1.bf16.msra.mxu0 %v1768
    %1888 = vmatprep.subr.bf16.mxu0 %v1773
    %1889 = vmatpush1.bf16.msra.mxu0 %v1772
    %1890 = vmatprep.subr.bf16.mxu0 %v1777
    %1891 = vmatpush1.bf16.msra.mxu0 %v1776
    %1892 = vmatprep.subr.bf16.mxu0 %v1781
    %1893 = vmatpush1.bf16.msra.mxu0 %v1780
    %1894 = vmatprep.subr.bf16.mxu0 %v1785
    %1895 = vmatpush1.bf16.msra.mxu0 %v1784
    %1896 = vmatprep.subr.bf16.mxu0 %v1789
    %1897 = vmatpush1.bf16.msra.mxu0 %v1788
    %1898 = vmatprep.subr.bf16.mxu0 %v1793
    %1899 = vmatpush1.bf16.msra.mxu0 %v1792
    %1900 = vmatprep.subr.bf16.mxu0 %v1797
    %1901 = vmatpush1.bf16.msra.mxu0 %v1796
    %1902 = vmatprep.subr.bf16.mxu0 %v1801
    %1903 = vmatpush1.bf16.msra.mxu0 %v1800
    %1904 = vmatprep.subr.bf16.mxu0 %v1805
    %1905 = vmatpush1.bf16.msra.mxu0 %v1804
    %1906 = vmatprep.subr.bf16.mxu0 %v1809
    %1907 = vmatpush1.bf16.msra.mxu0 %v1808
    %1908 = vmatprep.mubr.bf16.mxu0 %v153
    %1909 = vmatmul.mubr.bf16.gmra.mrb[0].mxu0 %v152
    %v1910 = vpop.f32.mrb[0].mxu0
    %v1911 = vadd.f32 %v1539, %v1910
    %v1912 = vpop.f32.mrb[0].mxu0
    %v1913 = vadd.f32 %v1543, %v1912
    %v1914 = vpop.f32.mrb[0].mxu0
    %v1915 = vadd.f32 %v1539, %v1914
    %v1916 = vpop.f32.mrb[0].mxu0
    %v1917 = vadd.f32 %v1543, %v1916
    %1918 = vdwg.mxu0
    %1919 = vmatprep.subr.bf16.mxu0 %v1751
    %1920 = vmatpush1.bf16.msra.mxu0 %v1750
    %1921 = vmatprep.subr.bf16.mxu0 %v1755
    %1922 = vmatpush1.bf16.msra.mxu0 %v1754
    %1923 = vmatprep.subr.bf16.mxu0 %v1759
    %1924 = vmatpush1.bf16.msra.mxu0 %v1758
    %1925 = vmatprep.subr.bf16.mxu0 %v1763
    %1926 = vmatpush1.bf16.msra.mxu0 %v1762
    %1927 = vmatprep.subr.bf16.mxu0 %v1767
    %1928 = vmatpush1.bf16.msra.mxu0 %v1766
    %1929 = vmatprep.subr.bf16.mxu0 %v1771
    %1930 = vmatpush1.bf16.msra.mxu0 %v1770
    %1931 = vmatprep.subr.bf16.mxu0 %v1775
    %1932 = vmatpush1.bf16.msra.mxu0 %v1774
    %1933 = vmatprep.subr.bf16.mxu0 %v1779
    %1934 = vmatpush1.bf16.msra.mxu0 %v1778
    %1935 = vmatprep.subr.bf16.mxu0 %v1783
    %1936 = vmatpush1.bf16.msra.mxu0 %v1782
    %1937 = vmatprep.subr.bf16.mxu0 %v1787
    %1938 = vmatpush1.bf16.msra.mxu0 %v1786
    %1939 = vmatprep.subr.bf16.mxu0 %v1791
    %1940 = vmatpush1.bf16.msra.mxu0 %v1790
    %1941 = vmatprep.subr.bf16.mxu0 %v1795
    %1942 = vmatpush1.bf16.msra.mxu0 %v1794
    %1943 = vmatprep.subr.bf16.mxu0 %v1799
    %1944 = vmatpush1.bf16.msra.mxu0 %v1798
    %1945 = vmatprep.subr.bf16.mxu0 %v1803
    %1946 = vmatpush1.bf16.msra.mxu0 %v1802
    %1947 = vmatprep.subr.bf16.mxu0 %v1807
    %1948 = vmatpush1.bf16.msra.mxu0 %v1806
    %1949 = vmatprep.subr.bf16.mxu0 %v1811
    %1950 = vmatpush1.bf16.msra.mxu0 %v1810
    %1951 = vmatprep.mubr.bf16.mxu0 %v153
    %1952 = vmatmul.mubr.bf16.gmra.mrb[0].mxu0 %v152
    %v1953 = vpop.f32.mrb[0].mxu0
    %v1954 = vadd.f32 %v1547, %v1953
    %v1955 = vpop.f32.mrb[0].mxu0
    %v1956 = vadd.f32 %v1551, %v1955
    %v1957 = vpop.f32.mrb[0].mxu0
    %v1958 = vadd.f32 %v1547, %v1957
    %v1959 = vpop.f32.mrb[0].mxu0
    %v1960 = vadd.f32 %v1551, %v1959
    %1961 = vdwg.mxu0
    %v1962 = vmax.f32 %v1911, 0.0
    %v1963 = vmax.f32 %v1913, 0.0
    %v1964 = vmax.f32 %v1954, 0.0
    %v1965 = vmax.f32 %v1956, 0.0
    %v1966 = vmax.f32 %v1915, 0.0
    %v1967 = vmax.f32 %v1917, 0.0
    %v1968 = vmax.f32 %v1958, 0.0
    %v1969 = vmax.f32 %v1960, 0.0
    %v1970 = vpack.c.bf16 %v1966, %v1962
    %v1971 = vpack.c.bf16 %v1967, %v1963
    %v1972 = vpack.c.bf16 %v1968, %v1964
    %v1973 = vpack.c.bf16 %v1969, %v1965
    %s1974 = scalar_lea.vmem [#allocation13], 512
    %v1975 = vld [vmem:[%s1974] sm:$0xff]
    %v1976 = vld [vmem:[%s1974 + $0x8] sm:$0xff]
    %v1977 = vld [vmem:[%s1974 + $0x10] sm:$0xff]
    %v1978 = vld [vmem:[%s1974 + $0x18] sm:$0xff]
    %v1979 = vld [vmem:[%s1974 + $0x20] sm:$0xff]
    %v1980 = vld [vmem:[%s1974 + $0x28] sm:$0xff]
    %v1981 = vld [vmem:[%s1974 + $0x30] sm:$0xff]
    %v1982 = vld [vmem:[%s1974 + $0x38] sm:$0xff]
    %v1983 = vld [vmem:[%s1974 + $0x40] sm:$0xff]
    %v1984 = vld [vmem:[%s1974 + $0x48] sm:$0xff]
    %v1985 = vld [vmem:[%s1974 + $0x50] sm:$0xff]
    %v1986 = vld [vmem:[%s1974 + $0x58] sm:$0xff]
    %v1987 = vld [vmem:[%s1974 + $0x60] sm:$0xff]
    %v1988 = vld [vmem:[%s1974 + $0x68] sm:$0xff]
    %v1989 = vld [vmem:[%s1974 + $0x70] sm:$0xff]
    %v1990 = vld [vmem:[%s1974 + $0x78] sm:$0xff]
    %v1991 = vld [vmem:[%s1974 + $0x80] sm:$0xff]
    %v1992 = vld [vmem:[%s1974 + $0x88] sm:$0xff]
    %v1993 = vld [vmem:[%s1974 + $0x90] sm:$0xff]
    %v1994 = vld [vmem:[%s1974 + $0x98] sm:$0xff]
    %v1995 = vld [vmem:[%s1974 + $0xa0] sm:$0xff]
    %v1996 = vld [vmem:[%s1974 + $0xa8] sm:$0xff]
    %v1997 = vld [vmem:[%s1974 + $0xb0] sm:$0xff]
    %v1998 = vld [vmem:[%s1974 + $0xb8] sm:$0xff]
    %v1999 = vld [vmem:[%s1974 + $0xc0] sm:$0xff]
    %v2000 = vld [vmem:[%s1974 + $0xc8] sm:$0xff]
    %v2001 = vld [vmem:[%s1974 + $0xd0] sm:$0xff]
    %v2002 = vld [vmem:[%s1974 + $0xd8] sm:$0xff]
    %v2003 = vld [vmem:[%s1974 + $0xe0] sm:$0xff]
    %v2004 = vld [vmem:[%s1974 + $0xe8] sm:$0xff]
    %v2005 = vld [vmem:[%s1974 + $0xf0] sm:$0xff]
    %v2006 = vld [vmem:[%s1974 + $0xf8] sm:$0xff]
    %v2007 = vld [vmem:[%s1974 + $0x100] sm:$0xff]
    %v2008 = vld [vmem:[%s1974 + $0x108] sm:$0xff]
    %v2009 = vld [vmem:[%s1974 + $0x110] sm:$0xff]
    %v2010 = vld [vmem:[%s1974 + $0x118] sm:$0xff]
    %v2011 = vld [vmem:[%s1974 + $0x120] sm:$0xff]
    %v2012 = vld [vmem:[%s1974 + $0x128] sm:$0xff]
    %v2013 = vld [vmem:[%s1974 + $0x130] sm:$0xff]
    %v2014 = vld [vmem:[%s1974 + $0x138] sm:$0xff]
    %v2015 = vld [vmem:[%s1974 + $0x140] sm:$0xff]
    %v2016 = vld [vmem:[%s1974 + $0x148] sm:$0xff]
    %v2017 = vld [vmem:[%s1974 + $0x150] sm:$0xff]
    %v2018 = vld [vmem:[%s1974 + $0x158] sm:$0xff]
    %v2019 = vld [vmem:[%s1974 + $0x160] sm:$0xff]
    %v2020 = vld [vmem:[%s1974 + $0x168] sm:$0xff]
    %v2021 = vld [vmem:[%s1974 + $0x170] sm:$0xff]
    %v2022 = vld [vmem:[%s1974 + $0x178] sm:$0xff]
    %v2023 = vld [vmem:[%s1974 + $0x180] sm:$0xff]
    %v2024 = vld [vmem:[%s1974 + $0x188] sm:$0xff]
    %v2025 = vld [vmem:[%s1974 + $0x190] sm:$0xff]
    %v2026 = vld [vmem:[%s1974 + $0x198] sm:$0xff]
    %v2027 = vld [vmem:[%s1974 + $0x1a0] sm:$0xff]
    %v2028 = vld [vmem:[%s1974 + $0x1a8] sm:$0xff]
    %v2029 = vld [vmem:[%s1974 + $0x1b0] sm:$0xff]
    %v2030 = vld [vmem:[%s1974 + $0x1b8] sm:$0xff]
    %v2031 = vld [vmem:[%s1974 + $0x1c0] sm:$0xff]
    %v2032 = vld [vmem:[%s1974 + $0x1c8] sm:$0xff]
    %v2033 = vld [vmem:[%s1974 + $0x1d0] sm:$0xff]
    %v2034 = vld [vmem:[%s1974 + $0x1d8] sm:$0xff]
    %v2035 = vld [vmem:[%s1974 + $0x1e0] sm:$0xff]
    %v2036 = vld [vmem:[%s1974 + $0x1e8] sm:$0xff]
    %v2037 = vld [vmem:[%s1974 + $0x1f0] sm:$0xff]
    %v2038 = vld [vmem:[%s1974 + $0x1f8] sm:$0xff]
    %s2039 = scalar_lea.vmem [#allocation14], 2
    %v2040 = vld [vmem:[%s2039] sm:$0x3]
    %v2042 = vlaneseq
    %v2043 = vshrl.u32 %v2042, 7
    %v2044 = vsub.s32 0, %v2043
    %v2045 = vrot.slane %v2040, %v2044
    %v2046 = vlaneseq
    %v2047 = vshrl.u32 %v2046, 7
    %v2048 = vsub.s32 1, %v2047
    %v2049 = vrot.slane %v2040, %v2048
    %v2116 = vunpack.c.l.b16 %v1975
    %v2117 = vunpack.c.h.b16 %v1975
    %v2118 = vunpack.c.l.b16 %v1976
    %v2119 = vunpack.c.h.b16 %v1976
    %v2120 = vunpack.c.l.b16 %v1977
    %v2121 = vunpack.c.h.b16 %v1977
    %v2122 = vunpack.c.l.b16 %v1978
    %v2123 = vunpack.c.h.b16 %v1978
    %v2124 = vunpack.c.l.b16 %v1979
    %v2125 = vunpack.c.h.b16 %v1979
    %v2126 = vunpack.c.l.b16 %v1980
    %v2127 = vunpack.c.h.b16 %v1980
    %v2128 = vunpack.c.l.b16 %v1981
    %v2129 = vunpack.c.h.b16 %v1981
    %v2130 = vunpack.c.l.b16 %v1982
    %v2131 = vunpack.c.h.b16 %v1982
    %v2132 = vunpack.c.l.b16 %v1983
    %v2133 = vunpack.c.h.b16 %v1983
    %v2134 = vunpack.c.l.b16 %v1984
    %v2135 = vunpack.c.h.b16 %v1984
    %v2136 = vunpack.c.l.b16 %v1985
    %v2137 = vunpack.c.h.b16 %v1985
    %v2138 = vunpack.c.l.b16 %v1986
    %v2139 = vunpack.c.h.b16 %v1986
    %v2140 = vunpack.c.l.b16 %v1987
    %v2141 = vunpack.c.h.b16 %v1987
    %v2142 = vunpack.c.l.b16 %v1988
    %v2143 = vunpack.c.h.b16 %v1988
    %v2144 = vunpack.c.l.b16 %v1989
    %v2145 = vunpack.c.h.b16 %v1989
    %v2146 = vunpack.c.l.b16 %v1990
    %v2147 = vunpack.c.h.b16 %v1990
    %v2148 = vunpack.c.l.b16 %v1991
    %v2149 = vunpack.c.h.b16 %v1991
    %v2150 = vunpack.c.l.b16 %v1992
    %v2151 = vunpack.c.h.b16 %v1992
    %v2152 = vunpack.c.l.b16 %v1993
    %v2153 = vunpack.c.h.b16 %v1993
    %v2154 = vunpack.c.l.b16 %v1994
    %v2155 = vunpack.c.h.b16 %v1994
    %v2156 = vunpack.c.l.b16 %v1995
    %v2157 = vunpack.c.h.b16 %v1995
    %v2158 = vunpack.c.l.b16 %v1996
    %v2159 = vunpack.c.h.b16 %v1996
    %v2160 = vunpack.c.l.b16 %v1997
    %v2161 = vunpack.c.h.b16 %v1997
    %v2162 = vunpack.c.l.b16 %v1998
    %v2163 = vunpack.c.h.b16 %v1998
    %v2164 = vunpack.c.l.b16 %v1999
    %v2165 = vunpack.c.h.b16 %v1999
    %v2166 = vunpack.c.l.b16 %v2000
    %v2167 = vunpack.c.h.b16 %v2000
    %v2168 = vunpack.c.l.b16 %v2001
    %v2169 = vunpack.c.h.b16 %v2001
    %v2170 = vunpack.c.l.b16 %v2002
    %v2171 = vunpack.c.h.b16 %v2002
    %v2172 = vunpack.c.l.b16 %v2003
    %v2173 = vunpack.c.h.b16 %v2003
    %v2174 = vunpack.c.l.b16 %v2004
    %v2175 = vunpack.c.h.b16 %v2004
    %v2176 = vunpack.c.l.b16 %v2005
    %v2177 = vunpack.c.h.b16 %v2005
    %v2178 = vunpack.c.l.b16 %v2006
    %v2179 = vunpack.c.h.b16 %v2006
    %v2180 = vunpack.c.l.b16 %v2007
    %v2181 = vunpack.c.h.b16 %v2007
    %v2182 = vunpack.c.l.b16 %v2008
    %v2183 = vunpack.c.h.b16 %v2008
    %v2184 = vunpack.c.l.b16 %v2009
    %v2185 = vunpack.c.h.b16 %v2009
    %v2186 = vunpack.c.l.b16 %v2010
    %v2187 = vunpack.c.h.b16 %v2010
    %v2188 = vunpack.c.l.b16 %v2011
    %v2189 = vunpack.c.h.b16 %v2011
    %v2190 = vunpack.c.l.b16 %v2012
    %v2191 = vunpack.c.h.b16 %v2012
    %v2192 = vunpack.c.l.b16 %v2013
    %v2193 = vunpack.c.h.b16 %v2013
    %v2194 = vunpack.c.l.b16 %v2014
    %v2195 = vunpack.c.h.b16 %v2014
    %v2196 = vunpack.c.l.b16 %v2015
    %v2197 = vunpack.c.h.b16 %v2015
    %v2198 = vunpack.c.l.b16 %v2016
    %v2199 = vunpack.c.h.b16 %v2016
    %v2200 = vunpack.c.l.b16 %v2017
    %v2201 = vunpack.c.h.b16 %v2017
    %v2202 = vunpack.c.l.b16 %v2018
    %v2203 = vunpack.c.h.b16 %v2018
    %v2204 = vunpack.c.l.b16 %v2019
    %v2205 = vunpack.c.h.b16 %v2019
    %v2206 = vunpack.c.l.b16 %v2020
    %v2207 = vunpack.c.h.b16 %v2020
    %v2208 = vunpack.c.l.b16 %v2021
    %v2209 = vunpack.c.h.b16 %v2021
    %v2210 = vunpack.c.l.b16 %v2022
    %v2211 = vunpack.c.h.b16 %v2022
    %v2212 = vunpack.c.l.b16 %v2023
    %v2213 = vunpack.c.h.b16 %v2023
    %v2214 = vunpack.c.l.b16 %v2024
    %v2215 = vunpack.c.h.b16 %v2024
    %v2216 = vunpack.c.l.b16 %v2025
    %v2217 = vunpack.c.h.b16 %v2025
    %v2218 = vunpack.c.l.b16 %v2026
    %v2219 = vunpack.c.h.b16 %v2026
    %v2220 = vunpack.c.l.b16 %v2027
    %v2221 = vunpack.c.h.b16 %v2027
    %v2222 = vunpack.c.l.b16 %v2028
    %v2223 = vunpack.c.h.b16 %v2028
    %v2224 = vunpack.c.l.b16 %v2029
    %v2225 = vunpack.c.h.b16 %v2029
    %v2226 = vunpack.c.l.b16 %v2030
    %v2227 = vunpack.c.h.b16 %v2030
    %v2228 = vunpack.c.l.b16 %v2031
    %v2229 = vunpack.c.h.b16 %v2031
    %v2230 = vunpack.c.l.b16 %v2032
    %v2231 = vunpack.c.h.b16 %v2032
    %v2232 = vunpack.c.l.b16 %v2033
    %v2233 = vunpack.c.h.b16 %v2033
    %v2234 = vunpack.c.l.b16 %v2034
    %v2235 = vunpack.c.h.b16 %v2034
    %v2236 = vunpack.c.l.b16 %v2035
    %v2237 = vunpack.c.h.b16 %v2035
    %v2238 = vunpack.c.l.b16 %v2036
    %v2239 = vunpack.c.h.b16 %v2036
    %v2240 = vunpack.c.l.b16 %v2037
    %v2241 = vunpack.c.h.b16 %v2037
    %v2242 = vunpack.c.l.b16 %v2038
    %v2243 = vunpack.c.h.b16 %v2038
    %v2244 = vpack.c.b16 %v2118, %v2116
    %v2245 = vpack.c.b16 %v2119, %v2117
    %v2246 = vpack.c.b16 %v2122, %v2120
    %v2247 = vpack.c.b16 %v2123, %v2121
    %v2248 = vpack.c.b16 %v2126, %v2124
    %v2249 = vpack.c.b16 %v2127, %v2125
    %v2250 = vpack.c.b16 %v2130, %v2128
    %v2251 = vpack.c.b16 %v2131, %v2129
    %v2252 = vpack.c.b16 %v2134, %v2132
    %v2253 = vpack.c.b16 %v2135, %v2133
    %v2254 = vpack.c.b16 %v2138, %v2136
    %v2255 = vpack.c.b16 %v2139, %v2137
    %v2256 = vpack.c.b16 %v2142, %v2140
    %v2257 = vpack.c.b16 %v2143, %v2141
    %v2258 = vpack.c.b16 %v2146, %v2144
    %v2259 = vpack.c.b16 %v2147, %v2145
    %v2260 = vpack.c.b16 %v2150, %v2148
    %v2261 = vpack.c.b16 %v2151, %v2149
    %v2262 = vpack.c.b16 %v2154, %v2152
    %v2263 = vpack.c.b16 %v2155, %v2153
    %v2264 = vpack.c.b16 %v2158, %v2156
    %v2265 = vpack.c.b16 %v2159, %v2157
    %v2266 = vpack.c.b16 %v2162, %v2160
    %v2267 = vpack.c.b16 %v2163, %v2161
    %v2268 = vpack.c.b16 %v2166, %v2164
    %v2269 = vpack.c.b16 %v2167, %v2165
    %v2270 = vpack.c.b16 %v2170, %v2168
    %v2271 = vpack.c.b16 %v2171, %v2169
    %v2272 = vpack.c.b16 %v2174, %v2172
    %v2273 = vpack.c.b16 %v2175, %v2173
    %v2274 = vpack.c.b16 %v2178, %v2176
    %v2275 = vpack.c.b16 %v2179, %v2177
    %v2276 = vpack.c.b16 %v2182, %v2180
    %v2277 = vpack.c.b16 %v2183, %v2181
    %v2278 = vpack.c.b16 %v2186, %v2184
    %v2279 = vpack.c.b16 %v2187, %v2185
    %v2280 = vpack.c.b16 %v2190, %v2188
    %v2281 = vpack.c.b16 %v2191, %v2189
    %v2282 = vpack.c.b16 %v2194, %v2192
    %v2283 = vpack.c.b16 %v2195, %v2193
    %v2284 = vpack.c.b16 %v2198, %v2196
    %v2285 = vpack.c.b16 %v2199, %v2197
    %v2286 = vpack.c.b16 %v2202, %v2200
    %v2287 = vpack.c.b16 %v2203, %v2201
    %v2288 = vpack.c.b16 %v2206, %v2204
    %v2289 = vpack.c.b16 %v2207, %v2205
    %v2290 = vpack.c.b16 %v2210, %v2208
    %v2291 = vpack.c.b16 %v2211, %v2209
    %v2292 = vpack.c.b16 %v2214, %v2212
    %v2293 = vpack.c.b16 %v2215, %v2213
    %v2294 = vpack.c.b16 %v2218, %v2216
    %v2295 = vpack.c.b16 %v2219, %v2217
    %v2296 = vpack.c.b16 %v2222, %v2220
    %v2297 = vpack.c.b16 %v2223, %v2221
    %v2298 = vpack.c.b16 %v2226, %v2224
    %v2299 = vpack.c.b16 %v2227, %v2225
    %v2300 = vpack.c.b16 %v2230, %v2228
    %v2301 = vpack.c.b16 %v2231, %v2229
    %v2302 = vpack.c.b16 %v2234, %v2232
    %v2303 = vpack.c.b16 %v2235, %v2233
    %v2304 = vpack.c.b16 %v2238, %v2236
    %v2305 = vpack.c.b16 %v2239, %v2237
    %v2306 = vpack.c.b16 %v2242, %v2240
    %v2307 = vpack.c.b16 %v2243, %v2241
    %2372 = vmatprep.subr.bf16.mxu0 %v2245
    %2373 = vmatpush1.bf16.msra.mxu0 %v2244
    %2374 = vmatprep.subr.bf16.mxu0 %v2247
    %2375 = vmatpush1.bf16.msra.mxu0 %v2246
    %2376 = vmatprep.subr.bf16.mxu0 %v2249
    %2377 = vmatpush1.bf16.msra.mxu0 %v2248
    %2378 = vmatprep.subr.bf16.mxu0 %v2251
    %2379 = vmatpush1.bf16.msra.mxu0 %v2250
    %2380 = vmatprep.subr.bf16.mxu0 %v2253
    %2381 = vmatpush1.bf16.msra.mxu0 %v2252
    %2382 = vmatprep.subr.bf16.mxu0 %v2255
    %2383 = vmatpush1.bf16.msra.mxu0 %v2254
    %2384 = vmatprep.subr.bf16.mxu0 %v2257
    %2385 = vmatpush1.bf16.msra.mxu0 %v2256
    %2386 = vmatprep.subr.bf16.mxu0 %v2259
    %2387 = vmatpush1.bf16.msra.mxu0 %v2258
    %2388 = vmatprep.subr.bf16.mxu0 %v2261
    %2389 = vmatpush1.bf16.msra.mxu0 %v2260
    %2390 = vmatprep.subr.bf16.mxu0 %v2263
    %2391 = vmatpush1.bf16.msra.mxu0 %v2262
    %2392 = vmatprep.subr.bf16.mxu0 %v2265
    %2393 = vmatpush1.bf16.msra.mxu0 %v2264
    %2394 = vmatprep.subr.bf16.mxu0 %v2267
    %2395 = vmatpush1.bf16.msra.mxu0 %v2266
    %2396 = vmatprep.subr.bf16.mxu0 %v2269
    %2397 = vmatpush1.bf16.msra.mxu0 %v2268
    %2398 = vmatprep.subr.bf16.mxu0 %v2271
    %2399 = vmatpush1.bf16.msra.mxu0 %v2270
    %2400 = vmatprep.subr.bf16.mxu0 %v2273
    %2401 = vmatpush1.bf16.msra.mxu0 %v2272
    %2402 = vmatprep.subr.bf16.mxu0 %v2275
    %2403 = vmatpush1.bf16.msra.mxu0 %v2274
    %2404 = vmatprep.mubr.bf16.mxu0 %v1971
    %2405 = vmatmul.mubr.bf16.gmra.mrb[0].mxu0 %v1970
    %v2406 = vpop.f32.mrb[0].mxu0
    %v2407 = vadd.f32 %v2045, %v2406
    %v2408 = vpop.f32.mrb[0].mxu0
    %v2409 = vadd.f32 %v2049, %v2408
    %v2410 = vpop.f32.mrb[0].mxu0
    %v2411 = vadd.f32 %v2045, %v2410
    %v2412 = vpop.f32.mrb[0].mxu0
    %v2413 = vadd.f32 %v2049, %v2412
    %2414 = vdwg.mxu0
    %2415 = vmatprep.subr.bf16.mxu0 %v2277
    %2416 = vmatpush1.bf16.msra.mxu0 %v2276
    %2417 = vmatprep.subr.bf16.mxu0 %v2279
    %2418 = vmatpush1.bf16.msra.mxu0 %v2278
    %2419 = vmatprep.subr.bf16.mxu0 %v2281
    %2420 = vmatpush1.bf16.msra.mxu0 %v2280
    %2421 = vmatprep.subr.bf16.mxu0 %v2283
    %2422 = vmatpush1.bf16.msra.mxu0 %v2282
    %2423 = vmatprep.subr.bf16.mxu0 %v2285
    %2424 = vmatpush1.bf16.msra.mxu0 %v2284
    %2425 = vmatprep.subr.bf16.mxu0 %v2287
    %2426 = vmatpush1.bf16.msra.mxu0 %v2286
    %2427 = vmatprep.subr.bf16.mxu0 %v2289
    %2428 = vmatpush1.bf16.msra.mxu0 %v2288
    %2429 = vmatprep.subr.bf16.mxu0 %v2291
    %2430 = vmatpush1.bf16.msra.mxu0 %v2290
    %2431 = vmatprep.subr.bf16.mxu0 %v2293
    %2432 = vmatpush1.bf16.msra.mxu0 %v2292
    %2433 = vmatprep.subr.bf16.mxu0 %v2295
    %2434 = vmatpush1.bf16.msra.mxu0 %v2294
    %2435 = vmatprep.subr.bf16.mxu0 %v2297
    %2436 = vmatpush1.bf16.msra.mxu0 %v2296
    %2437 = vmatprep.subr.bf16.mxu0 %v2299
    %2438 = vmatpush1.bf16.msra.mxu0 %v2298
    %2439 = vmatprep.subr.bf16.mxu0 %v2301
    %2440 = vmatpush1.bf16.msra.mxu0 %v2300
    %2441 = vmatprep.subr.bf16.mxu0 %v2303
    %2442 = vmatpush1.bf16.msra.mxu0 %v2302
    %2443 = vmatprep.subr.bf16.mxu0 %v2305
    %2444 = vmatpush1.bf16.msra.mxu0 %v2304
    %2445 = vmatprep.subr.bf16.mxu0 %v2307
    %2446 = vmatpush1.bf16.msra.mxu0 %v2306
    %2447 = vmatprep.mubr.bf16.mxu0 %v1973
    %2448 = vmatmul.mubr.bf16.gmra.mrb[0].mxu0 %v1972
    %v2449 = vpop.f32.mrb[0].mxu0
    %v2450 = vadd.f32 %v2407, %v2449
    %v2451 = vpop.f32.mrb[0].mxu0
    %v2452 = vadd.f32 %v2409, %v2451
    %v2453 = vpop.f32.mrb[0].mxu0
    %v2454 = vadd.f32 %v2411, %v2453
    %v2455 = vpop.f32.mrb[0].mxu0
    %v2456 = vadd.f32 %v2413, %v2455
    %2457 = vdwg.mxu0
    %v2458 = vld [vmem:[#allocation2] sm:$0xff]
    %v2459 = vld [vmem:[#allocation2 + $0x8] sm:$0xff]
    %v2460 = vld [vmem:[#allocation2 + $0x10] sm:$0xff]
    %v2461 = vld [vmem:[#allocation2 + $0x18] sm:$0xff]
    %2462 = vset.pattern.permute.xlu0 1
    %2463 = vperm.xlu0 %2462, %v413
    %v2464 = vpop.permute.xlu0 %2463
    %2466 = vset.pattern.permute.xlu0 1
    %2467 = vperm.xlu0 %2466, %v415
    %v2468 = vpop.permute.xlu0 %2467
    %v2470 = vmul.f32 %v2464, %v2450
    %v2471 = vmul.f32 %v2464, %v2452
    %v2472 = vmul.f32 %v2468, %v2454
    %v2473 = vmul.f32 %v2468, %v2456
    %v2474 = vadd.f32 %v2458, %v2470
    %v2475 = vadd.f32 %v2459, %v2471
    %v2476 = vadd.f32 %v2460, %v2472
    %v2477 = vadd.f32 %v2461, %v2473
    %2478 = vst [vmem:[#allocation2] sm:$0xff] %v2474
    %2479 = vst [vmem:[#allocation2 + $0x8] sm:$0xff] %v2475
    %2480 = vst [vmem:[#allocation2 + $0x10] sm:$0xff] %v2476
    %2481 = vst [vmem:[#allocation2 + $0x18] sm:$0xff] %v2477
    %s2482 = scalar_lea.vmem [#allocation10], 1024
    %v2483 = vld [vmem:[%s2482] sm:$0xff]
    %v2484 = vld [vmem:[%s2482 + $0x8] sm:$0xff]
    %v2485 = vld [vmem:[%s2482 + $0x10] sm:$0xff]
    %v2486 = vld [vmem:[%s2482 + $0x18] sm:$0xff]
    %v2487 = vld [vmem:[%s2482 + $0x20] sm:$0xff]
    %v2488 = vld [vmem:[%s2482 + $0x28] sm:$0xff]
    %v2489 = vld [vmem:[%s2482 + $0x30] sm:$0xff]
    %v2490 = vld [vmem:[%s2482 + $0x38] sm:$0xff]
    %v2491 = vld [vmem:[%s2482 + $0x40] sm:$0xff]
    %v2492 = vld [vmem:[%s2482 + $0x48] sm:$0xff]
    %v2493 = vld [vmem:[%s2482 + $0x50] sm:$0xff]
    %v2494 = vld [vmem:[%s2482 + $0x58] sm:$0xff]
    %v2495 = vld [vmem:[%s2482 + $0x60] sm:$0xff]
    %v2496 = vld [vmem:[%s2482 + $0x68] sm:$0xff]
    %v2497 = vld [vmem:[%s2482 + $0x70] sm:$0xff]
    %v2498 = vld [vmem:[%s2482 + $0x78] sm:$0xff]
    %v2499 = vld [vmem:[%s2482 + $0x80] sm:$0xff]
    %v2500 = vld [vmem:[%s2482 + $0x88] sm:$0xff]
    %v2501 = vld [vmem:[%s2482 + $0x90] sm:$0xff]
    %v2502 = vld [vmem:[%s2482 + $0x98] sm:$0xff]
    %v2503 = vld [vmem:[%s2482 + $0xa0] sm:$0xff]
    %v2504 = vld [vmem:[%s2482 + $0xa8] sm:$0xff]
    %v2505 = vld [vmem:[%s2482 + $0xb0] sm:$0xff]
    %v2506 = vld [vmem:[%s2482 + $0xb8] sm:$0xff]
    %v2507 = vld [vmem:[%s2482 + $0xc0] sm:$0xff]
    %v2508 = vld [vmem:[%s2482 + $0xc8] sm:$0xff]
    %v2509 = vld [vmem:[%s2482 + $0xd0] sm:$0xff]
    %v2510 = vld [vmem:[%s2482 + $0xd8] sm:$0xff]
    %v2511 = vld [vmem:[%s2482 + $0xe0] sm:$0xff]
    %v2512 = vld [vmem:[%s2482 + $0xe8] sm:$0xff]
    %v2513 = vld [vmem:[%s2482 + $0xf0] sm:$0xff]
    %v2514 = vld [vmem:[%s2482 + $0xf8] sm:$0xff]
    %v2515 = vld [vmem:[%s2482 + $0x100] sm:$0xff]
    %v2516 = vld [vmem:[%s2482 + $0x108] sm:$0xff]
    %v2517 = vld [vmem:[%s2482 + $0x110] sm:$0xff]
    %v2518 = vld [vmem:[%s2482 + $0x118] sm:$0xff]
    %v2519 = vld [vmem:[%s2482 + $0x120] sm:$0xff]
    %v2520 = vld [vmem:[%s2482 + $0x128] sm:$0xff]
    %v2521 = vld [vmem:[%s2482 + $0x130] sm:$0xff]
    %v2522 = vld [vmem:[%s2482 + $0x138] sm:$0xff]
    %v2523 = vld [vmem:[%s2482 + $0x140] sm:$0xff]
    %v2524 = vld [vmem:[%s2482 + $0x148] sm:$0xff]
    %v2525 = vld [vmem:[%s2482 + $0x150] sm:$0xff]
    %v2526 = vld [vmem:[%s2482 + $0x158] sm:$0xff]
    %v2527 = vld [vmem:[%s2482 + $0x160] sm:$0xff]
    %v2528 = vld [vmem:[%s2482 + $0x168] sm:$0xff]
    %v2529 = vld [vmem:[%s2482 + $0x170] sm:$0xff]
    %v2530 = vld [vmem:[%s2482 + $0x178] sm:$0xff]
    %v2531 = vld [vmem:[%s2482 + $0x180] sm:$0xff]
    %v2532 = vld [vmem:[%s2482 + $0x188] sm:$0xff]
    %v2533 = vld [vmem:[%s2482 + $0x190] sm:$0xff]
    %v2534 = vld [vmem:[%s2482 + $0x198] sm:$0xff]
    %v2535 = vld [vmem:[%s2482 + $0x1a0] sm:$0xff]
    %v2536 = vld [vmem:[%s2482 + $0x1a8] sm:$0xff]
    %v2537 = vld [vmem:[%s2482 + $0x1b0] sm:$0xff]
    %v2538 = vld [vmem:[%s2482 + $0x1b8] sm:$0xff]
    %v2539 = vld [vmem:[%s2482 + $0x1c0] sm:$0xff]
    %v2540 = vld [vmem:[%s2482 + $0x1c8] sm:$0xff]
    %v2541 = vld [vmem:[%s2482 + $0x1d0] sm:$0xff]
    %v2542 = vld [vmem:[%s2482 + $0x1d8] sm:$0xff]
    %v2543 = vld [vmem:[%s2482 + $0x1e0] sm:$0xff]
    %v2544 = vld [vmem:[%s2482 + $0x1e8] sm:$0xff]
    %v2545 = vld [vmem:[%s2482 + $0x1f0] sm:$0xff]
    %v2546 = vld [vmem:[%s2482 + $0x1f8] sm:$0xff]
    %s2547 = scalar_lea.vmem [#allocation11], 8
    %v2548 = vld [vmem:[%s2547] sm:$0xf]
    %v2550 = vlaneseq
    %v2551 = vshrl.u32 %v2550, 7
    %v2552 = vsub.s32 0, %v2551
    %v2553 = vrot.slane %v2548, %v2552
    %v2554 = vlaneseq
    %v2555 = vshrl.u32 %v2554, 7
    %v2556 = vsub.s32 1, %v2555
    %v2557 = vrot.slane %v2548, %v2556
    %v2558 = vlaneseq
    %v2559 = vshrl.u32 %v2558, 7
    %v2560 = vsub.s32 2, %v2559
    %v2561 = vrot.slane %v2548, %v2560
    %v2562 = vlaneseq
    %v2563 = vshrl.u32 %v2562, 7
    %v2564 = vsub.s32 3, %v2563
    %v2565 = vrot.slane %v2548, %v2564
    %v2634 = vunpack.c.l.b16 %v2483
    %v2635 = vunpack.c.h.b16 %v2483
    %v2636 = vunpack.c.l.b16 %v2484
    %v2637 = vunpack.c.h.b16 %v2484
    %v2638 = vunpack.c.l.b16 %v2485
    %v2639 = vunpack.c.h.b16 %v2485
    %v2640 = vunpack.c.l.b16 %v2486
    %v2641 = vunpack.c.h.b16 %v2486
    %v2642 = vunpack.c.l.b16 %v2487
    %v2643 = vunpack.c.h.b16 %v2487
    %v2644 = vunpack.c.l.b16 %v2488
    %v2645 = vunpack.c.h.b16 %v2488
    %v2646 = vunpack.c.l.b16 %v2489
    %v2647 = vunpack.c.h.b16 %v2489
    %v2648 = vunpack.c.l.b16 %v2490
    %v2649 = vunpack.c.h.b16 %v2490
    %v2650 = vunpack.c.l.b16 %v2491
    %v2651 = vunpack.c.h.b16 %v2491
    %v2652 = vunpack.c.l.b16 %v2492
    %v2653 = vunpack.c.h.b16 %v2492
    %v2654 = vunpack.c.l.b16 %v2493
    %v2655 = vunpack.c.h.b16 %v2493
    %v2656 = vunpack.c.l.b16 %v2494
    %v2657 = vunpack.c.h.b16 %v2494
    %v2658 = vunpack.c.l.b16 %v2495
    %v2659 = vunpack.c.h.b16 %v2495
    %v2660 = vunpack.c.l.b16 %v2496
    %v2661 = vunpack.c.h.b16 %v2496
    %v2662 = vunpack.c.l.b16 %v2497
    %v2663 = vunpack.c.h.b16 %v2497
    %v2664 = vunpack.c.l.b16 %v2498
    %v2665 = vunpack.c.h.b16 %v2498
    %v2666 = vunpack.c.l.b16 %v2499
    %v2667 = vunpack.c.h.b16 %v2499
    %v2668 = vunpack.c.l.b16 %v2500
    %v2669 = vunpack.c.h.b16 %v2500
    %v2670 = vunpack.c.l.b16 %v2501
    %v2671 = vunpack.c.h.b16 %v2501
    %v2672 = vunpack.c.l.b16 %v2502
    %v2673 = vunpack.c.h.b16 %v2502
    %v2674 = vunpack.c.l.b16 %v2503
    %v2675 = vunpack.c.h.b16 %v2503
    %v2676 = vunpack.c.l.b16 %v2504
    %v2677 = vunpack.c.h.b16 %v2504
    %v2678 = vunpack.c.l.b16 %v2505
    %v2679 = vunpack.c.h.b16 %v2505
    %v2680 = vunpack.c.l.b16 %v2506
    %v2681 = vunpack.c.h.b16 %v2506
    %v2682 = vunpack.c.l.b16 %v2507
    %v2683 = vunpack.c.h.b16 %v2507
    %v2684 = vunpack.c.l.b16 %v2508
    %v2685 = vunpack.c.h.b16 %v2508
    %v2686 = vunpack.c.l.b16 %v2509
    %v2687 = vunpack.c.h.b16 %v2509
    %v2688 = vunpack.c.l.b16 %v2510
    %v2689 = vunpack.c.h.b16 %v2510
    %v2690 = vunpack.c.l.b16 %v2511
    %v2691 = vunpack.c.h.b16 %v2511
    %v2692 = vunpack.c.l.b16 %v2512
    %v2693 = vunpack.c.h.b16 %v2512
    %v2694 = vunpack.c.l.b16 %v2513
    %v2695 = vunpack.c.h.b16 %v2513
    %v2696 = vunpack.c.l.b16 %v2514
    %v2697 = vunpack.c.h.b16 %v2514
    %v2698 = vunpack.c.l.b16 %v2515
    %v2699 = vunpack.c.h.b16 %v2515
    %v2700 = vunpack.c.l.b16 %v2516
    %v2701 = vunpack.c.h.b16 %v2516
    %v2702 = vunpack.c.l.b16 %v2517
    %v2703 = vunpack.c.h.b16 %v2517
    %v2704 = vunpack.c.l.b16 %v2518
    %v2705 = vunpack.c.h.b16 %v2518
    %v2706 = vunpack.c.l.b16 %v2519
    %v2707 = vunpack.c.h.b16 %v2519
    %v2708 = vunpack.c.l.b16 %v2520
    %v2709 = vunpack.c.h.b16 %v2520
    %v2710 = vunpack.c.l.b16 %v2521
    %v2711 = vunpack.c.h.b16 %v2521
    %v2712 = vunpack.c.l.b16 %v2522
    %v2713 = vunpack.c.h.b16 %v2522
    %v2714 = vunpack.c.l.b16 %v2523
    %v2715 = vunpack.c.h.b16 %v2523
    %v2716 = vunpack.c.l.b16 %v2524
    %v2717 = vunpack.c.h.b16 %v2524
    %v2718 = vunpack.c.l.b16 %v2525
    %v2719 = vunpack.c.h.b16 %v2525
    %v2720 = vunpack.c.l.b16 %v2526
    %v2721 = vunpack.c.h.b16 %v2526
    %v2722 = vunpack.c.l.b16 %v2527
    %v2723 = vunpack.c.h.b16 %v2527
    %v2724 = vunpack.c.l.b16 %v2528
    %v2725 = vunpack.c.h.b16 %v2528
    %v2726 = vunpack.c.l.b16 %v2529
    %v2727 = vunpack.c.h.b16 %v2529
    %v2728 = vunpack.c.l.b16 %v2530
    %v2729 = vunpack.c.h.b16 %v2530
    %v2730 = vunpack.c.l.b16 %v2531
    %v2731 = vunpack.c.h.b16 %v2531
    %v2732 = vunpack.c.l.b16 %v2532
    %v2733 = vunpack.c.h.b16 %v2532
    %v2734 = vunpack.c.l.b16 %v2533
    %v2735 = vunpack.c.h.b16 %v2533
    %v2736 = vunpack.c.l.b16 %v2534
    %v2737 = vunpack.c.h.b16 %v2534
    %v2738 = vunpack.c.l.b16 %v2535
    %v2739 = vunpack.c.h.b16 %v2535
    %v2740 = vunpack.c.l.b16 %v2536
    %v2741 = vunpack.c.h.b16 %v2536
    %v2742 = vunpack.c.l.b16 %v2537
    %v2743 = vunpack.c.h.b16 %v2537
    %v2744 = vunpack.c.l.b16 %v2538
    %v2745 = vunpack.c.h.b16 %v2538
    %v2746 = vunpack.c.l.b16 %v2539
    %v2747 = vunpack.c.h.b16 %v2539
    %v2748 = vunpack.c.l.b16 %v2540
    %v2749 = vunpack.c.h.b16 %v2540
    %v2750 = vunpack.c.l.b16 %v2541
    %v2751 = vunpack.c.h.b16 %v2541
    %v2752 = vunpack.c.l.b16 %v2542
    %v2753 = vunpack.c.h.b16 %v2542
    %v2754 = vunpack.c.l.b16 %v2543
    %v2755 = vunpack.c.h.b16 %v2543
    %v2756 = vunpack.c.l.b16 %v2544
    %v2757 = vunpack.c.h.b16 %v2544
    %v2758 = vunpack.c.l.b16 %v2545
    %v2759 = vunpack.c.h.b16 %v2545
    %v2760 = vunpack.c.l.b16 %v2546
    %v2761 = vunpack.c.h.b16 %v2546
    %v2762 = vpack.c.b16 %v2638, %v2634
    %v2763 = vpack.c.b16 %v2639, %v2635
    %v2764 = vpack.c.b16 %v2640, %v2636
    %v2765 = vpack.c.b16 %v2641, %v2637
    %v2766 = vpack.c.b16 %v2646, %v2642
    %v2767 = vpack.c.b16 %v2647, %v2643
    %v2768 = vpack.c.b16 %v2648, %v2644
    %v2769 = vpack.c.b16 %v2649, %v2645
    %v2770 = vpack.c.b16 %v2654, %v2650
    %v2771 = vpack.c.b16 %v2655, %v2651
    %v2772 = vpack.c.b16 %v2656, %v2652
    %v2773 = vpack.c.b16 %v2657, %v2653
    %v2774 = vpack.c.b16 %v2662, %v2658
    %v2775 = vpack.c.b16 %v2663, %v2659
    %v2776 = vpack.c.b16 %v2664, %v2660
    %v2777 = vpack.c.b16 %v2665, %v2661
    %v2778 = vpack.c.b16 %v2670, %v2666
    %v2779 = vpack.c.b16 %v2671, %v2667
    %v2780 = vpack.c.b16 %v2672, %v2668
    %v2781 = vpack.c.b16 %v2673, %v2669
    %v2782 = vpack.c.b16 %v2678, %v2674
    %v2783 = vpack.c.b16 %v2679, %v2675
    %v2784 = vpack.c.b16 %v2680, %v2676
    %v2785 = vpack.c.b16 %v2681, %v2677
    %v2786 = vpack.c.b16 %v2686, %v2682
    %v2787 = vpack.c.b16 %v2687, %v2683
    %v2788 = vpack.c.b16 %v2688, %v2684
    %v2789 = vpack.c.b16 %v2689, %v2685
    %v2790 = vpack.c.b16 %v2694, %v2690
    %v2791 = vpack.c.b16 %v2695, %v2691
    %v2792 = vpack.c.b16 %v2696, %v2692
    %v2793 = vpack.c.b16 %v2697, %v2693
    %v2794 = vpack.c.b16 %v2702, %v2698
    %v2795 = vpack.c.b16 %v2703, %v2699
    %v2796 = vpack.c.b16 %v2704, %v2700
    %v2797 = vpack.c.b16 %v2705, %v2701
    %v2798 = vpack.c.b16 %v2710, %v2706
    %v2799 = vpack.c.b16 %v2711, %v2707
    %v2800 = vpack.c.b16 %v2712, %v2708
    %v2801 = vpack.c.b16 %v2713, %v2709
    %v2802 = vpack.c.b16 %v2718, %v2714
    %v2803 = vpack.c.b16 %v2719, %v2715
    %v2804 = vpack.c.b16 %v2720, %v2716
    %v2805 = vpack.c.b16 %v2721, %v2717
    %v2806 = vpack.c.b16 %v2726, %v2722
    %v2807 = vpack.c.b16 %v2727, %v2723
    %v2808 = vpack.c.b16 %v2728, %v2724
    %v2809 = vpack.c.b16 %v2729, %v2725
    %v2810 = vpack.c.b16 %v2734, %v2730
    %v2811 = vpack.c.b16 %v2735, %v2731
    %v2812 = vpack.c.b16 %v2736, %v2732
    %v2813 = vpack.c.b16 %v2737, %v2733
    %v2814 = vpack.c.b16 %v2742, %v2738
    %v2815 = vpack.c.b16 %v2743, %v2739
    %v2816 = vpack.c.b16 %v2744, %v2740
    %v2817 = vpack.c.b16 %v2745, %v2741
    %v2818 = vpack.c.b16 %v2750, %v2746
    %v2819 = vpack.c.b16 %v2751, %v2747
    %v2820 = vpack.c.b16 %v2752, %v2748
    %v2821 = vpack.c.b16 %v2753, %v2749
    %v2822 = vpack.c.b16 %v2758, %v2754
    %v2823 = vpack.c.b16 %v2759, %v2755
    %v2824 = vpack.c.b16 %v2760, %v2756
    %v2825 = vpack.c.b16 %v2761, %v2757
    %2890 = vmatprep.subr.bf16.mxu0 %v2763
    %2891 = vmatpush1.bf16.msra.mxu0 %v2762
    %2892 = vmatprep.subr.bf16.mxu0 %v2767
    %2893 = vmatpush1.bf16.msra.mxu0 %v2766
    %2894 = vmatprep.subr.bf16.mxu0 %v2771
    %2895 = vmatpush1.bf16.msra.mxu0 %v2770
    %2896 = vmatprep.subr.bf16.mxu0 %v2775
    %2897 = vmatpush1.bf16.msra.mxu0 %v2774
    %2898 = vmatprep.subr.bf16.mxu0 %v2779
    %2899 = vmatpush1.bf16.msra.mxu0 %v2778
    %2900 = vmatprep.subr.bf16.mxu0 %v2783
    %2901 = vmatpush1.bf16.msra.mxu0 %v2782
    %2902 = vmatprep.subr.bf16.mxu0 %v2787
    %2903 = vmatpush1.bf16.msra.mxu0 %v2786
    %2904 = vmatprep.subr.bf16.mxu0 %v2791
    %2905 = vmatpush1.bf16.msra.mxu0 %v2790
    %2906 = vmatprep.subr.bf16.mxu0 %v2795
    %2907 = vmatpush1.bf16.msra.mxu0 %v2794
    %2908 = vmatprep.subr.bf16.mxu0 %v2799
    %2909 = vmatpush1.bf16.msra.mxu0 %v2798
    %2910 = vmatprep.subr.bf16.mxu0 %v2803
    %2911 = vmatpush1.bf16.msra.mxu0 %v2802
    %2912 = vmatprep.subr.bf16.mxu0 %v2807
    %2913 = vmatpush1.bf16.msra.mxu0 %v2806
    %2914 = vmatprep.subr.bf16.mxu0 %v2811
    %2915 = vmatpush1.bf16.msra.mxu0 %v2810
    %2916 = vmatprep.subr.bf16.mxu0 %v2815
    %2917 = vmatpush1.bf16.msra.mxu0 %v2814
    %2918 = vmatprep.subr.bf16.mxu0 %v2819
    %2919 = vmatpush1.bf16.msra.mxu0 %v2818
    %2920 = vmatprep.subr.bf16.mxu0 %v2823
    %2921 = vmatpush1.bf16.msra.mxu0 %v2822
    %2922 = vmatprep.mubr.bf16.mxu0 %v153
    %2923 = vmatmul.mubr.bf16.gmra.mrb[0].mxu0 %v152
    %v2924 = vpop.f32.mrb[0].mxu0
    %v2925 = vadd.f32 %v2553, %v2924
    %v2926 = vpop.f32.mrb[0].mxu0
    %v2927 = vadd.f32 %v2557, %v2926
    %v2928 = vpop.f32.mrb[0].mxu0
    %v2929 = vadd.f32 %v2553, %v2928
    %v2930 = vpop.f32.mrb[0].mxu0
    %v2931 = vadd.f32 %v2557, %v2930
    %2932 = vdwg.mxu0
    %2933 = vmatprep.subr.bf16.mxu0 %v2765
    %2934 = vmatpush1.bf16.msra.mxu0 %v2764
    %2935 = vmatprep.subr.bf16.mxu0 %v2769
    %2936 = vmatpush1.bf16.msra.mxu0 %v2768
    %2937 = vmatprep.subr.bf16.mxu0 %v2773
    %2938 = vmatpush1.bf16.msra.mxu0 %v2772
    %2939 = vmatprep.subr.bf16.mxu0 %v2777
    %2940 = vmatpush1.bf16.msra.mxu0 %v2776
    %2941 = vmatprep.subr.bf16.mxu0 %v2781
    %2942 = vmatpush1.bf16.msra.mxu0 %v2780
    %2943 = vmatprep.subr.bf16.mxu0 %v2785
    %2944 = vmatpush1.bf16.msra.mxu0 %v2784
    %2945 = vmatprep.subr.bf16.mxu0 %v2789
    %2946 = vmatpush1.bf16.msra.mxu0 %v2788
    %2947 = vmatprep.subr.bf16.mxu0 %v2793
    %2948 = vmatpush1.bf16.msra.mxu0 %v2792
    %2949 = vmatprep.subr.bf16.mxu0 %v2797
    %2950 = vmatpush1.bf16.msra.mxu0 %v2796
    %2951 = vmatprep.subr.bf16.mxu0 %v2801
    %2952 = vmatpush1.bf16.msra.mxu0 %v2800
    %2953 = vmatprep.subr.bf16.mxu0 %v2805
    %2954 = vmatpush1.bf16.msra.mxu0 %v2804
    %2955 = vmatprep.subr.bf16.mxu0 %v2809
    %2956 = vmatpush1.bf16.msra.mxu0 %v2808
    %2957 = vmatprep.subr.bf16.mxu0 %v2813
    %2958 = vmatpush1.bf16.msra.mxu0 %v2812
    %2959 = vmatprep.subr.bf16.mxu0 %v2817
    %2960 = vmatpush1.bf16.msra.mxu0 %v2816
    %2961 = vmatprep.subr.bf16.mxu0 %v2821
    %2962 = vmatpush1.bf16.msra.mxu0 %v2820
    %2963 = vmatprep.subr.bf16.mxu0 %v2825
    %2964 = vmatpush1.bf16.msra.mxu0 %v2824
    %2965 = vmatprep.mubr.bf16.mxu0 %v153
    %2966 = vmatmul.mubr.bf16.gmra.mrb[0].mxu0 %v152
    %v2967 = vpop.f32.mrb[0].mxu0
    %v2968 = vadd.f32 %v2561, %v2967
    %v2969 = vpop.f32.mrb[0].mxu0
    %v2970 = vadd.f32 %v2565, %v2969
    %v2971 = vpop.f32.mrb[0].mxu0
    %v2972 = vadd.f32 %v2561, %v2971
    %v2973 = vpop.f32.mrb[0].mxu0
    %v2974 = vadd.f32 %v2565, %v2973
    %2975 = vdwg.mxu0
    %v2976 = vmax.f32 %v2925, 0.0
    %v2977 = vmax.f32 %v2927, 0.0
    %v2978 = vmax.f32 %v2968, 0.0
    %v2979 = vmax.f32 %v2970, 0.0
    %v2980 = vmax.f32 %v2929, 0.0
    %v2981 = vmax.f32 %v2931, 0.0
    %v2982 = vmax.f32 %v2972, 0.0
    %v2983 = vmax.f32 %v2974, 0.0
    %v2984 = vpack.c.bf16 %v2980, %v2976
    %v2985 = vpack.c.bf16 %v2981, %v2977
    %v2986 = vpack.c.bf16 %v2982, %v2978
    %v2987 = vpack.c.bf16 %v2983, %v2979
    %s2988 = scalar_lea.vmem [#allocation13], 1024
    %v2989 = vld [vmem:[%s2988] sm:$0xff]
    %v2990 = vld [vmem:[%s2988 + $0x8] sm:$0xff]
    %v2991 = vld [vmem:[%s2988 + $0x10] sm:$0xff]
    %v2992 = vld [vmem:[%s2988 + $0x18] sm:$0xff]
    %v2993 = vld [vmem:[%s2988 + $0x20] sm:$0xff]
    %v2994 = vld [vmem:[%s2988 + $0x28] sm:$0xff]
    %v2995 = vld [vmem:[%s2988 + $0x30] sm:$0xff]
    %v2996 = vld [vmem:[%s2988 + $0x38] sm:$0xff]
    %v2997 = vld [vmem:[%s2988 + $0x40] sm:$0xff]
    %v2998 = vld [vmem:[%s2988 + $0x48] sm:$0xff]
    %v2999 = vld [vmem:[%s2988 + $0x50] sm:$0xff]
    %v3000 = vld [vmem:[%s2988 + $0x58] sm:$0xff]
    %v3001 = vld [vmem:[%s2988 + $0x60] sm:$0xff]
    %v3002 = vld [vmem:[%s2988 + $0x68] sm:$0xff]
    %v3003 = vld [vmem:[%s2988 + $0x70] sm:$0xff]
    %v3004 = vld [vmem:[%s2988 + $0x78] sm:$0xff]
    %v3005 = vld [vmem:[%s2988 + $0x80] sm:$0xff]
    %v3006 = vld [vmem:[%s2988 + $0x88] sm:$0xff]
    %v3007 = vld [vmem:[%s2988 + $0x90] sm:$0xff]
    %v3008 = vld [vmem:[%s2988 + $0x98] sm:$0xff]
    %v3009 = vld [vmem:[%s2988 + $0xa0] sm:$0xff]
    %v3010 = vld [vmem:[%s2988 + $0xa8] sm:$0xff]
    %v3011 = vld [vmem:[%s2988 + $0xb0] sm:$0xff]
    %v3012 = vld [vmem:[%s2988 + $0xb8] sm:$0xff]
    %v3013 = vld [vmem:[%s2988 + $0xc0] sm:$0xff]
    %v3014 = vld [vmem:[%s2988 + $0xc8] sm:$0xff]
    %v3015 = vld [vmem:[%s2988 + $0xd0] sm:$0xff]
    %v3016 = vld [vmem:[%s2988 + $0xd8] sm:$0xff]
    %v3017 = vld [vmem:[%s2988 + $0xe0] sm:$0xff]
    %v3018 = vld [vmem:[%s2988 + $0xe8] sm:$0xff]
    %v3019 = vld [vmem:[%s2988 + $0xf0] sm:$0xff]
    %v3020 = vld [vmem:[%s2988 + $0xf8] sm:$0xff]
    %v3021 = vld [vmem:[%s2988 + $0x100] sm:$0xff]
    %v3022 = vld [vmem:[%s2988 + $0x108] sm:$0xff]
    %v3023 = vld [vmem:[%s2988 + $0x110] sm:$0xff]
    %v3024 = vld [vmem:[%s2988 + $0x118] sm:$0xff]
    %v3025 = vld [vmem:[%s2988 + $0x120] sm:$0xff]
    %v3026 = vld [vmem:[%s2988 + $0x128] sm:$0xff]
    %v3027 = vld [vmem:[%s2988 + $0x130] sm:$0xff]
    %v3028 = vld [vmem:[%s2988 + $0x138] sm:$0xff]
    %v3029 = vld [vmem:[%s2988 + $0x140] sm:$0xff]
    %v3030 = vld [vmem:[%s2988 + $0x148] sm:$0xff]
    %v3031 = vld [vmem:[%s2988 + $0x150] sm:$0xff]
    %v3032 = vld [vmem:[%s2988 + $0x158] sm:$0xff]
    %v3033 = vld [vmem:[%s2988 + $0x160] sm:$0xff]
    %v3034 = vld [vmem:[%s2988 + $0x168] sm:$0xff]
    %v3035 = vld [vmem:[%s2988 + $0x170] sm:$0xff]
    %v3036 = vld [vmem:[%s2988 + $0x178] sm:$0xff]
    %v3037 = vld [vmem:[%s2988 + $0x180] sm:$0xff]
    %v3038 = vld [vmem:[%s2988 + $0x188] sm:$0xff]
    %v3039 = vld [vmem:[%s2988 + $0x190] sm:$0xff]
    %v3040 = vld [vmem:[%s2988 + $0x198] sm:$0xff]
    %v3041 = vld [vmem:[%s2988 + $0x1a0] sm:$0xff]
    %v3042 = vld [vmem:[%s2988 + $0x1a8] sm:$0xff]
    %v3043 = vld [vmem:[%s2988 + $0x1b0] sm:$0xff]
    %v3044 = vld [vmem:[%s2988 + $0x1b8] sm:$0xff]
    %v3045 = vld [vmem:[%s2988 + $0x1c0] sm:$0xff]
    %v3046 = vld [vmem:[%s2988 + $0x1c8] sm:$0xff]
    %v3047 = vld [vmem:[%s2988 + $0x1d0] sm:$0xff]
    %v3048 = vld [vmem:[%s2988 + $0x1d8] sm:$0xff]
    %v3049 = vld [vmem:[%s2988 + $0x1e0] sm:$0xff]
    %v3050 = vld [vmem:[%s2988 + $0x1e8] sm:$0xff]
    %v3051 = vld [vmem:[%s2988 + $0x1f0] sm:$0xff]
    %v3052 = vld [vmem:[%s2988 + $0x1f8] sm:$0xff]
    %s3053 = scalar_lea.vmem [#allocation14], 4
    %v3054 = vld [vmem:[%s3053] sm:$0x3]
    %v3056 = vlaneseq
    %v3057 = vshrl.u32 %v3056, 7
    %v3058 = vsub.s32 0, %v3057
    %v3059 = vrot.slane %v3054, %v3058
    %v3060 = vlaneseq
    %v3061 = vshrl.u32 %v3060, 7
    %v3062 = vsub.s32 1, %v3061
    %v3063 = vrot.slane %v3054, %v3062
    %v3130 = vunpack.c.l.b16 %v2989
    %v3131 = vunpack.c.h.b16 %v2989
    %v3132 = vunpack.c.l.b16 %v2990
    %v3133 = vunpack.c.h.b16 %v2990
    %v3134 = vunpack.c.l.b16 %v2991
    %v3135 = vunpack.c.h.b16 %v2991
    %v3136 = vunpack.c.l.b16 %v2992
    %v3137 = vunpack.c.h.b16 %v2992
    %v3138 = vunpack.c.l.b16 %v2993
    %v3139 = vunpack.c.h.b16 %v2993
    %v3140 = vunpack.c.l.b16 %v2994
    %v3141 = vunpack.c.h.b16 %v2994
    %v3142 = vunpack.c.l.b16 %v2995
    %v3143 = vunpack.c.h.b16 %v2995
    %v3144 = vunpack.c.l.b16 %v2996
    %v3145 = vunpack.c.h.b16 %v2996
    %v3146 = vunpack.c.l.b16 %v2997
    %v3147 = vunpack.c.h.b16 %v2997
    %v3148 = vunpack.c.l.b16 %v2998
    %v3149 = vunpack.c.h.b16 %v2998
    %v3150 = vunpack.c.l.b16 %v2999
    %v3151 = vunpack.c.h.b16 %v2999
    %v3152 = vunpack.c.l.b16 %v3000
    %v3153 = vunpack.c.h.b16 %v3000
    %v3154 = vunpack.c.l.b16 %v3001
    %v3155 = vunpack.c.h.b16 %v3001
    %v3156 = vunpack.c.l.b16 %v3002
    %v3157 = vunpack.c.h.b16 %v3002
    %v3158 = vunpack.c.l.b16 %v3003
    %v3159 = vunpack.c.h.b16 %v3003
    %v3160 = vunpack.c.l.b16 %v3004
    %v3161 = vunpack.c.h.b16 %v3004
    %v3162 = vunpack.c.l.b16 %v3005
    %v3163 = vunpack.c.h.b16 %v3005
    %v3164 = vunpack.c.l.b16 %v3006
    %v3165 = vunpack.c.h.b16 %v3006
    %v3166 = vunpack.c.l.b16 %v3007
    %v3167 = vunpack.c.h.b16 %v3007
    %v3168 = vunpack.c.l.b16 %v3008
    %v3169 = vunpack.c.h.b16 %v3008
    %v3170 = vunpack.c.l.b16 %v3009
    %v3171 = vunpack.c.h.b16 %v3009
    %v3172 = vunpack.c.l.b16 %v3010
    %v3173 = vunpack.c.h.b16 %v3010
    %v3174 = vunpack.c.l.b16 %v3011
    %v3175 = vunpack.c.h.b16 %v3011
    %v3176 = vunpack.c.l.b16 %v3012
    %v3177 = vunpack.c.h.b16 %v3012
    %v3178 = vunpack.c.l.b16 %v3013
    %v3179 = vunpack.c.h.b16 %v3013
    %v3180 = vunpack.c.l.b16 %v3014
    %v3181 = vunpack.c.h.b16 %v3014
    %v3182 = vunpack.c.l.b16 %v3015
    %v3183 = vunpack.c.h.b16 %v3015
    %v3184 = vunpack.c.l.b16 %v3016
    %v3185 = vunpack.c.h.b16 %v3016
    %v3186 = vunpack.c.l.b16 %v3017
    %v3187 = vunpack.c.h.b16 %v3017
    %v3188 = vunpack.c.l.b16 %v3018
    %v3189 = vunpack.c.h.b16 %v3018
    %v3190 = vunpack.c.l.b16 %v3019
    %v3191 = vunpack.c.h.b16 %v3019
    %v3192 = vunpack.c.l.b16 %v3020
    %v3193 = vunpack.c.h.b16 %v3020
    %v3194 = vunpack.c.l.b16 %v3021
    %v3195 = vunpack.c.h.b16 %v3021
    %v3196 = vunpack.c.l.b16 %v3022
    %v3197 = vunpack.c.h.b16 %v3022
    %v3198 = vunpack.c.l.b16 %v3023
    %v3199 = vunpack.c.h.b16 %v3023
    %v3200 = vunpack.c.l.b16 %v3024
    %v3201 = vunpack.c.h.b16 %v3024
    %v3202 = vunpack.c.l.b16 %v3025
    %v3203 = vunpack.c.h.b16 %v3025
    %v3204 = vunpack.c.l.b16 %v3026
    %v3205 = vunpack.c.h.b16 %v3026
    %v3206 = vunpack.c.l.b16 %v3027
    %v3207 = vunpack.c.h.b16 %v3027
    %v3208 = vunpack.c.l.b16 %v3028
    %v3209 = vunpack.c.h.b16 %v3028
    %v3210 = vunpack.c.l.b16 %v3029
    %v3211 = vunpack.c.h.b16 %v3029
    %v3212 = vunpack.c.l.b16 %v3030
    %v3213 = vunpack.c.h.b16 %v3030
    %v3214 = vunpack.c.l.b16 %v3031
    %v3215 = vunpack.c.h.b16 %v3031
    %v3216 = vunpack.c.l.b16 %v3032
    %v3217 = vunpack.c.h.b16 %v3032
    %v3218 = vunpack.c.l.b16 %v3033
    %v3219 = vunpack.c.h.b16 %v3033
    %v3220 = vunpack.c.l.b16 %v3034
    %v3221 = vunpack.c.h.b16 %v3034
    %v3222 = vunpack.c.l.b16 %v3035
    %v3223 = vunpack.c.h.b16 %v3035
    %v3224 = vunpack.c.l.b16 %v3036
    %v3225 = vunpack.c.h.b16 %v3036
    %v3226 = vunpack.c.l.b16 %v3037
    %v3227 = vunpack.c.h.b16 %v3037
    %v3228 = vunpack.c.l.b16 %v3038
    %v3229 = vunpack.c.h.b16 %v3038
    %v3230 = vunpack.c.l.b16 %v3039
    %v3231 = vunpack.c.h.b16 %v3039
    %v3232 = vunpack.c.l.b16 %v3040
    %v3233 = vunpack.c.h.b16 %v3040
    %v3234 = vunpack.c.l.b16 %v3041
    %v3235 = vunpack.c.h.b16 %v3041
    %v3236 = vunpack.c.l.b16 %v3042
    %v3237 = vunpack.c.h.b16 %v3042
    %v3238 = vunpack.c.l.b16 %v3043
    %v3239 = vunpack.c.h.b16 %v3043
    %v3240 = vunpack.c.l.b16 %v3044
    %v3241 = vunpack.c.h.b16 %v3044
    %v3242 = vunpack.c.l.b16 %v3045
    %v3243 = vunpack.c.h.b16 %v3045
    %v3244 = vunpack.c.l.b16 %v3046
    %v3245 = vunpack.c.h.b16 %v3046
    %v3246 = vunpack.c.l.b16 %v3047
    %v3247 = vunpack.c.h.b16 %v3047
    %v3248 = vunpack.c.l.b16 %v3048
    %v3249 = vunpack.c.h.b16 %v3048
    %v3250 = vunpack.c.l.b16 %v3049
    %v3251 = vunpack.c.h.b16 %v3049
    %v3252 = vunpack.c.l.b16 %v3050
    %v3253 = vunpack.c.h.b16 %v3050
    %v3254 = vunpack.c.l.b16 %v3051
    %v3255 = vunpack.c.h.b16 %v3051
    %v3256 = vunpack.c.l.b16 %v3052
    %v3257 = vunpack.c.h.b16 %v3052
    %v3258 = vpack.c.b16 %v3132, %v3130
    %v3259 = vpack.c.b16 %v3133, %v3131
    %v3260 = vpack.c.b16 %v3136, %v3134
    %v3261 = vpack.c.b16 %v3137, %v3135
    %v3262 = vpack.c.b16 %v3140, %v3138
    %v3263 = vpack.c.b16 %v3141, %v3139
    %v3264 = vpack.c.b16 %v3144, %v3142
    %v3265 = vpack.c.b16 %v3145, %v3143
    %v3266 = vpack.c.b16 %v3148, %v3146
    %v3267 = vpack.c.b16 %v3149, %v3147
    %v3268 = vpack.c.b16 %v3152, %v3150
    %v3269 = vpack.c.b16 %v3153, %v3151
    %v3270 = vpack.c.b16 %v3156, %v3154
    %v3271 = vpack.c.b16 %v3157, %v3155
    %v3272 = vpack.c.b16 %v3160, %v3158
    %v3273 = vpack.c.b16 %v3161, %v3159
    %v3274 = vpack.c.b16 %v3164, %v3162
    %v3275 = vpack.c.b16 %v3165, %v3163
    %v3276 = vpack.c.b16 %v3168, %v3166
    %v3277 = vpack.c.b16 %v3169, %v3167
    %v3278 = vpack.c.b16 %v3172, %v3170
    %v3279 = vpack.c.b16 %v3173, %v3171
    %v3280 = vpack.c.b16 %v3176, %v3174
    %v3281 = vpack.c.b16 %v3177, %v3175
    %v3282 = vpack.c.b16 %v3180, %v3178
    %v3283 = vpack.c.b16 %v3181, %v3179
    %v3284 = vpack.c.b16 %v3184, %v3182
    %v3285 = vpack.c.b16 %v3185, %v3183
    %v3286 = vpack.c.b16 %v3188, %v3186
    %v3287 = vpack.c.b16 %v3189, %v3187
    %v3288 = vpack.c.b16 %v3192, %v3190
    %v3289 = vpack.c.b16 %v3193, %v3191
    %v3290 = vpack.c.b16 %v3196, %v3194
    %v3291 = vpack.c.b16 %v3197, %v3195
    %v3292 = vpack.c.b16 %v3200, %v3198
    %v3293 = vpack.c.b16 %v3201, %v3199
    %v3294 = vpack.c.b16 %v3204, %v3202
    %v3295 = vpack.c.b16 %v3205, %v3203
    %v3296 = vpack.c.b16 %v3208, %v3206
    %v3297 = vpack.c.b16 %v3209, %v3207
    %v3298 = vpack.c.b16 %v3212, %v3210
    %v3299 = vpack.c.b16 %v3213, %v3211
    %v3300 = vpack.c.b16 %v3216, %v3214
    %v3301 = vpack.c.b16 %v3217, %v3215
    %v3302 = vpack.c.b16 %v3220, %v3218
    %v3303 = vpack.c.b16 %v3221, %v3219
    %v3304 = vpack.c.b16 %v3224, %v3222
    %v3305 = vpack.c.b16 %v3225, %v3223
    %v3306 = vpack.c.b16 %v3228, %v3226
    %v3307 = vpack.c.b16 %v3229, %v3227
    %v3308 = vpack.c.b16 %v3232, %v3230
    %v3309 = vpack.c.b16 %v3233, %v3231
    %v3310 = vpack.c.b16 %v3236, %v3234
    %v3311 = vpack.c.b16 %v3237, %v3235
    %v3312 = vpack.c.b16 %v3240, %v3238
    %v3313 = vpack.c.b16 %v3241, %v3239
    %v3314 = vpack.c.b16 %v3244, %v3242
    %v3315 = vpack.c.b16 %v3245, %v3243
    %v3316 = vpack.c.b16 %v3248, %v3246
    %v3317 = vpack.c.b16 %v3249, %v3247
    %v3318 = vpack.c.b16 %v3252, %v3250
    %v3319 = vpack.c.b16 %v3253, %v3251
    %v3320 = vpack.c.b16 %v3256, %v3254
    %v3321 = vpack.c.b16 %v3257, %v3255
    %3386 = vmatprep.subr.bf16.mxu0 %v3259
    %3387 = vmatpush1.bf16.msra.mxu0 %v3258
    %3388 = vmatprep.subr.bf16.mxu0 %v3261
    %3389 = vmatpush1.bf16.msra.mxu0 %v3260
    %3390 = vmatprep.subr.bf16.mxu0 %v3263
    %3391 = vmatpush1.bf16.msra.mxu0 %v3262
    %3392 = vmatprep.subr.bf16.mxu0 %v3265
    %3393 = vmatpush1.bf16.msra.mxu0 %v3264
    %3394 = vmatprep.subr.bf16.mxu0 %v3267
    %3395 = vmatpush1.bf16.msra.mxu0 %v3266
    %3396 = vmatprep.subr.bf16.mxu0 %v3269
    %3397 = vmatpush1.bf16.msra.mxu0 %v3268
    %3398 = vmatprep.subr.bf16.mxu0 %v3271
    %3399 = vmatpush1.bf16.msra.mxu0 %v3270
    %3400 = vmatprep.subr.bf16.mxu0 %v3273
    %3401 = vmatpush1.bf16.msra.mxu0 %v3272
    %3402 = vmatprep.subr.bf16.mxu0 %v3275
    %3403 = vmatpush1.bf16.msra.mxu0 %v3274
    %3404 = vmatprep.subr.bf16.mxu0 %v3277
    %3405 = vmatpush1.bf16.msra.mxu0 %v3276
    %3406 = vmatprep.subr.bf16.mxu0 %v3279
    %3407 = vmatpush1.bf16.msra.mxu0 %v3278
    %3408 = vmatprep.subr.bf16.mxu0 %v3281
    %3409 = vmatpush1.bf16.msra.mxu0 %v3280
    %3410 = vmatprep.subr.bf16.mxu0 %v3283
    %3411 = vmatpush1.bf16.msra.mxu0 %v3282
    %3412 = vmatprep.subr.bf16.mxu0 %v3285
    %3413 = vmatpush1.bf16.msra.mxu0 %v3284
    %3414 = vmatprep.subr.bf16.mxu0 %v3287
    %3415 = vmatpush1.bf16.msra.mxu0 %v3286
    %3416 = vmatprep.subr.bf16.mxu0 %v3289
    %3417 = vmatpush1.bf16.msra.mxu0 %v3288
    %3418 = vmatprep.mubr.bf16.mxu0 %v2985
    %3419 = vmatmul.mubr.bf16.gmra.mrb[0].mxu0 %v2984
    %v3420 = vpop.f32.mrb[0].mxu0
    %v3421 = vadd.f32 %v3059, %v3420
    %v3422 = vpop.f32.mrb[0].mxu0
    %v3423 = vadd.f32 %v3063, %v3422
    %v3424 = vpop.f32.mrb[0].mxu0
    %v3425 = vadd.f32 %v3059, %v3424
    %v3426 = vpop.f32.mrb[0].mxu0
    %v3427 = vadd.f32 %v3063, %v3426
    %3428 = vdwg.mxu0
    %3429 = vmatprep.subr.bf16.mxu0 %v3291
    %3430 = vmatpush1.bf16.msra.mxu0 %v3290
    %3431 = vmatprep.subr.bf16.mxu0 %v3293
    %3432 = vmatpush1.bf16.msra.mxu0 %v3292
    %3433 = vmatprep.subr.bf16.mxu0 %v3295
    %3434 = vmatpush1.bf16.msra.mxu0 %v3294
    %3435 = vmatprep.subr.bf16.mxu0 %v3297
    %3436 = vmatpush1.bf16.msra.mxu0 %v3296
    %3437 = vmatprep.subr.bf16.mxu0 %v3299
    %3438 = vmatpush1.bf16.msra.mxu0 %v3298
    %3439 = vmatprep.subr.bf16.mxu0 %v3301
    %3440 = vmatpush1.bf16.msra.mxu0 %v3300
    %3441 = vmatprep.subr.bf16.mxu0 %v3303
    %3442 = vmatpush1.bf16.msra.mxu0 %v3302
    %3443 = vmatprep.subr.bf16.mxu0 %v3305
    %3444 = vmatpush1.bf16.msra.mxu0 %v3304
    %3445 = vmatprep.subr.bf16.mxu0 %v3307
    %3446 = vmatpush1.bf16.msra.mxu0 %v3306
    %3447 = vmatprep.subr.bf16.mxu0 %v3309
    %3448 = vmatpush1.bf16.msra.mxu0 %v3308
    %3449 = vmatprep.subr.bf16.mxu0 %v3311
    %3450 = vmatpush1.bf16.msra.mxu0 %v3310
    %3451 = vmatprep.subr.bf16.mxu0 %v3313
    %3452 = vmatpush1.bf16.msra.mxu0 %v3312
    %3453 = vmatprep.subr.bf16.mxu0 %v3315
    %3454 = vmatpush1.bf16.msra.mxu0 %v3314
    %3455 = vmatprep.subr.bf16.mxu0 %v3317
    %3456 = vmatpush1.bf16.msra.mxu0 %v3316
    %3457 = vmatprep.subr.bf16.mxu0 %v3319
    %3458 = vmatpush1.bf16.msra.mxu0 %v3318
    %3459 = vmatprep.subr.bf16.mxu0 %v3321
    %3460 = vmatpush1.bf16.msra.mxu0 %v3320
    %3461 = vmatprep.mubr.bf16.mxu0 %v2987
    %3462 = vmatmul.mubr.bf16.gmra.mrb[0].mxu0 %v2986
    %v3463 = vpop.f32.mrb[0].mxu0
    %v3464 = vadd.f32 %v3421, %v3463
    %v3465 = vpop.f32.mrb[0].mxu0
    %v3466 = vadd.f32 %v3423, %v3465
    %v3467 = vpop.f32.mrb[0].mxu0
    %v3468 = vadd.f32 %v3425, %v3467
    %v3469 = vpop.f32.mrb[0].mxu0
    %v3470 = vadd.f32 %v3427, %v3469
    %3471 = vdwg.mxu0
    %v3472 = vld [vmem:[#allocation2] sm:$0xff]
    %v3473 = vld [vmem:[#allocation2 + $0x8] sm:$0xff]
    %v3474 = vld [vmem:[#allocation2 + $0x10] sm:$0xff]
    %v3475 = vld [vmem:[#allocation2 + $0x18] sm:$0xff]
    %3476 = vset.pattern.permute.xlu0 2
    %3477 = vperm.xlu0 %3476, %v413
    %v3478 = vpop.permute.xlu0 %3477
    %3480 = vset.pattern.permute.xlu0 2
    %3481 = vperm.xlu0 %3480, %v415
    %v3482 = vpop.permute.xlu0 %3481
    %v3484 = vmul.f32 %v3478, %v3464
    %v3485 = vmul.f32 %v3478, %v3466
    %v3486 = vmul.f32 %v3482, %v3468
    %v3487 = vmul.f32 %v3482, %v3470
    %v3488 = vadd.f32 %v3472, %v3484
    %v3489 = vadd.f32 %v3473, %v3485
    %v3490 = vadd.f32 %v3474, %v3486
    %v3491 = vadd.f32 %v3475, %v3487
    %3492 = vst [vmem:[#allocation2] sm:$0xff] %v3488
    %3493 = vst [vmem:[#allocation2 + $0x8] sm:$0xff] %v3489
    %3494 = vst [vmem:[#allocation2 + $0x10] sm:$0xff] %v3490
    %3495 = vst [vmem:[#allocation2 + $0x18] sm:$0xff] %v3491
    %s3496 = scalar_lea.vmem [#allocation10], 1536
    %v3497 = vld [vmem:[%s3496] sm:$0xff]
    %v3498 = vld [vmem:[%s3496 + $0x8] sm:$0xff]
    %v3499 = vld [vmem:[%s3496 + $0x10] sm:$0xff]
    %v3500 = vld [vmem:[%s3496 + $0x18] sm:$0xff]
    %v3501 = vld [vmem:[%s3496 + $0x20] sm:$0xff]
    %v3502 = vld [vmem:[%s3496 + $0x28] sm:$0xff]
    %v3503 = vld [vmem:[%s3496 + $0x30] sm:$0xff]
    %v3504 = vld [vmem:[%s3496 + $0x38] sm:$0xff]
    %v3505 = vld [vmem:[%s3496 + $0x40] sm:$0xff]
    %v3506 = vld [vmem:[%s3496 + $0x48] sm:$0xff]
    %v3507 = vld [vmem:[%s3496 + $0x50] sm:$0xff]
    %v3508 = vld [vmem:[%s3496 + $0x58] sm:$0xff]
    %v3509 = vld [vmem:[%s3496 + $0x60] sm:$0xff]
    %v3510 = vld [vmem:[%s3496 + $0x68] sm:$0xff]
    %v3511 = vld [vmem:[%s3496 + $0x70] sm:$0xff]
    %v3512 = vld [vmem:[%s3496 + $0x78] sm:$0xff]
    %v3513 = vld [vmem:[%s3496 + $0x80] sm:$0xff]
    %v3514 = vld [vmem:[%s3496 + $0x88] sm:$0xff]
    %v3515 = vld [vmem:[%s3496 + $0x90] sm:$0xff]
    %v3516 = vld [vmem:[%s3496 + $0x98] sm:$0xff]
    %v3517 = vld [vmem:[%s3496 + $0xa0] sm:$0xff]
    %v3518 = vld [vmem:[%s3496 + $0xa8] sm:$0xff]
    %v3519 = vld [vmem:[%s3496 + $0xb0] sm:$0xff]
    %v3520 = vld [vmem:[%s3496 + $0xb8] sm:$0xff]
    %v3521 = vld [vmem:[%s3496 + $0xc0] sm:$0xff]
    %v3522 = vld [vmem:[%s3496 + $0xc8] sm:$0xff]
    %v3523 = vld [vmem:[%s3496 + $0xd0] sm:$0xff]
    %v3524 = vld [vmem:[%s3496 + $0xd8] sm:$0xff]
    %v3525 = vld [vmem:[%s3496 + $0xe0] sm:$0xff]
    %v3526 = vld [vmem:[%s3496 + $0xe8] sm:$0xff]
    %v3527 = vld [vmem:[%s3496 + $0xf0] sm:$0xff]
    %v3528 = vld [vmem:[%s3496 + $0xf8] sm:$0xff]
    %v3529 = vld [vmem:[%s3496 + $0x100] sm:$0xff]
    %v3530 = vld [vmem:[%s3496 + $0x108] sm:$0xff]
    %v3531 = vld [vmem:[%s3496 + $0x110] sm:$0xff]
    %v3532 = vld [vmem:[%s3496 + $0x118] sm:$0xff]
    %v3533 = vld [vmem:[%s3496 + $0x120] sm:$0xff]
    %v3534 = vld [vmem:[%s3496 + $0x128] sm:$0xff]
    %v3535 = vld [vmem:[%s3496 + $0x130] sm:$0xff]
    %v3536 = vld [vmem:[%s3496 + $0x138] sm:$0xff]
    %v3537 = vld [vmem:[%s3496 + $0x140] sm:$0xff]
    %v3538 = vld [vmem:[%s3496 + $0x148] sm:$0xff]
    %v3539 = vld [vmem:[%s3496 + $0x150] sm:$0xff]
    %v3540 = vld [vmem:[%s3496 + $0x158] sm:$0xff]
    %v3541 = vld [vmem:[%s3496 + $0x160] sm:$0xff]
    %v3542 = vld [vmem:[%s3496 + $0x168] sm:$0xff]
    %v3543 = vld [vmem:[%s3496 + $0x170] sm:$0xff]
    %v3544 = vld [vmem:[%s3496 + $0x178] sm:$0xff]
    %v3545 = vld [vmem:[%s3496 + $0x180] sm:$0xff]
    %v3546 = vld [vmem:[%s3496 + $0x188] sm:$0xff]
    %v3547 = vld [vmem:[%s3496 + $0x190] sm:$0xff]
    %v3548 = vld [vmem:[%s3496 + $0x198] sm:$0xff]
    %v3549 = vld [vmem:[%s3496 + $0x1a0] sm:$0xff]
    %v3550 = vld [vmem:[%s3496 + $0x1a8] sm:$0xff]
    %v3551 = vld [vmem:[%s3496 + $0x1b0] sm:$0xff]
    %v3552 = vld [vmem:[%s3496 + $0x1b8] sm:$0xff]
    %v3553 = vld [vmem:[%s3496 + $0x1c0] sm:$0xff]
    %v3554 = vld [vmem:[%s3496 + $0x1c8] sm:$0xff]
    %v3555 = vld [vmem:[%s3496 + $0x1d0] sm:$0xff]
    %v3556 = vld [vmem:[%s3496 + $0x1d8] sm:$0xff]
    %v3557 = vld [vmem:[%s3496 + $0x1e0] sm:$0xff]
    %v3558 = vld [vmem:[%s3496 + $0x1e8] sm:$0xff]
    %v3559 = vld [vmem:[%s3496 + $0x1f0] sm:$0xff]
    %v3560 = vld [vmem:[%s3496 + $0x1f8] sm:$0xff]
    %s3561 = scalar_lea.vmem [#allocation11], 12
    %v3562 = vld [vmem:[%s3561] sm:$0xf]
    %v3564 = vlaneseq
    %v3565 = vshrl.u32 %v3564, 7
    %v3566 = vsub.s32 0, %v3565
    %v3567 = vrot.slane %v3562, %v3566
    %v3568 = vlaneseq
    %v3569 = vshrl.u32 %v3568, 7
    %v3570 = vsub.s32 1, %v3569
    %v3571 = vrot.slane %v3562, %v3570
    %v3572 = vlaneseq
    %v3573 = vshrl.u32 %v3572, 7
    %v3574 = vsub.s32 2, %v3573
    %v3575 = vrot.slane %v3562, %v3574
    %v3576 = vlaneseq
    %v3577 = vshrl.u32 %v3576, 7
    %v3578 = vsub.s32 3, %v3577
    %v3579 = vrot.slane %v3562, %v3578
    %v3648 = vunpack.c.l.b16 %v3497
    %v3649 = vunpack.c.h.b16 %v3497
    %v3650 = vunpack.c.l.b16 %v3498
    %v3651 = vunpack.c.h.b16 %v3498
    %v3652 = vunpack.c.l.b16 %v3499
    %v3653 = vunpack.c.h.b16 %v3499
    %v3654 = vunpack.c.l.b16 %v3500
    %v3655 = vunpack.c.h.b16 %v3500
    %v3656 = vunpack.c.l.b16 %v3501
    %v3657 = vunpack.c.h.b16 %v3501
    %v3658 = vunpack.c.l.b16 %v3502
    %v3659 = vunpack.c.h.b16 %v3502
    %v3660 = vunpack.c.l.b16 %v3503
    %v3661 = vunpack.c.h.b16 %v3503
    %v3662 = vunpack.c.l.b16 %v3504
    %v3663 = vunpack.c.h.b16 %v3504
    %v3664 = vunpack.c.l.b16 %v3505
    %v3665 = vunpack.c.h.b16 %v3505
    %v3666 = vunpack.c.l.b16 %v3506
    %v3667 = vunpack.c.h.b16 %v3506
    %v3668 = vunpack.c.l.b16 %v3507
    %v3669 = vunpack.c.h.b16 %v3507
    %v3670 = vunpack.c.l.b16 %v3508
    %v3671 = vunpack.c.h.b16 %v3508
    %v3672 = vunpack.c.l.b16 %v3509
    %v3673 = vunpack.c.h.b16 %v3509
    %v3674 = vunpack.c.l.b16 %v3510
    %v3675 = vunpack.c.h.b16 %v3510
    %v3676 = vunpack.c.l.b16 %v3511
    %v3677 = vunpack.c.h.b16 %v3511
    %v3678 = vunpack.c.l.b16 %v3512
    %v3679 = vunpack.c.h.b16 %v3512
    %v3680 = vunpack.c.l.b16 %v3513
    %v3681 = vunpack.c.h.b16 %v3513
    %v3682 = vunpack.c.l.b16 %v3514
    %v3683 = vunpack.c.h.b16 %v3514
    %v3684 = vunpack.c.l.b16 %v3515
    %v3685 = vunpack.c.h.b16 %v3515
    %v3686 = vunpack.c.l.b16 %v3516
    %v3687 = vunpack.c.h.b16 %v3516
    %v3688 = vunpack.c.l.b16 %v3517
    %v3689 = vunpack.c.h.b16 %v3517
    %v3690 = vunpack.c.l.b16 %v3518
    %v3691 = vunpack.c.h.b16 %v3518
    %v3692 = vunpack.c.l.b16 %v3519
    %v3693 = vunpack.c.h.b16 %v3519
    %v3694 = vunpack.c.l.b16 %v3520
    %v3695 = vunpack.c.h.b16 %v3520
    %v3696 = vunpack.c.l.b16 %v3521
    %v3697 = vunpack.c.h.b16 %v3521
    %v3698 = vunpack.c.l.b16 %v3522
    %v3699 = vunpack.c.h.b16 %v3522
    %v3700 = vunpack.c.l.b16 %v3523
    %v3701 = vunpack.c.h.b16 %v3523
    %v3702 = vunpack.c.l.b16 %v3524
    %v3703 = vunpack.c.h.b16 %v3524
    %v3704 = vunpack.c.l.b16 %v3525
    %v3705 = vunpack.c.h.b16 %v3525
    %v3706 = vunpack.c.l.b16 %v3526
    %v3707 = vunpack.c.h.b16 %v3526
    %v3708 = vunpack.c.l.b16 %v3527
    %v3709 = vunpack.c.h.b16 %v3527
    %v3710 = vunpack.c.l.b16 %v3528
    %v3711 = vunpack.c.h.b16 %v3528
    %v3712 = vunpack.c.l.b16 %v3529
    %v3713 = vunpack.c.h.b16 %v3529
    %v3714 = vunpack.c.l.b16 %v3530
    %v3715 = vunpack.c.h.b16 %v3530
    %v3716 = vunpack.c.l.b16 %v3531
    %v3717 = vunpack.c.h.b16 %v3531
    %v3718 = vunpack.c.l.b16 %v3532
    %v3719 = vunpack.c.h.b16 %v3532
    %v3720 = vunpack.c.l.b16 %v3533
    %v3721 = vunpack.c.h.b16 %v3533
    %v3722 = vunpack.c.l.b16 %v3534
    %v3723 = vunpack.c.h.b16 %v3534
    %v3724 = vunpack.c.l.b16 %v3535
    %v3725 = vunpack.c.h.b16 %v3535
    %v3726 = vunpack.c.l.b16 %v3536
    %v3727 = vunpack.c.h.b16 %v3536
    %v3728 = vunpack.c.l.b16 %v3537
    %v3729 = vunpack.c.h.b16 %v3537
    %v3730 = vunpack.c.l.b16 %v3538
    %v3731 = vunpack.c.h.b16 %v3538
    %v3732 = vunpack.c.l.b16 %v3539
    %v3733 = vunpack.c.h.b16 %v3539
    %v3734 = vunpack.c.l.b16 %v3540
    %v3735 = vunpack.c.h.b16 %v3540
    %v3736 = vunpack.c.l.b16 %v3541
    %v3737 = vunpack.c.h.b16 %v3541
    %v3738 = vunpack.c.l.b16 %v3542
    %v3739 = vunpack.c.h.b16 %v3542
    %v3740 = vunpack.c.l.b16 %v3543
    %v3741 = vunpack.c.h.b16 %v3543
    %v3742 = vunpack.c.l.b16 %v3544
    %v3743 = vunpack.c.h.b16 %v3544
    %v3744 = vunpack.c.l.b16 %v3545
    %v3745 = vunpack.c.h.b16 %v3545
    %v3746 = vunpack.c.l.b16 %v3546
    %v3747 = vunpack.c.h.b16 %v3546
    %v3748 = vunpack.c.l.b16 %v3547
    %v3749 = vunpack.c.h.b16 %v3547
    %v3750 = vunpack.c.l.b16 %v3548
    %v3751 = vunpack.c.h.b16 %v3548
    %v3752 = vunpack.c.l.b16 %v3549
    %v3753 = vunpack.c.h.b16 %v3549
    %v3754 = vunpack.c.l.b16 %v3550
    %v3755 = vunpack.c.h.b16 %v3550
    %v3756 = vunpack.c.l.b16 %v3551
    %v3757 = vunpack.c.h.b16 %v3551
    %v3758 = vunpack.c.l.b16 %v3552
    %v3759 = vunpack.c.h.b16 %v3552
    %v3760 = vunpack.c.l.b16 %v3553
    %v3761 = vunpack.c.h.b16 %v3553
    %v3762 = vunpack.c.l.b16 %v3554
    %v3763 = vunpack.c.h.b16 %v3554
    %v3764 = vunpack.c.l.b16 %v3555
    %v3765 = vunpack.c.h.b16 %v3555
    %v3766 = vunpack.c.l.b16 %v3556
    %v3767 = vunpack.c.h.b16 %v3556
    %v3768 = vunpack.c.l.b16 %v3557
    %v3769 = vunpack.c.h.b16 %v3557
    %v3770 = vunpack.c.l.b16 %v3558
    %v3771 = vunpack.c.h.b16 %v3558
    %v3772 = vunpack.c.l.b16 %v3559
    %v3773 = vunpack.c.h.b16 %v3559
    %v3774 = vunpack.c.l.b16 %v3560
    %v3775 = vunpack.c.h.b16 %v3560
    %v3776 = vpack.c.b16 %v3652, %v3648
    %v3777 = vpack.c.b16 %v3653, %v3649
    %v3778 = vpack.c.b16 %v3654, %v3650
    %v3779 = vpack.c.b16 %v3655, %v3651
    %v3780 = vpack.c.b16 %v3660, %v3656
    %v3781 = vpack.c.b16 %v3661, %v3657
    %v3782 = vpack.c.b16 %v3662, %v3658
    %v3783 = vpack.c.b16 %v3663, %v3659
    %v3784 = vpack.c.b16 %v3668, %v3664
    %v3785 = vpack.c.b16 %v3669, %v3665
    %v3786 = vpack.c.b16 %v3670, %v3666
    %v3787 = vpack.c.b16 %v3671, %v3667
    %v3788 = vpack.c.b16 %v3676, %v3672
    %v3789 = vpack.c.b16 %v3677, %v3673
    %v3790 = vpack.c.b16 %v3678, %v3674
    %v3791 = vpack.c.b16 %v3679, %v3675
    %v3792 = vpack.c.b16 %v3684, %v3680
    %v3793 = vpack.c.b16 %v3685, %v3681
    %v3794 = vpack.c.b16 %v3686, %v3682
    %v3795 = vpack.c.b16 %v3687, %v3683
    %v3796 = vpack.c.b16 %v3692, %v3688
    %v3797 = vpack.c.b16 %v3693, %v3689
    %v3798 = vpack.c.b16 %v3694, %v3690
    %v3799 = vpack.c.b16 %v3695, %v3691
    %v3800 = vpack.c.b16 %v3700, %v3696
    %v3801 = vpack.c.b16 %v3701, %v3697
    %v3802 = vpack.c.b16 %v3702, %v3698
    %v3803 = vpack.c.b16 %v3703, %v3699
    %v3804 = vpack.c.b16 %v3708, %v3704
    %v3805 = vpack.c.b16 %v3709, %v3705
    %v3806 = vpack.c.b16 %v3710, %v3706
    %v3807 = vpack.c.b16 %v3711, %v3707
    %v3808 = vpack.c.b16 %v3716, %v3712
    %v3809 = vpack.c.b16 %v3717, %v3713
    %v3810 = vpack.c.b16 %v3718, %v3714
    %v3811 = vpack.c.b16 %v3719, %v3715
    %v3812 = vpack.c.b16 %v3724, %v3720
    %v3813 = vpack.c.b16 %v3725, %v3721
    %v3814 = vpack.c.b16 %v3726, %v3722
    %v3815 = vpack.c.b16 %v3727, %v3723
    %v3816 = vpack.c.b16 %v3732, %v3728
    %v3817 = vpack.c.b16 %v3733, %v3729
    %v3818 = vpack.c.b16 %v3734, %v3730
    %v3819 = vpack.c.b16 %v3735, %v3731
    %v3820 = vpack.c.b16 %v3740, %v3736
    %v3821 = vpack.c.b16 %v3741, %v3737
    %v3822 = vpack.c.b16 %v3742, %v3738
    %v3823 = vpack.c.b16 %v3743, %v3739
    %v3824 = vpack.c.b16 %v3748, %v3744
    %v3825 = vpack.c.b16 %v3749, %v3745
    %v3826 = vpack.c.b16 %v3750, %v3746
    %v3827 = vpack.c.b16 %v3751, %v3747
    %v3828 = vpack.c.b16 %v3756, %v3752
    %v3829 = vpack.c.b16 %v3757, %v3753
    %v3830 = vpack.c.b16 %v3758, %v3754
    %v3831 = vpack.c.b16 %v3759, %v3755
    %v3832 = vpack.c.b16 %v3764, %v3760
    %v3833 = vpack.c.b16 %v3765, %v3761
    %v3834 = vpack.c.b16 %v3766, %v3762
    %v3835 = vpack.c.b16 %v3767, %v3763
    %v3836 = vpack.c.b16 %v3772, %v3768
    %v3837 = vpack.c.b16 %v3773, %v3769
    %v3838 = vpack.c.b16 %v3774, %v3770
    %v3839 = vpack.c.b16 %v3775, %v3771
    %3904 = vmatprep.subr.bf16.mxu0 %v3777
    %3905 = vmatpush1.bf16.msra.mxu0 %v3776
    %3906 = vmatprep.subr.bf16.mxu0 %v3781
    %3907 = vmatpush1.bf16.msra.mxu0 %v3780
    %3908 = vmatprep.subr.bf16.mxu0 %v3785
    %3909 = vmatpush1.bf16.msra.mxu0 %v3784
    %3910 = vmatprep.subr.bf16.mxu0 %v3789
    %3911 = vmatpush1.bf16.msra.mxu0 %v3788
    %3912 = vmatprep.subr.bf16.mxu0 %v3793
    %3913 = vmatpush1.bf16.msra.mxu0 %v3792
    %3914 = vmatprep.subr.bf16.mxu0 %v3797
    %3915 = vmatpush1.bf16.msra.mxu0 %v3796
    %3916 = vmatprep.subr.bf16.mxu0 %v3801
    %3917 = vmatpush1.bf16.msra.mxu0 %v3800
    %3918 = vmatprep.subr.bf16.mxu0 %v3805
    %3919 = vmatpush1.bf16.msra.mxu0 %v3804
    %3920 = vmatprep.subr.bf16.mxu0 %v3809
    %3921 = vmatpush1.bf16.msra.mxu0 %v3808
    %3922 = vmatprep.subr.bf16.mxu0 %v3813
    %3923 = vmatpush1.bf16.msra.mxu0 %v3812
    %3924 = vmatprep.subr.bf16.mxu0 %v3817
    %3925 = vmatpush1.bf16.msra.mxu0 %v3816
    %3926 = vmatprep.subr.bf16.mxu0 %v3821
    %3927 = vmatpush1.bf16.msra.mxu0 %v3820
    %3928 = vmatprep.subr.bf16.mxu0 %v3825
    %3929 = vmatpush1.bf16.msra.mxu0 %v3824
    %3930 = vmatprep.subr.bf16.mxu0 %v3829
    %3931 = vmatpush1.bf16.msra.mxu0 %v3828
    %3932 = vmatprep.subr.bf16.mxu0 %v3833
    %3933 = vmatpush1.bf16.msra.mxu0 %v3832
    %3934 = vmatprep.subr.bf16.mxu0 %v3837
    %3935 = vmatpush1.bf16.msra.mxu0 %v3836
    %3936 = vmatprep.mubr.bf16.mxu0 %v153
    %3937 = vmatmul.mubr.bf16.gmra.mrb[0].mxu0 %v152
    %v3938 = vpop.f32.mrb[0].mxu0
    %v3939 = vadd.f32 %v3567, %v3938
    %v3940 = vpop.f32.mrb[0].mxu0
    %v3941 = vadd.f32 %v3571, %v3940
    %v3942 = vpop.f32.mrb[0].mxu0
    %v3943 = vadd.f32 %v3567, %v3942
    %v3944 = vpop.f32.mrb[0].mxu0
    %v3945 = vadd.f32 %v3571, %v3944
    %3946 = vdwg.mxu0
    %3947 = vmatprep.subr.bf16.mxu0 %v3779
    %3948 = vmatpush1.bf16.msra.mxu0 %v3778
    %3949 = vmatprep.subr.bf16.mxu0 %v3783
    %3950 = vmatpush1.bf16.msra.mxu0 %v3782
    %3951 = vmatprep.subr.bf16.mxu0 %v3787
    %3952 = vmatpush1.bf16.msra.mxu0 %v3786
    %3953 = vmatprep.subr.bf16.mxu0 %v3791
    %3954 = vmatpush1.bf16.msra.mxu0 %v3790
    %3955 = vmatprep.subr.bf16.mxu0 %v3795
    %3956 = vmatpush1.bf16.msra.mxu0 %v3794
    %3957 = vmatprep.subr.bf16.mxu0 %v3799
    %3958 = vmatpush1.bf16.msra.mxu0 %v3798
    %3959 = vmatprep.subr.bf16.mxu0 %v3803
    %3960 = vmatpush1.bf16.msra.mxu0 %v3802
    %3961 = vmatprep.subr.bf16.mxu0 %v3807
    %3962 = vmatpush1.bf16.msra.mxu0 %v3806
    %3963 = vmatprep.subr.bf16.mxu0 %v3811
    %3964 = vmatpush1.bf16.msra.mxu0 %v3810
    %3965 = vmatprep.subr.bf16.mxu0 %v3815
    %3966 = vmatpush1.bf16.msra.mxu0 %v3814
    %3967 = vmatprep.subr.bf16.mxu0 %v3819
    %3968 = vmatpush1.bf16.msra.mxu0 %v3818
    %3969 = vmatprep.subr.bf16.mxu0 %v3823
    %3970 = vmatpush1.bf16.msra.mxu0 %v3822
    %3971 = vmatprep.subr.bf16.mxu0 %v3827
    %3972 = vmatpush1.bf16.msra.mxu0 %v3826
    %3973 = vmatprep.subr.bf16.mxu0 %v3831
    %3974 = vmatpush1.bf16.msra.mxu0 %v3830
    %3975 = vmatprep.subr.bf16.mxu0 %v3835
    %3976 = vmatpush1.bf16.msra.mxu0 %v3834
    %3977 = vmatprep.subr.bf16.mxu0 %v3839
    %3978 = vmatpush1.bf16.msra.mxu0 %v3838
    %3979 = vmatprep.mubr.bf16.mxu0 %v153
    %3980 = vmatmul.mubr.bf16.gmra.mrb[0].mxu0 %v152
    %v3981 = vpop.f32.mrb[0].mxu0
    %v3982 = vadd.f32 %v3575, %v3981
    %v3983 = vpop.f32.mrb[0].mxu0
    %v3984 = vadd.f32 %v3579, %v3983
    %v3985 = vpop.f32.mrb[0].mxu0
    %v3986 = vadd.f32 %v3575, %v3985
    %v3987 = vpop.f32.mrb[0].mxu0
    %v3988 = vadd.f32 %v3579, %v3987
    %3989 = vdwg.mxu0
    %v3990 = vmax.f32 %v3939, 0.0
    %v3991 = vmax.f32 %v3941, 0.0
    %v3992 = vmax.f32 %v3982, 0.0
    %v3993 = vmax.f32 %v3984, 0.0
    %v3994 = vmax.f32 %v3943, 0.0
    %v3995 = vmax.f32 %v3945, 0.0
    %v3996 = vmax.f32 %v3986, 0.0
    %v3997 = vmax.f32 %v3988, 0.0
    %v3998 = vpack.c.bf16 %v3994, %v3990
    %v3999 = vpack.c.bf16 %v3995, %v3991
    %v4000 = vpack.c.bf16 %v3996, %v3992
    %v4001 = vpack.c.bf16 %v3997, %v3993
    %s4002 = scalar_lea.vmem [#allocation13], 1536
    %v4003 = vld [vmem:[%s4002] sm:$0xff]
    %v4004 = vld [vmem:[%s4002 + $0x8] sm:$0xff]
    %v4005 = vld [vmem:[%s4002 + $0x10] sm:$0xff]
    %v4006 = vld [vmem:[%s4002 + $0x18] sm:$0xff]
    %v4007 = vld [vmem:[%s4002 + $0x20] sm:$0xff]
    %v4008 = vld [vmem:[%s4002 + $0x28] sm:$0xff]
    %v4009 = vld [vmem:[%s4002 + $0x30] sm:$0xff]
    %v4010 = vld [vmem:[%s4002 + $0x38] sm:$0xff]
    %v4011 = vld [vmem:[%s4002 + $0x40] sm:$0xff]
    %v4012 = vld [vmem:[%s4002 + $0x48] sm:$0xff]
    %v4013 = vld [vmem:[%s4002 + $0x50] sm:$0xff]
    %v4014 = vld [vmem:[%s4002 + $0x58] sm:$0xff]
    %v4015 = vld [vmem:[%s4002 + $0x60] sm:$0xff]
    %v4016 = vld [vmem:[%s4002 + $0x68] sm:$0xff]
    %v4017 = vld [vmem:[%s4002 + $0x70] sm:$0xff]
    %v4018 = vld [vmem:[%s4002 + $0x78] sm:$0xff]
    %v4019 = vld [vmem:[%s4002 + $0x80] sm:$0xff]
    %v4020 = vld [vmem:[%s4002 + $0x88] sm:$0xff]
    %v4021 = vld [vmem:[%s4002 + $0x90] sm:$0xff]
    %v4022 = vld [vmem:[%s4002 + $0x98] sm:$0xff]
    %v4023 = vld [vmem:[%s4002 + $0xa0] sm:$0xff]
    %v4024 = vld [vmem:[%s4002 + $0xa8] sm:$0xff]
    %v4025 = vld [vmem:[%s4002 + $0xb0] sm:$0xff]
    %v4026 = vld [vmem:[%s4002 + $0xb8] sm:$0xff]
    %v4027 = vld [vmem:[%s4002 + $0xc0] sm:$0xff]
    %v4028 = vld [vmem:[%s4002 + $0xc8] sm:$0xff]
    %v4029 = vld [vmem:[%s4002 + $0xd0] sm:$0xff]
    %v4030 = vld [vmem:[%s4002 + $0xd8] sm:$0xff]
    %v4031 = vld [vmem:[%s4002 + $0xe0] sm:$0xff]
    %v4032 = vld [vmem:[%s4002 + $0xe8] sm:$0xff]
    %v4033 = vld [vmem:[%s4002 + $0xf0] sm:$0xff]
    %v4034 = vld [vmem:[%s4002 + $0xf8] sm:$0xff]
    %v4035 = vld [vmem:[%s4002 + $0x100] sm:$0xff]
    %v4036 = vld [vmem:[%s4002 + $0x108] sm:$0xff]
    %v4037 = vld [vmem:[%s4002 + $0x110] sm:$0xff]
    %v4038 = vld [vmem:[%s4002 + $0x118] sm:$0xff]
    %v4039 = vld [vmem:[%s4002 + $0x120] sm:$0xff]
    %v4040 = vld [vmem:[%s4002 + $0x128] sm:$0xff]
    %v4041 = vld [vmem:[%s4002 + $0x130] sm:$0xff]
    %v4042 = vld [vmem:[%s4002 + $0x138] sm:$0xff]
    %v4043 = vld [vmem:[%s4002 + $0x140] sm:$0xff]
    %v4044 = vld [vmem:[%s4002 + $0x148] sm:$0xff]
    %v4045 = vld [vmem:[%s4002 + $0x150] sm:$0xff]
    %v4046 = vld [vmem:[%s4002 + $0x158] sm:$0xff]
    %v4047 = vld [vmem:[%s4002 + $0x160] sm:$0xff]
    %v4048 = vld [vmem:[%s4002 + $0x168] sm:$0xff]
    %v4049 = vld [vmem:[%s4002 + $0x170] sm:$0xff]
    %v4050 = vld [vmem:[%s4002 + $0x178] sm:$0xff]
    %v4051 = vld [vmem:[%s4002 + $0x180] sm:$0xff]
    %v4052 = vld [vmem:[%s4002 + $0x188] sm:$0xff]
    %v4053 = vld [vmem:[%s4002 + $0x190] sm:$0xff]
    %v4054 = vld [vmem:[%s4002 + $0x198] sm:$0xff]
    %v4055 = vld [vmem:[%s4002 + $0x1a0] sm:$0xff]
    %v4056 = vld [vmem:[%s4002 + $0x1a8] sm:$0xff]
    %v4057 = vld [vmem:[%s4002 + $0x1b0] sm:$0xff]
    %v4058 = vld [vmem:[%s4002 + $0x1b8] sm:$0xff]
    %v4059 = vld [vmem:[%s4002 + $0x1c0] sm:$0xff]
    %v4060 = vld [vmem:[%s4002 + $0x1c8] sm:$0xff]
    %v4061 = vld [vmem:[%s4002 + $0x1d0] sm:$0xff]
    %v4062 = vld [vmem:[%s4002 + $0x1d8] sm:$0xff]
    %v4063 = vld [vmem:[%s4002 + $0x1e0] sm:$0xff]
    %v4064 = vld [vmem:[%s4002 + $0x1e8] sm:$0xff]
    %v4065 = vld [vmem:[%s4002 + $0x1f0] sm:$0xff]
    %v4066 = vld [vmem:[%s4002 + $0x1f8] sm:$0xff]
    %s4067 = scalar_lea.vmem [#allocation14], 6
    %v4068 = vld [vmem:[%s4067] sm:$0x3]
    %v4070 = vlaneseq
    %v4071 = vshrl.u32 %v4070, 7
    %v4072 = vsub.s32 0, %v4071
    %v4073 = vrot.slane %v4068, %v4072
    %v4074 = vlaneseq
    %v4075 = vshrl.u32 %v4074, 7
    %v4076 = vsub.s32 1, %v4075
    %v4077 = vrot.slane %v4068, %v4076
    %v4144 = vunpack.c.l.b16 %v4003
    %v4145 = vunpack.c.h.b16 %v4003
    %v4146 = vunpack.c.l.b16 %v4004
    %v4147 = vunpack.c.h.b16 %v4004
    %v4148 = vunpack.c.l.b16 %v4005
    %v4149 = vunpack.c.h.b16 %v4005
    %v4150 = vunpack.c.l.b16 %v4006
    %v4151 = vunpack.c.h.b16 %v4006
    %v4152 = vunpack.c.l.b16 %v4007
    %v4153 = vunpack.c.h.b16 %v4007
    %v4154 = vunpack.c.l.b16 %v4008
    %v4155 = vunpack.c.h.b16 %v4008
    %v4156 = vunpack.c.l.b16 %v4009
    %v4157 = vunpack.c.h.b16 %v4009
    %v4158 = vunpack.c.l.b16 %v4010
    %v4159 = vunpack.c.h.b16 %v4010
    %v4160 = vunpack.c.l.b16 %v4011
    %v4161 = vunpack.c.h.b16 %v4011
    %v4162 = vunpack.c.l.b16 %v4012
    %v4163 = vunpack.c.h.b16 %v4012
    %v4164 = vunpack.c.l.b16 %v4013
    %v4165 = vunpack.c.h.b16 %v4013
    %v4166 = vunpack.c.l.b16 %v4014
    %v4167 = vunpack.c.h.b16 %v4014
    %v4168 = vunpack.c.l.b16 %v4015
    %v4169 = vunpack.c.h.b16 %v4015
    %v4170 = vunpack.c.l.b16 %v4016
    %v4171 = vunpack.c.h.b16 %v4016
    %v4172 = vunpack.c.l.b16 %v4017
    %v4173 = vunpack.c.h.b16 %v4017
    %v4174 = vunpack.c.l.b16 %v4018
    %v4175 = vunpack.c.h.b16 %v4018
    %v4176 = vunpack.c.l.b16 %v4019
    %v4177 = vunpack.c.h.b16 %v4019
    %v4178 = vunpack.c.l.b16 %v4020
    %v4179 = vunpack.c.h.b16 %v4020
    %v4180 = vunpack.c.l.b16 %v4021
    %v4181 = vunpack.c.h.b16 %v4021
    %v4182 = vunpack.c.l.b16 %v4022
    %v4183 = vunpack.c.h.b16 %v4022
    %v4184 = vunpack.c.l.b16 %v4023
    %v4185 = vunpack.c.h.b16 %v4023
    %v4186 = vunpack.c.l.b16 %v4024
    %v4187 = vunpack.c.h.b16 %v4024
    %v4188 = vunpack.c.l.b16 %v4025
    %v4189 = vunpack.c.h.b16 %v4025
    %v4190 = vunpack.c.l.b16 %v4026
    %v4191 = vunpack.c.h.b16 %v4026
    %v4192 = vunpack.c.l.b16 %v4027
    %v4193 = vunpack.c.h.b16 %v4027
    %v4194 = vunpack.c.l.b16 %v4028
    %v4195 = vunpack.c.h.b16 %v4028
    %v4196 = vunpack.c.l.b16 %v4029
    %v4197 = vunpack.c.h.b16 %v4029
    %v4198 = vunpack.c.l.b16 %v4030
    %v4199 = vunpack.c.h.b16 %v4030
    %v4200 = vunpack.c.l.b16 %v4031
    %v4201 = vunpack.c.h.b16 %v4031
    %v4202 = vunpack.c.l.b16 %v4032
    %v4203 = vunpack.c.h.b16 %v4032
    %v4204 = vunpack.c.l.b16 %v4033
    %v4205 = vunpack.c.h.b16 %v4033
    %v4206 = vunpack.c.l.b16 %v4034
    %v4207 = vunpack.c.h.b16 %v4034
    %v4208 = vunpack.c.l.b16 %v4035
    %v4209 = vunpack.c.h.b16 %v4035
    %v4210 = vunpack.c.l.b16 %v4036
    %v4211 = vunpack.c.h.b16 %v4036
    %v4212 = vunpack.c.l.b16 %v4037
    %v4213 = vunpack.c.h.b16 %v4037
    %v4214 = vunpack.c.l.b16 %v4038
    %v4215 = vunpack.c.h.b16 %v4038
    %v4216 = vunpack.c.l.b16 %v4039
    %v4217 = vunpack.c.h.b16 %v4039
    %v4218 = vunpack.c.l.b16 %v4040
    %v4219 = vunpack.c.h.b16 %v4040
    %v4220 = vunpack.c.l.b16 %v4041
    %v4221 = vunpack.c.h.b16 %v4041
    %v4222 = vunpack.c.l.b16 %v4042
    %v4223 = vunpack.c.h.b16 %v4042
    %v4224 = vunpack.c.l.b16 %v4043
    %v4225 = vunpack.c.h.b16 %v4043
    %v4226 = vunpack.c.l.b16 %v4044
    %v4227 = vunpack.c.h.b16 %v4044
    %v4228 = vunpack.c.l.b16 %v4045
    %v4229 = vunpack.c.h.b16 %v4045
    %v4230 = vunpack.c.l.b16 %v4046
    %v4231 = vunpack.c.h.b16 %v4046
    %v4232 = vunpack.c.l.b16 %v4047
    %v4233 = vunpack.c.h.b16 %v4047
    %v4234 = vunpack.c.l.b16 %v4048
    %v4235 = vunpack.c.h.b16 %v4048
    %v4236 = vunpack.c.l.b16 %v4049
    %v4237 = vunpack.c.h.b16 %v4049
    %v4238 = vunpack.c.l.b16 %v4050
    %v4239 = vunpack.c.h.b16 %v4050
    %v4240 = vunpack.c.l.b16 %v4051
    %v4241 = vunpack.c.h.b16 %v4051
    %v4242 = vunpack.c.l.b16 %v4052
    %v4243 = vunpack.c.h.b16 %v4052
    %v4244 = vunpack.c.l.b16 %v4053
    %v4245 = vunpack.c.h.b16 %v4053
    %v4246 = vunpack.c.l.b16 %v4054
    %v4247 = vunpack.c.h.b16 %v4054
    %v4248 = vunpack.c.l.b16 %v4055
    %v4249 = vunpack.c.h.b16 %v4055
    %v4250 = vunpack.c.l.b16 %v4056
    %v4251 = vunpack.c.h.b16 %v4056
    %v4252 = vunpack.c.l.b16 %v4057
    %v4253 = vunpack.c.h.b16 %v4057
    %v4254 = vunpack.c.l.b16 %v4058
    %v4255 = vunpack.c.h.b16 %v4058
    %v4256 = vunpack.c.l.b16 %v4059
    %v4257 = vunpack.c.h.b16 %v4059
    %v4258 = vunpack.c.l.b16 %v4060
    %v4259 = vunpack.c.h.b16 %v4060
    %v4260 = vunpack.c.l.b16 %v4061
    %v4261 = vunpack.c.h.b16 %v4061
    %v4262 = vunpack.c.l.b16 %v4062
    %v4263 = vunpack.c.h.b16 %v4062
    %v4264 = vunpack.c.l.b16 %v4063
    %v4265 = vunpack.c.h.b16 %v4063
    %v4266 = vunpack.c.l.b16 %v4064
    %v4267 = vunpack.c.h.b16 %v4064
    %v4268 = vunpack.c.l.b16 %v4065
    %v4269 = vunpack.c.h.b16 %v4065
    %v4270 = vunpack.c.l.b16 %v4066
    %v4271 = vunpack.c.h.b16 %v4066
    %v4272 = vpack.c.b16 %v4146, %v4144
    %v4273 = vpack.c.b16 %v4147, %v4145
    %v4274 = vpack.c.b16 %v4150, %v4148
    %v4275 = vpack.c.b16 %v4151, %v4149
    %v4276 = vpack.c.b16 %v4154, %v4152
    %v4277 = vpack.c.b16 %v4155, %v4153
    %v4278 = vpack.c.b16 %v4158, %v4156
    %v4279 = vpack.c.b16 %v4159, %v4157
    %v4280 = vpack.c.b16 %v4162, %v4160
    %v4281 = vpack.c.b16 %v4163, %v4161
    %v4282 = vpack.c.b16 %v4166, %v4164
    %v4283 = vpack.c.b16 %v4167, %v4165
    %v4284 = vpack.c.b16 %v4170, %v4168
    %v4285 = vpack.c.b16 %v4171, %v4169
    %v4286 = vpack.c.b16 %v4174, %v4172
    %v4287 = vpack.c.b16 %v4175, %v4173
    %v4288 = vpack.c.b16 %v4178, %v4176
    %v4289 = vpack.c.b16 %v4179, %v4177
    %v4290 = vpack.c.b16 %v4182, %v4180
    %v4291 = vpack.c.b16 %v4183, %v4181
    %v4292 = vpack.c.b16 %v4186, %v4184
    %v4293 = vpack.c.b16 %v4187, %v4185
    %v4294 = vpack.c.b16 %v4190, %v4188
    %v4295 = vpack.c.b16 %v4191, %v4189
    %v4296 = vpack.c.b16 %v4194, %v4192
    %v4297 = vpack.c.b16 %v4195, %v4193
    %v4298 = vpack.c.b16 %v4198, %v4196
    %v4299 = vpack.c.b16 %v4199, %v4197
    %v4300 = vpack.c.b16 %v4202, %v4200
    %v4301 = vpack.c.b16 %v4203, %v4201
    %v4302 = vpack.c.b16 %v4206, %v4204
    %v4303 = vpack.c.b16 %v4207, %v4205
    %v4304 = vpack.c.b16 %v4210, %v4208
    %v4305 = vpack.c.b16 %v4211, %v4209
    %v4306 = vpack.c.b16 %v4214, %v4212
    %v4307 = vpack.c.b16 %v4215, %v4213
    %v4308 = vpack.c.b16 %v4218, %v4216
    %v4309 = vpack.c.b16 %v4219, %v4217
    %v4310 = vpack.c.b16 %v4222, %v4220
    %v4311 = vpack.c.b16 %v4223, %v4221
    %v4312 = vpack.c.b16 %v4226, %v4224
    %v4313 = vpack.c.b16 %v4227, %v4225
    %v4314 = vpack.c.b16 %v4230, %v4228
    %v4315 = vpack.c.b16 %v4231, %v4229
    %v4316 = vpack.c.b16 %v4234, %v4232
    %v4317 = vpack.c.b16 %v4235, %v4233
    %v4318 = vpack.c.b16 %v4238, %v4236
    %v4319 = vpack.c.b16 %v4239, %v4237
    %v4320 = vpack.c.b16 %v4242, %v4240
    %v4321 = vpack.c.b16 %v4243, %v4241
    %v4322 = vpack.c.b16 %v4246, %v4244
    %v4323 = vpack.c.b16 %v4247, %v4245
    %v4324 = vpack.c.b16 %v4250, %v4248
    %v4325 = vpack.c.b16 %v4251, %v4249
    %v4326 = vpack.c.b16 %v4254, %v4252
    %v4327 = vpack.c.b16 %v4255, %v4253
    %v4328 = vpack.c.b16 %v4258, %v4256
    %v4329 = vpack.c.b16 %v4259, %v4257
    %v4330 = vpack.c.b16 %v4262, %v4260
    %v4331 = vpack.c.b16 %v4263, %v4261
    %v4332 = vpack.c.b16 %v4266, %v4264
    %v4333 = vpack.c.b16 %v4267, %v4265
    %v4334 = vpack.c.b16 %v4270, %v4268
    %v4335 = vpack.c.b16 %v4271, %v4269
    %4400 = vmatprep.subr.bf16.mxu0 %v4273
    %4401 = vmatpush1.bf16.msra.mxu0 %v4272
    %4402 = vmatprep.subr.bf16.mxu0 %v4275
    %4403 = vmatpush1.bf16.msra.mxu0 %v4274
    %4404 = vmatprep.subr.bf16.mxu0 %v4277
    %4405 = vmatpush1.bf16.msra.mxu0 %v4276
    %4406 = vmatprep.subr.bf16.mxu0 %v4279
    %4407 = vmatpush1.bf16.msra.mxu0 %v4278
    %4408 = vmatprep.subr.bf16.mxu0 %v4281
    %4409 = vmatpush1.bf16.msra.mxu0 %v4280
    %4410 = vmatprep.subr.bf16.mxu0 %v4283
    %4411 = vmatpush1.bf16.msra.mxu0 %v4282
    %4412 = vmatprep.subr.bf16.mxu0 %v4285
    %4413 = vmatpush1.bf16.msra.mxu0 %v4284
    %4414 = vmatprep.subr.bf16.mxu0 %v4287
    %4415 = vmatpush1.bf16.msra.mxu0 %v4286
    %4416 = vmatprep.subr.bf16.mxu0 %v4289
    %4417 = vmatpush1.bf16.msra.mxu0 %v4288
    %4418 = vmatprep.subr.bf16.mxu0 %v4291
    %4419 = vmatpush1.bf16.msra.mxu0 %v4290
    %4420 = vmatprep.subr.bf16.mxu0 %v4293
    %4421 = vmatpush1.bf16.msra.mxu0 %v4292
    %4422 = vmatprep.subr.bf16.mxu0 %v4295
    %4423 = vmatpush1.bf16.msra.mxu0 %v4294
    %4424 = vmatprep.subr.bf16.mxu0 %v4297
    %4425 = vmatpush1.bf16.msra.mxu0 %v4296
    %4426 = vmatprep.subr.bf16.mxu0 %v4299
    %4427 = vmatpush1.bf16.msra.mxu0 %v4298
    %4428 = vmatprep.subr.bf16.mxu0 %v4301
    %4429 = vmatpush1.bf16.msra.mxu0 %v4300
    %4430 = vmatprep.subr.bf16.mxu0 %v4303
    %4431 = vmatpush1.bf16.msra.mxu0 %v4302
    %4432 = vmatprep.mubr.bf16.mxu0 %v3999
    %4433 = vmatmul.mubr.bf16.gmra.mrb[0].mxu0 %v3998
    %v4434 = vpop.f32.mrb[0].mxu0
    %v4435 = vadd.f32 %v4073, %v4434
    %v4436 = vpop.f32.mrb[0].mxu0
    %v4437 = vadd.f32 %v4077, %v4436
    %v4438 = vpop.f32.mrb[0].mxu0
    %v4439 = vadd.f32 %v4073, %v4438
    %v4440 = vpop.f32.mrb[0].mxu0
    %v4441 = vadd.f32 %v4077, %v4440
    %4442 = vdwg.mxu0
    %4443 = vmatprep.subr.bf16.mxu0 %v4305
    %4444 = vmatpush1.bf16.msra.mxu0 %v4304
    %4445 = vmatprep.subr.bf16.mxu0 %v4307
    %4446 = vmatpush1.bf16.msra.mxu0 %v4306
    %4447 = vmatprep.subr.bf16.mxu0 %v4309
    %4448 = vmatpush1.bf16.msra.mxu0 %v4308
    %4449 = vmatprep.subr.bf16.mxu0 %v4311
    %4450 = vmatpush1.bf16.msra.mxu0 %v4310
    %4451 = vmatprep.subr.bf16.mxu0 %v4313
    %4452 = vmatpush1.bf16.msra.mxu0 %v4312
    %4453 = vmatprep.subr.bf16.mxu0 %v4315
    %4454 = vmatpush1.bf16.msra.mxu0 %v4314
    %4455 = vmatprep.subr.bf16.mxu0 %v4317
    %4456 = vmatpush1.bf16.msra.mxu0 %v4316
    %4457 = vmatprep.subr.bf16.mxu0 %v4319
    %4458 = vmatpush1.bf16.msra.mxu0 %v4318
    %4459 = vmatprep.subr.bf16.mxu0 %v4321
    %4460 = vmatpush1.bf16.msra.mxu0 %v4320
    %4461 = vmatprep.subr.bf16.mxu0 %v4323
    %4462 = vmatpush1.bf16.msra.mxu0 %v4322
    %4463 = vmatprep.subr.bf16.mxu0 %v4325
    %4464 = vmatpush1.bf16.msra.mxu0 %v4324
    %4465 = vmatprep.subr.bf16.mxu0 %v4327
    %4466 = vmatpush1.bf16.msra.mxu0 %v4326
    %4467 = vmatprep.subr.bf16.mxu0 %v4329
    %4468 = vmatpush1.bf16.msra.mxu0 %v4328
    %4469 = vmatprep.subr.bf16.mxu0 %v4331
    %4470 = vmatpush1.bf16.msra.mxu0 %v4330
    %4471 = vmatprep.subr.bf16.mxu0 %v4333
    %4472 = vmatpush1.bf16.msra.mxu0 %v4332
    %4473 = vmatprep.subr.bf16.mxu0 %v4335
    %4474 = vmatpush1.bf16.msra.mxu0 %v4334
    %4475 = vmatprep.mubr.bf16.mxu0 %v4001
    %4476 = vmatmul.mubr.bf16.gmra.mrb[0].mxu0 %v4000
    %v4477 = vpop.f32.mrb[0].mxu0
    %v4478 = vadd.f32 %v4435, %v4477
    %v4479 = vpop.f32.mrb[0].mxu0
    %v4480 = vadd.f32 %v4437, %v4479
    %v4481 = vpop.f32.mrb[0].mxu0
    %v4482 = vadd.f32 %v4439, %v4481
    %v4483 = vpop.f32.mrb[0].mxu0
    %v4484 = vadd.f32 %v4441, %v4483
    %4485 = vdwg.mxu0
    %v4486 = vld [vmem:[#allocation2] sm:$0xff]
    %v4487 = vld [vmem:[#allocation2 + $0x8] sm:$0xff]
    %v4488 = vld [vmem:[#allocation2 + $0x10] sm:$0xff]
    %v4489 = vld [vmem:[#allocation2 + $0x18] sm:$0xff]
    %4490 = vset.pattern.permute.xlu0 3
    %4491 = vperm.xlu0 %4490, %v413
    %v4492 = vpop.permute.xlu0 %4491
    %4494 = vset.pattern.permute.xlu0 3
    %4495 = vperm.xlu0 %4494, %v415
    %v4496 = vpop.permute.xlu0 %4495
    %v4498 = vmul.f32 %v4492, %v4478
    %v4499 = vmul.f32 %v4492, %v4480
    %v4500 = vmul.f32 %v4496, %v4482
    %v4501 = vmul.f32 %v4496, %v4484
    %v4502 = vadd.f32 %v4486, %v4498
    %v4503 = vadd.f32 %v4487, %v4499
    %v4504 = vadd.f32 %v4488, %v4500
    %v4505 = vadd.f32 %v4489, %v4501
    %4506 = vst [vmem:[#allocation2] sm:$0xff] %v4502
    %4507 = vst [vmem:[#allocation2 + $0x8] sm:$0xff] %v4503
    %4508 = vst [vmem:[#allocation2 + $0x10] sm:$0xff] %v4504
    %4509 = vst [vmem:[#allocation2 + $0x18] sm:$0xff] %v4505
    %v4510 = vld [vmem:[#allocation2] sm:$0xff]
    %v4511 = vld [vmem:[#allocation2 + $0x8] sm:$0xff]
    %v4512 = vld [vmem:[#allocation2 + $0x10] sm:$0xff]
    %v4513 = vld [vmem:[#allocation2 + $0x18] sm:$0xff]
    %v4514 = vpack.c.bf16 %v4512, %v4510
    %v4515 = vpack.c.bf16 %v4513, %v4511
    %v4518 = vunpack.c.l.b16 %v4514
    %v4519 = vunpack.c.l.b16 %v4515
    %v4520 = vunpack.c.h.b16 %v4514
    %v4521 = vunpack.c.h.b16 %v4515
    %v4522 = vpack.c.b16 %v4519, %v4518
    %v4523 = vpack.c.b16 %v4521, %v4520
    %4526 = vst [vmem:[#allocation16] sm:$0xff] %v4522
    %4527 = vst [vmem:[#allocation16 + $0x8] sm:$0xff] %v4523
    // Predicated region
    $region50: #{embedding_moe_forward.3} parent=1 // pred_check
      _
    $region51: #{embedding_moe_forward.3} parent=1 // pred_check_branch
      %4529 = sbr.rel (0) target = $region53
    $region52: #{embedding_moe_forward.3} parent=1 // pred_region
      %s4531 = ssub.s32 256, 256
      %4532 = vsyncadd [#allocation7], %s4531
      %s4533 = sshll.u32 [#allocation16], 4
      %s4534 = int_to_ptr.vmem [resolvable:$true] %s4533
      %4539 = dma.vmem_to_hbm [thread:$0]  %s4534, 256, %s7, [#allocation7], 128, 128, 8
    $region53: #{embedding_moe_forward.3} parent=1 // pred_fallthru
      _
    // Predicated region
    $region54: #{embedding_moe_forward.3} parent=1 // pred_check
      _
    $region55: #{embedding_moe_forward.3} parent=1 // pred_check_branch
      %4541 = sbr.rel (0) target = $region57
    $region56: #{embedding_moe_forward.3} parent=1 // pred_region
      %s4543 = ssub.s32 32, 32
      %4544 = vsyncadd [#allocation18], %s4543
      %s4546 = sshll.u32 [#allocation17], 4
      %s4547 = int_to_ptr.vmem [resolvable:$true] %s4546
      %4549 = dma.vmem_to_hbm [thread:$0]  %s4547, 32, %s8, [#allocation18]
    $region57: #{embedding_moe_forward.3} parent=1 // pred_fallthru
      _
    // Predicated region
    $region58: #{embedding_moe_forward.3} parent=1 // pred_check
      _
    $region59: #{embedding_moe_forward.3} parent=1 // pred_check_branch
      %4551 = sbr.rel (0) target = $region61
    $region60: #{embedding_moe_forward.3} parent=1 // pred_region
      %4552 = dma.done [#allocation7], 256
    $region61: #{embedding_moe_forward.3} parent=1 // pred_fallthru
      _
    // Predicated region
    $region62: #{embedding_moe_forward.3} parent=1 // pred_check
      _
    $region63: #{embedding_moe_forward.3} parent=1 // pred_check_branch
      %4554 = sbr.rel (0) target = $region65
    $region64: #{embedding_moe_forward.3} parent=1 // pred_region
      %4555 = dma.done [#allocation18], 32
    $region65: #{embedding_moe_forward.3} parent=1 // pred_fallthru
      _
    %4556 = vsyncpa [#allocation6], 1
    %4557 = vsyncpa [#allocation9], 1
    %4558 = vsyncpa [#allocation12], 1
    %4559 = vsyncpa [#allocation15], 1
    %4560 = vsyncpa [#allocation7], 1
    %4561 = vsyncpa [#allocation18], 1

</llo_original>
